<compile_context>
chip_gen: v7x
topology: tpu7x:2x2x1
jax: 0.10.0
libtpu: 0.0.40
codegen_flags: <defaults>
</compile_context>

<pallas_src>
import functools
import math

import jax
import jax.numpy as jnp
from jax import lax
from jax.experimental import pallas as pl
from jax.experimental.pallas import tpu as pltpu


# ----------------------------------------------------------------------------
# In-kernel helpers (operate on values, all math in f32)
# ----------------------------------------------------------------------------

def _layernorm(z, g, b, eps):
    """LayerNorm over last dim. z: (N, H); g, b: (1, H)."""
    mu = jnp.mean(z, axis=-1, keepdims=True)
    var = jnp.mean(jnp.square(z - mu), axis=-1, keepdims=True)
    return (z - mu) * lax.rsqrt(var + eps) * g + b


def _softmax_lastdim(s):
    m = jnp.max(s, axis=-1, keepdims=True)
    p = jnp.exp(s - m)
    denom = jnp.sum(p, axis=-1, keepdims=True)
    return p * pl.reciprocal(denom, approx=True)


def _mha(q, k, v, bias, nhead, scale):
    """Multi-head attention on values.

    q: (Sq, H), k/v: (Sk, H), bias: (1, Sk) additive key-padding bias. -> (Sq, H).
    Heads are split with static lane slices; scores use dot_general contracting the
    last dims (no explicit transpose).
    """
    h_dim = q.shape[-1]
    dh = h_dim // nhead
    q = q * scale                                  # fold 1/sqrt(dh) into Q once
    contract = (((1,), (1,)), ((), ()))            # contract last dims, no batch dims
    outs = []
    for h in range(nhead):                         # static unrolled loop (nhead small)
        lo, hi = h * dh, (h + 1) * dh
        s = lax.dot_general(q[:, lo:hi], k[:, lo:hi], contract,
                            preferred_element_type=jnp.float32)        # (Sq, Sk)
        p = _softmax_lastdim(s + bias)
        outs.append(jnp.dot(p, v[:, lo:hi], preferred_element_type=jnp.float32))
    return jnp.concatenate(outs, axis=-1)          # (Sq, H)


# ----------------------------------------------------------------------------
# Fused forward kernel: one grid step == one batch element, full model
# ----------------------------------------------------------------------------

def _attn_fused_kernel(
    x_ref, mask_ref,
    # encoder params, stacked with leading layer axis L
    enc_wqkv, enc_bqkv, enc_wo, enc_bo, enc_ln1g, enc_ln1b,
    enc_w1, enc_b1, enc_w2, enc_b2, enc_ln2g, enc_ln2b,
    # decoder params
    dec_q, dec_wq, dec_bq, dec_wkv, dec_bkv, dec_wo, dec_bo,
    dec_lng, dec_lnb, dec_pw, dec_pb,
    out_ref,
    *, num_layers, nhead, eps):
    x = x_ref[0].astype(jnp.float32)                                   # (S, H)
    h_dim = x.shape[-1]
    scale = 1.0 / math.sqrt(h_dim // nhead)
    # key-padding bias computed in-kernel: 0 for valid tokens, -1e9 for pads
    bias = (1.0 - mask_ref[0].astype(jnp.float32)) * (-1e9)            # (1, S)

    # ---------------- transformer encoder (post-norm, ReLU FFN) ----------------
    for l in range(num_layers):                                        # static unroll
        qkv = jnp.dot(x, enc_wqkv[l],
                      preferred_element_type=jnp.float32) + enc_bqkv[l]   # (S, 3H)
        q = qkv[:, :h_dim]
        k = qkv[:, h_dim:2 * h_dim]
        v = qkv[:, 2 * h_dim:]
        a = _mha(q, k, v, bias, nhead, scale)                          # (S, H)
        a = jnp.dot(a, enc_wo[l], preferred_element_type=jnp.float32) + enc_bo[l]
        x = _layernorm(x + a, enc_ln1g[l], enc_ln1b[l], eps)
        f = jnp.maximum(
            jnp.dot(x, enc_w1[l], preferred_element_type=jnp.float32) + enc_b1[l],
            0.0)                                                       # (S, 4H)
        f = jnp.dot(f, enc_w2[l], preferred_element_type=jnp.float32) + enc_b2[l]
        x = _layernorm(x + f, enc_ln2g[l], enc_ln2b[l], eps)

    # ---------------- MLDecoderLite cross-attention head ----------------
    qin = dec_q[...].astype(jnp.float32)                               # (C, H) class queries
    qp = jnp.dot(qin, dec_wq[...], preferred_element_type=jnp.float32) + dec_bq[...]
    kv = jnp.dot(x, dec_wkv[...], preferred_element_type=jnp.float32) + dec_bkv[...]
    k = kv[:, :h_dim]
    v = kv[:, h_dim:]
    a = _mha(qp, k, v, bias, nhead, scale)                             # (C, H)
    a = jnp.dot(a, dec_wo[...], preferred_element_type=jnp.float32) + dec_bo[...]
    d = _layernorm(qin + a, dec_lng[...], dec_lnb[...], eps)           # (C, H)

    # per-class linear: logit[c] = <d[c], Wp[c]> + b[c]  == diag(d @ Wp^T), on the MXU
    sc = lax.dot_general(d, dec_pw[...], (((1,), (1,)), ((), ())),
                         preferred_element_type=jnp.float32)           # (C, C)
    c = sc.shape[0]
    row = lax.broadcasted_iota(jnp.int32, (c, c), 0)
    col = lax.broadcasted_iota(jnp.int32, (c, c), 1)
    logits = jnp.sum(jnp.where(row == col, sc, 0.0),
                     axis=0, keepdims=True) + dec_pb[...]              # (1, C)
    out_ref[0] = logits.astype(out_ref.dtype)


# ----------------------------------------------------------------------------
# Host wrapper
# ----------------------------------------------------------------------------

def _const_spec(shape):
    """Full-array block, same block for every grid step (weights stay VMEM-resident)."""
    nd = len(shape)
    return pl.BlockSpec(shape, lambda i, _nd=nd: (0,) * _nd)


def attn_forward(params, smile_feat, mask, *, nhead, eps=1e-5):
    """smile_feat: (B, S, H) float32; mask: (B, S) with 1 = valid token, 0 = pad."""
    b, s, h = smile_feat.shape
    enc = params["encoder"]
    dec = params["decoder"]
    num_layers = enc["wqkv"].shape[0]
    num_classes = dec["proj_w"].shape[0]

    inputs = [
        smile_feat,
        mask.astype(jnp.float32).reshape(b, 1, s),
        enc["wqkv"], enc["bqkv"], enc["wo"], enc["bo"],
        enc["ln1_g"], enc["ln1_b"],
        enc["w1"], enc["b1"], enc["w2"], enc["b2"],
        enc["ln2_g"], enc["ln2_b"],
        dec["queries"], dec["wq"], dec["bq"], dec["wkv"], dec["bkv"],
        dec["wo"], dec["bo"], dec["ln_g"], dec["ln_b"],
        dec["proj_w"], dec["proj_b"],
    ]
    in_specs = [
        pl.BlockSpec((1, s, h), lambda i: (i, 0, 0)),   # activations: one batch row / step
        pl.BlockSpec((1, 1, s), lambda i: (i, 0, 0)),   # mask for that batch row
    ] + [_const_spec(a.shape) for a in inputs[2:]]      # all weights: resident full blocks

    out = pl.pallas_call(
        functools.partial(_attn_fused_kernel,
                          num_layers=num_layers, nhead=nhead, eps=eps),
        out_shape=jax.ShapeDtypeStruct((b, 1, num_classes), jnp.float32),
        grid=(b,),
        in_specs=in_specs,
        out_specs=pl.BlockSpec((1, 1, num_classes), lambda i: (i, 0, 0)),
        compiler_params=pltpu.CompilerParams(
            dimension_semantics=("parallel",)),          # batch rows shard across TCs (v7x)
    )(*inputs)
    return out.reshape(b, num_classes)


# ----------------------------------------------------------------------------
# Deterministic parameter init (fused QKV / KV weight layouts)
# ----------------------------------------------------------------------------

def init_params(key, hidden_dim, num_layers, num_classes, ffn_mult=4):
    def dense(k, din, dout):
        return jax.random.normal(k, (din, dout), jnp.float32) * 0.02

    def zeros(*shp):
        return jnp.zeros(shp, jnp.float32)

    def ones(*shp):
        return jnp.ones(shp, jnp.float32)

    keys = jax.random.split(key, num_layers + 2)
    wqkv, wo, w1, w2 = [], [], [], []
    for l in range(num_layers):
        k1, k2, k3, k4 = jax.random.split(keys[l], 4)
        wqkv.append(dense(k1, hidden_dim, 3 * hidden_dim))
        wo.append(dense(k2, hidden_dim, hidden_dim))
        w1.append(dense(k3, hidden_dim, ffn_mult * hidden_dim))
        w2.append(dense(k4, ffn_mult * hidden_dim, hidden_dim))
    enc = dict(
        wqkv=jnp.stack(wqkv), bqkv=zeros(num_layers, 1, 3 * hidden_dim),
        wo=jnp.stack(wo), bo=zeros(num_layers, 1, hidden_dim),
        ln1_g=ones(num_layers, 1, hidden_dim), ln1_b=zeros(num_layers, 1, hidden_dim),
        w1=jnp.stack(w1), b1=zeros(num_layers, 1, ffn_mult * hidden_dim),
        w2=jnp.stack(w2), b2=zeros(num_layers, 1, hidden_dim),
        ln2_g=ones(num_layers, 1, hidden_dim), ln2_b=zeros(num_layers, 1, hidden_dim),
    )

    kq, kdec = keys[num_layers], keys[num_layers + 1]
    d1, d2, d3, d4 = jax.random.split(kdec, 4)
    dec = dict(
        queries=jax.random.normal(kq, (num_classes, hidden_dim), jnp.float32) * 0.02,
        wq=dense(d1, hidden_dim, hidden_dim), bq=zeros(1, hidden_dim),
        wkv=dense(d2, hidden_dim, 2 * hidden_dim), bkv=zeros(1, 2 * hidden_dim),
        wo=dense(d3, hidden_dim, hidden_dim), bo=zeros(1, hidden_dim),
        ln_g=ones(1, hidden_dim), ln_b=zeros(1, hidden_dim),
        proj_w=jax.random.normal(d4, (num_classes, hidden_dim), jnp.float32) * 0.02,
        proj_b=zeros(1, num_classes),
    )
    return dict(encoder=enc, decoder=dec)


# ----------------------------------------------------------------------------
# Demo
# ----------------------------------------------------------------------------

if __name__ == "__main__":
    # Small shapes consistent with the module: hidden=32 (÷ nhead=4), seq=8, batch=2,
    # num_layers=2, out_dim + out_dim2 = 3 + 1 = 4 output logits per sample.
    B, S, H = 2, 8, 32
    NHEAD = 4
    NUM_LAYERS = 2
    NUM_CLASSES = 3 + 1

    root = jax.random.PRNGKey(0)
    k_params, k_feat = jax.random.split(root)
    params = init_params(k_params, H, NUM_LAYERS, NUM_CLASSES)

    smile_feat = jax.random.normal(k_feat, (B, S, H), jnp.float32)
    # mask: 1 = valid token, 0 = padding (second sample has 2 padded positions).
    mask = jnp.array(
        [[1, 1, 1, 1, 1, 1, 1, 1],
         [1, 1, 1, 1, 1, 1, 0, 0]], dtype=jnp.float32)

    fwd = jax.jit(functools.partial(attn_forward, nhead=NHEAD))
    out = fwd(params, smile_feat, mask)
    out = jax.block_until_ready(out)
    assert out.shape == (B, NUM_CLASSES), out.shape
    assert bool(jnp.all(jnp.isfinite(out)))
    print("KERNEL_OK")
</pallas_src>

<mosaic_0001>
module attributes {stable_mosaic.version = 11 : i64} {
  func.func @_attn_fused_kernel(%arg0: i32, %arg1: memref<1x8x32xf32, #tpu.memory_space<vmem>>, %arg2: memref<1x1x8xf32, #tpu.memory_space<vmem>>, %arg3: memref<2x32x96xf32, #tpu.memory_space<vmem>>, %arg4: memref<2x1x96xf32, #tpu.memory_space<vmem>>, %arg5: memref<2x32x32xf32, #tpu.memory_space<vmem>>, %arg6: memref<2x1x32xf32, #tpu.memory_space<vmem>>, %arg7: memref<2x1x32xf32, #tpu.memory_space<vmem>>, %arg8: memref<2x1x32xf32, #tpu.memory_space<vmem>>, %arg9: memref<2x32x128xf32, #tpu.memory_space<vmem>>, %arg10: memref<2x1x128xf32, #tpu.memory_space<vmem>>, %arg11: memref<2x128x32xf32, #tpu.memory_space<vmem>>, %arg12: memref<2x1x32xf32, #tpu.memory_space<vmem>>, %arg13: memref<2x1x32xf32, #tpu.memory_space<vmem>>, %arg14: memref<2x1x32xf32, #tpu.memory_space<vmem>>, %arg15: memref<4x32xf32, #tpu.memory_space<vmem>>, %arg16: memref<32x32xf32, #tpu.memory_space<vmem>>, %arg17: memref<1x32xf32, #tpu.memory_space<vmem>>, %arg18: memref<32x64xf32, #tpu.memory_space<vmem>>, %arg19: memref<1x64xf32, #tpu.memory_space<vmem>>, %arg20: memref<32x32xf32, #tpu.memory_space<vmem>>, %arg21: memref<1x32xf32, #tpu.memory_space<vmem>>, %arg22: memref<1x32xf32, #tpu.memory_space<vmem>>, %arg23: memref<1x32xf32, #tpu.memory_space<vmem>>, %arg24: memref<4x32xf32, #tpu.memory_space<vmem>>, %arg25: memref<1x4xf32, #tpu.memory_space<vmem>>, %arg26: memref<1x1x4xf32, #tpu.memory_space<vmem>>) attributes {dimension_semantics = [#tpu.dimension_semantics<parallel>], iteration_bounds = array<i64: 2>, scalar_prefetch = 0 : i64, scratch_operands = 0 : i64, tpu.core_type = #tpu.core_type<tc>, window_params = [{transform_indices = @transform_0, window_bounds = array<i64: 1, 8, 32>}, {transform_indices = @transform_1, window_bounds = array<i64: 1, 1, 8>}, {pipeline_mode = #tpu.pipeline_mode<synchronous>, transform_indices = @transform_2, window_bounds = array<i64: 2, 32, 96>}, {pipeline_mode = #tpu.pipeline_mode<synchronous>, transform_indices = @transform_3, window_bounds = array<i64: 2, 1, 96>}, {pipeline_mode = #tpu.pipeline_mode<synchronous>, transform_indices = @transform_4, window_bounds = array<i64: 2, 32, 32>}, {pipeline_mode = #tpu.pipeline_mode<synchronous>, transform_indices = @transform_5, window_bounds = array<i64: 2, 1, 32>}, {pipeline_mode = #tpu.pipeline_mode<synchronous>, transform_indices = @transform_6, window_bounds = array<i64: 2, 1, 32>}, {pipeline_mode = #tpu.pipeline_mode<synchronous>, transform_indices = @transform_7, window_bounds = array<i64: 2, 1, 32>}, {pipeline_mode = #tpu.pipeline_mode<synchronous>, transform_indices = @transform_8, window_bounds = array<i64: 2, 32, 128>}, {pipeline_mode = #tpu.pipeline_mode<synchronous>, transform_indices = @transform_9, window_bounds = array<i64: 2, 1, 128>}, {pipeline_mode = #tpu.pipeline_mode<synchronous>, transform_indices = @transform_10, window_bounds = array<i64: 2, 128, 32>}, {pipeline_mode = #tpu.pipeline_mode<synchronous>, transform_indices = @transform_11, window_bounds = array<i64: 2, 1, 32>}, {pipeline_mode = #tpu.pipeline_mode<synchronous>, transform_indices = @transform_12, window_bounds = array<i64: 2, 1, 32>}, {pipeline_mode = #tpu.pipeline_mode<synchronous>, transform_indices = @transform_13, window_bounds = array<i64: 2, 1, 32>}, {pipeline_mode = #tpu.pipeline_mode<synchronous>, transform_indices = @transform_14, window_bounds = array<i64: 4, 32>}, {pipeline_mode = #tpu.pipeline_mode<synchronous>, transform_indices = @transform_15, window_bounds = array<i64: 32, 32>}, {pipeline_mode = #tpu.pipeline_mode<synchronous>, transform_indices = @transform_16, window_bounds = array<i64: 1, 32>}, {pipeline_mode = #tpu.pipeline_mode<synchronous>, transform_indices = @transform_17, window_bounds = array<i64: 32, 64>}, {pipeline_mode = #tpu.pipeline_mode<synchronous>, transform_indices = @transform_18, window_bounds = array<i64: 1, 64>}, {pipeline_mode = #tpu.pipeline_mode<synchronous>, transform_indices = @transform_19, window_bounds = array<i64: 32, 32>}, {pipeline_mode = #tpu.pipeline_mode<synchronous>, transform_indices = @transform_20, window_bounds = array<i64: 1, 32>}, {pipeline_mode = #tpu.pipeline_mode<synchronous>, transform_indices = @transform_21, window_bounds = array<i64: 1, 32>}, {pipeline_mode = #tpu.pipeline_mode<synchronous>, transform_indices = @transform_22, window_bounds = array<i64: 1, 32>}, {pipeline_mode = #tpu.pipeline_mode<synchronous>, transform_indices = @transform_23, window_bounds = array<i64: 4, 32>}, {pipeline_mode = #tpu.pipeline_mode<synchronous>, transform_indices = @transform_24, window_bounds = array<i64: 1, 4>}, {transform_indices = @transform_25, window_bounds = array<i64: 1, 1, 4>}]} {
    %c0 = arith.constant 0 : index
    %c0_0 = arith.constant 0 : index
    %c0_1 = arith.constant 0 : index
    %0 = vector.load %arg1[%c0, %c0_0, %c0_1] : memref<1x8x32xf32, #tpu.memory_space<vmem>>, vector<1x8x32xf32>
    %1 = vector.shape_cast %0 : vector<1x8x32xf32> to vector<8x32xf32>
    %c0_2 = arith.constant 0 : index
    %c0_3 = arith.constant 0 : index
    %c0_4 = arith.constant 0 : index
    %2 = vector.load %arg2[%c0_2, %c0_3, %c0_4] : memref<1x1x8xf32, #tpu.memory_space<vmem>>, vector<1x1x8xf32>
    %3 = vector.shape_cast %2 : vector<1x1x8xf32> to vector<1x8xf32>
    %cst = arith.constant 1.000000e+00 : f32
    %4 = vector.broadcast %cst : f32 to vector<1x8xf32>
    %5 = arith.subf %4, %3 : vector<1x8xf32>
    %cst_5 = arith.constant -1.000000e+09 : f32
    %6 = vector.broadcast %cst_5 : f32 to vector<1x8xf32>
    %7 = arith.mulf %5, %6 : vector<1x8xf32>
    %c0_6 = arith.constant 0 : index
    %c0_7 = arith.constant 0 : index
    %c0_8 = arith.constant 0 : index
    %8 = vector.load %arg3[%c0_6, %c0_7, %c0_8] : memref<2x32x96xf32, #tpu.memory_space<vmem>>, vector<1x32x96xf32>
    %9 = vector.shape_cast %8 : vector<1x32x96xf32> to vector<32x96xf32>
    %cst_9 = arith.constant dense<0.000000e+00> : vector<8x96xf32>
    %10 = tpu.matmul %1, %9, %cst_9 {dimension_numbers = #tpu.dot_dimension_numbers<[1], [0], [0], [1], [0, 0, 1, 1], [], []>} : vector<8x32xf32>, vector<32x96xf32>, vector<8x96xf32> -> vector<8x96xf32>
    %c0_10 = arith.constant 0 : index
    %c0_11 = arith.constant 0 : index
    %c0_12 = arith.constant 0 : index
    %11 = vector.load %arg4[%c0_10, %c0_11, %c0_12] : memref<2x1x96xf32, #tpu.memory_space<vmem>>, vector<1x1x96xf32>
    %12 = vector.shape_cast %11 : vector<1x1x96xf32> to vector<1x96xf32>
    %13 = vector.broadcast %12 : vector<1x96xf32> to vector<8x96xf32>
    %14 = arith.addf %10, %13 : vector<8x96xf32>
    %15 = vector.extract_strided_slice %14 {offsets = [0, 0], sizes = [8, 32], strides = [1, 1]} : vector<8x96xf32> to vector<8x32xf32>
    %16 = vector.extract_strided_slice %14 {offsets = [0, 32], sizes = [8, 32], strides = [1, 1]} : vector<8x96xf32> to vector<8x32xf32>
    %17 = vector.extract_strided_slice %14 {offsets = [0, 64], sizes = [8, 32], strides = [1, 1]} : vector<8x96xf32> to vector<8x32xf32>
    %cst_13 = arith.constant 0.353553385 : f32
    %18 = vector.broadcast %cst_13 : f32 to vector<8x32xf32>
    %19 = arith.mulf %15, %18 : vector<8x32xf32>
    %20 = vector.extract_strided_slice %19 {offsets = [0, 0], sizes = [8, 8], strides = [1, 1]} : vector<8x32xf32> to vector<8x8xf32>
    %21 = vector.extract_strided_slice %16 {offsets = [0, 0], sizes = [8, 8], strides = [1, 1]} : vector<8x32xf32> to vector<8x8xf32>
    %cst_14 = arith.constant dense<0.000000e+00> : vector<8x8xf32>
    %22 = tpu.matmul %20, %21, %cst_14 {dimension_numbers = #tpu.dot_dimension_numbers<[1], [1], [0], [0], [0, 0, 1, 0], [], []>} : vector<8x8xf32>, vector<8x8xf32>, vector<8x8xf32> -> vector<8x8xf32>
    %23 = vector.broadcast %7 : vector<1x8xf32> to vector<8x8xf32>
    %24 = arith.addf %22, %23 : vector<8x8xf32>
    %cst_15 = arith.constant dense<0xFF800000> : vector<8xf32>
    %25 = vector.multi_reduction <maximumf>, %24, %cst_15 [1] : vector<8x8xf32> to vector<8xf32>
    %26 = vector.shape_cast %25 : vector<8xf32> to vector<8x1xf32>
    %27 = vector.broadcast %26 : vector<8x1xf32> to vector<8x8xf32>
    %28 = arith.subf %24, %27 : vector<8x8xf32>
    %29 = math.exp %28 : vector<8x8xf32>
    %cst_16 = arith.constant dense<0.000000e+00> : vector<8xf32>
    %30 = vector.multi_reduction <add>, %29, %cst_16 [1] : vector<8x8xf32> to vector<8xf32>
    %31 = vector.shape_cast %30 : vector<8xf32> to vector<8x1xf32>
    %32 = tpu.reciprocal %31 {approx = true} : vector<8x1xf32> -> vector<8x1xf32>
    %33 = vector.broadcast %32 : vector<8x1xf32> to vector<8x8xf32>
    %34 = arith.mulf %29, %33 : vector<8x8xf32>
    %35 = vector.extract_strided_slice %17 {offsets = [0, 0], sizes = [8, 8], strides = [1, 1]} : vector<8x32xf32> to vector<8x8xf32>
    %cst_17 = arith.constant dense<0.000000e+00> : vector<8x8xf32>
    %36 = tpu.matmul %34, %35, %cst_17 {dimension_numbers = #tpu.dot_dimension_numbers<[1], [0], [0], [1], [0, 0, 1, 1], [], []>} : vector<8x8xf32>, vector<8x8xf32>, vector<8x8xf32> -> vector<8x8xf32>
    %37 = vector.extract_strided_slice %19 {offsets = [0, 8], sizes = [8, 8], strides = [1, 1]} : vector<8x32xf32> to vector<8x8xf32>
    %38 = vector.extract_strided_slice %16 {offsets = [0, 8], sizes = [8, 8], strides = [1, 1]} : vector<8x32xf32> to vector<8x8xf32>
    %cst_18 = arith.constant dense<0.000000e+00> : vector<8x8xf32>
    %39 = tpu.matmul %37, %38, %cst_18 {dimension_numbers = #tpu.dot_dimension_numbers<[1], [1], [0], [0], [0, 0, 1, 0], [], []>} : vector<8x8xf32>, vector<8x8xf32>, vector<8x8xf32> -> vector<8x8xf32>
    %40 = vector.broadcast %7 : vector<1x8xf32> to vector<8x8xf32>
    %41 = arith.addf %39, %40 : vector<8x8xf32>
    %cst_19 = arith.constant dense<0xFF800000> : vector<8xf32>
    %42 = vector.multi_reduction <maximumf>, %41, %cst_19 [1] : vector<8x8xf32> to vector<8xf32>
    %43 = vector.shape_cast %42 : vector<8xf32> to vector<8x1xf32>
    %44 = vector.broadcast %43 : vector<8x1xf32> to vector<8x8xf32>
    %45 = arith.subf %41, %44 : vector<8x8xf32>
    %46 = math.exp %45 : vector<8x8xf32>
    %cst_20 = arith.constant dense<0.000000e+00> : vector<8xf32>
    %47 = vector.multi_reduction <add>, %46, %cst_20 [1] : vector<8x8xf32> to vector<8xf32>
    %48 = vector.shape_cast %47 : vector<8xf32> to vector<8x1xf32>
    %49 = tpu.reciprocal %48 {approx = true} : vector<8x1xf32> -> vector<8x1xf32>
    %50 = vector.broadcast %49 : vector<8x1xf32> to vector<8x8xf32>
    %51 = arith.mulf %46, %50 : vector<8x8xf32>
    %52 = vector.extract_strided_slice %17 {offsets = [0, 8], sizes = [8, 8], strides = [1, 1]} : vector<8x32xf32> to vector<8x8xf32>
    %cst_21 = arith.constant dense<0.000000e+00> : vector<8x8xf32>
    %53 = tpu.matmul %51, %52, %cst_21 {dimension_numbers = #tpu.dot_dimension_numbers<[1], [0], [0], [1], [0, 0, 1, 1], [], []>} : vector<8x8xf32>, vector<8x8xf32>, vector<8x8xf32> -> vector<8x8xf32>
    %54 = vector.extract_strided_slice %19 {offsets = [0, 16], sizes = [8, 8], strides = [1, 1]} : vector<8x32xf32> to vector<8x8xf32>
    %55 = vector.extract_strided_slice %16 {offsets = [0, 16], sizes = [8, 8], strides = [1, 1]} : vector<8x32xf32> to vector<8x8xf32>
    %cst_22 = arith.constant dense<0.000000e+00> : vector<8x8xf32>
    %56 = tpu.matmul %54, %55, %cst_22 {dimension_numbers = #tpu.dot_dimension_numbers<[1], [1], [0], [0], [0, 0, 1, 0], [], []>} : vector<8x8xf32>, vector<8x8xf32>, vector<8x8xf32> -> vector<8x8xf32>
    %57 = vector.broadcast %7 : vector<1x8xf32> to vector<8x8xf32>
    %58 = arith.addf %56, %57 : vector<8x8xf32>
    %cst_23 = arith.constant dense<0xFF800000> : vector<8xf32>
    %59 = vector.multi_reduction <maximumf>, %58, %cst_23 [1] : vector<8x8xf32> to vector<8xf32>
    %60 = vector.shape_cast %59 : vector<8xf32> to vector<8x1xf32>
    %61 = vector.broadcast %60 : vector<8x1xf32> to vector<8x8xf32>
    %62 = arith.subf %58, %61 : vector<8x8xf32>
    %63 = math.exp %62 : vector<8x8xf32>
    %cst_24 = arith.constant dense<0.000000e+00> : vector<8xf32>
    %64 = vector.multi_reduction <add>, %63, %cst_24 [1] : vector<8x8xf32> to vector<8xf32>
    %65 = vector.shape_cast %64 : vector<8xf32> to vector<8x1xf32>
    %66 = tpu.reciprocal %65 {approx = true} : vector<8x1xf32> -> vector<8x1xf32>
    %67 = vector.broadcast %66 : vector<8x1xf32> to vector<8x8xf32>
    %68 = arith.mulf %63, %67 : vector<8x8xf32>
    %69 = vector.extract_strided_slice %17 {offsets = [0, 16], sizes = [8, 8], strides = [1, 1]} : vector<8x32xf32> to vector<8x8xf32>
    %cst_25 = arith.constant dense<0.000000e+00> : vector<8x8xf32>
    %70 = tpu.matmul %68, %69, %cst_25 {dimension_numbers = #tpu.dot_dimension_numbers<[1], [0], [0], [1], [0, 0, 1, 1], [], []>} : vector<8x8xf32>, vector<8x8xf32>, vector<8x8xf32> -> vector<8x8xf32>
    %71 = vector.extract_strided_slice %19 {offsets = [0, 24], sizes = [8, 8], strides = [1, 1]} : vector<8x32xf32> to vector<8x8xf32>
    %72 = vector.extract_strided_slice %16 {offsets = [0, 24], sizes = [8, 8], strides = [1, 1]} : vector<8x32xf32> to vector<8x8xf32>
    %cst_26 = arith.constant dense<0.000000e+00> : vector<8x8xf32>
    %73 = tpu.matmul %71, %72, %cst_26 {dimension_numbers = #tpu.dot_dimension_numbers<[1], [1], [0], [0], [0, 0, 1, 0], [], []>} : vector<8x8xf32>, vector<8x8xf32>, vector<8x8xf32> -> vector<8x8xf32>
    %74 = vector.broadcast %7 : vector<1x8xf32> to vector<8x8xf32>
    %75 = arith.addf %73, %74 : vector<8x8xf32>
    %cst_27 = arith.constant dense<0xFF800000> : vector<8xf32>
    %76 = vector.multi_reduction <maximumf>, %75, %cst_27 [1] : vector<8x8xf32> to vector<8xf32>
    %77 = vector.shape_cast %76 : vector<8xf32> to vector<8x1xf32>
    %78 = vector.broadcast %77 : vector<8x1xf32> to vector<8x8xf32>
    %79 = arith.subf %75, %78 : vector<8x8xf32>
    %80 = math.exp %79 : vector<8x8xf32>
    %cst_28 = arith.constant dense<0.000000e+00> : vector<8xf32>
    %81 = vector.multi_reduction <add>, %80, %cst_28 [1] : vector<8x8xf32> to vector<8xf32>
    %82 = vector.shape_cast %81 : vector<8xf32> to vector<8x1xf32>
    %83 = tpu.reciprocal %82 {approx = true} : vector<8x1xf32> -> vector<8x1xf32>
    %84 = vector.broadcast %83 : vector<8x1xf32> to vector<8x8xf32>
    %85 = arith.mulf %80, %84 : vector<8x8xf32>
    %86 = vector.extract_strided_slice %17 {offsets = [0, 24], sizes = [8, 8], strides = [1, 1]} : vector<8x32xf32> to vector<8x8xf32>
    %cst_29 = arith.constant dense<0.000000e+00> : vector<8x8xf32>
    %87 = tpu.matmul %85, %86, %cst_29 {dimension_numbers = #tpu.dot_dimension_numbers<[1], [0], [0], [1], [0, 0, 1, 1], [], []>} : vector<8x8xf32>, vector<8x8xf32>, vector<8x8xf32> -> vector<8x8xf32>
    %88 = tpu.concatenate %36, %53, %70, %87 in 1 : vector<8x8xf32>, vector<8x8xf32>, vector<8x8xf32>, vector<8x8xf32> -> vector<8x32xf32>
    %c0_30 = arith.constant 0 : index
    %c0_31 = arith.constant 0 : index
    %c0_32 = arith.constant 0 : index
    %89 = vector.load %arg5[%c0_30, %c0_31, %c0_32] : memref<2x32x32xf32, #tpu.memory_space<vmem>>, vector<1x32x32xf32>
    %90 = vector.shape_cast %89 : vector<1x32x32xf32> to vector<32x32xf32>
    %cst_33 = arith.constant dense<0.000000e+00> : vector<8x32xf32>
    %91 = tpu.matmul %88, %90, %cst_33 {dimension_numbers = #tpu.dot_dimension_numbers<[1], [0], [0], [1], [0, 0, 1, 1], [], []>} : vector<8x32xf32>, vector<32x32xf32>, vector<8x32xf32> -> vector<8x32xf32>
    %c0_34 = arith.constant 0 : index
    %c0_35 = arith.constant 0 : index
    %c0_36 = arith.constant 0 : index
    %92 = vector.load %arg6[%c0_34, %c0_35, %c0_36] : memref<2x1x32xf32, #tpu.memory_space<vmem>>, vector<1x1x32xf32>
    %93 = vector.shape_cast %92 : vector<1x1x32xf32> to vector<1x32xf32>
    %94 = vector.broadcast %93 : vector<1x32xf32> to vector<8x32xf32>
    %95 = arith.addf %91, %94 : vector<8x32xf32>
    %96 = arith.addf %1, %95 : vector<8x32xf32>
    %c0_37 = arith.constant 0 : index
    %c0_38 = arith.constant 0 : index
    %c0_39 = arith.constant 0 : index
    %97 = vector.load %arg7[%c0_37, %c0_38, %c0_39] : memref<2x1x32xf32, #tpu.memory_space<vmem>>, vector<1x1x32xf32>
    %98 = vector.shape_cast %97 : vector<1x1x32xf32> to vector<1x32xf32>
    %c0_40 = arith.constant 0 : index
    %c0_41 = arith.constant 0 : index
    %c0_42 = arith.constant 0 : index
    %99 = vector.load %arg8[%c0_40, %c0_41, %c0_42] : memref<2x1x32xf32, #tpu.memory_space<vmem>>, vector<1x1x32xf32>
    %100 = vector.shape_cast %99 : vector<1x1x32xf32> to vector<1x32xf32>
    %cst_43 = arith.constant dense<0.000000e+00> : vector<8xf32>
    %101 = vector.multi_reduction <add>, %96, %cst_43 [1] : vector<8x32xf32> to vector<8xf32>
    %102 = vector.shape_cast %101 : vector<8xf32> to vector<8x1xf32>
    %cst_44 = arith.constant 3.200000e+01 : f32
    %103 = vector.broadcast %cst_44 : f32 to vector<8x1xf32>
    %104 = arith.divf %102, %103 : vector<8x1xf32>
    %105 = vector.broadcast %104 : vector<8x1xf32> to vector<8x32xf32>
    %106 = arith.subf %96, %105 : vector<8x32xf32>
    %107 = arith.mulf %106, %106 : vector<8x32xf32>
    %cst_45 = arith.constant dense<0.000000e+00> : vector<8xf32>
    %108 = vector.multi_reduction <add>, %107, %cst_45 [1] : vector<8x32xf32> to vector<8xf32>
    %109 = vector.shape_cast %108 : vector<8xf32> to vector<8x1xf32>
    %cst_46 = arith.constant 3.200000e+01 : f32
    %110 = vector.broadcast %cst_46 : f32 to vector<8x1xf32>
    %111 = arith.divf %109, %110 : vector<8x1xf32>
    %112 = vector.broadcast %104 : vector<8x1xf32> to vector<8x32xf32>
    %113 = arith.subf %96, %112 : vector<8x32xf32>
    %cst_47 = arith.constant 9.99999974E-6 : f32
    %114 = vector.broadcast %cst_47 : f32 to vector<8x1xf32>
    %115 = arith.addf %111, %114 : vector<8x1xf32>
    %116 = math.rsqrt %115 : vector<8x1xf32>
    %117 = vector.broadcast %116 : vector<8x1xf32> to vector<8x32xf32>
    %118 = arith.mulf %113, %117 : vector<8x32xf32>
    %119 = vector.broadcast %98 : vector<1x32xf32> to vector<8x32xf32>
    %120 = arith.mulf %118, %119 : vector<8x32xf32>
    %121 = vector.broadcast %100 : vector<1x32xf32> to vector<8x32xf32>
    %122 = arith.addf %120, %121 : vector<8x32xf32>
    %c0_48 = arith.constant 0 : index
    %c0_49 = arith.constant 0 : index
    %c0_50 = arith.constant 0 : index
    %123 = vector.load %arg9[%c0_48, %c0_49, %c0_50] : memref<2x32x128xf32, #tpu.memory_space<vmem>>, vector<1x32x128xf32>
    %124 = vector.shape_cast %123 : vector<1x32x128xf32> to vector<32x128xf32>
    %cst_51 = arith.constant dense<0.000000e+00> : vector<8x128xf32>
    %125 = tpu.matmul %122, %124, %cst_51 {dimension_numbers = #tpu.dot_dimension_numbers<[1], [0], [0], [1], [0, 0, 1, 1], [], []>} : vector<8x32xf32>, vector<32x128xf32>, vector<8x128xf32> -> vector<8x128xf32>
    %c0_52 = arith.constant 0 : index
    %c0_53 = arith.constant 0 : index
    %c0_54 = arith.constant 0 : index
    %126 = vector.load %arg10[%c0_52, %c0_53, %c0_54] : memref<2x1x128xf32, #tpu.memory_space<vmem>>, vector<1x1x128xf32>
    %127 = vector.shape_cast %126 : vector<1x1x128xf32> to vector<1x128xf32>
    %128 = vector.broadcast %127 : vector<1x128xf32> to vector<8x128xf32>
    %129 = arith.addf %125, %128 : vector<8x128xf32>
    %cst_55 = arith.constant 0.000000e+00 : f32
    %130 = vector.broadcast %cst_55 : f32 to vector<8x128xf32>
    %131 = arith.maximumf %129, %130 : vector<8x128xf32>
    %c0_56 = arith.constant 0 : index
    %c0_57 = arith.constant 0 : index
    %c0_58 = arith.constant 0 : index
    %132 = vector.load %arg11[%c0_56, %c0_57, %c0_58] : memref<2x128x32xf32, #tpu.memory_space<vmem>>, vector<1x128x32xf32>
    %133 = vector.shape_cast %132 : vector<1x128x32xf32> to vector<128x32xf32>
    %cst_59 = arith.constant dense<0.000000e+00> : vector<8x32xf32>
    %134 = tpu.matmul %131, %133, %cst_59 {dimension_numbers = #tpu.dot_dimension_numbers<[1], [0], [0], [1], [0, 0, 1, 1], [], []>} : vector<8x128xf32>, vector<128x32xf32>, vector<8x32xf32> -> vector<8x32xf32>
    %c0_60 = arith.constant 0 : index
    %c0_61 = arith.constant 0 : index
    %c0_62 = arith.constant 0 : index
    %135 = vector.load %arg12[%c0_60, %c0_61, %c0_62] : memref<2x1x32xf32, #tpu.memory_space<vmem>>, vector<1x1x32xf32>
    %136 = vector.shape_cast %135 : vector<1x1x32xf32> to vector<1x32xf32>
    %137 = vector.broadcast %136 : vector<1x32xf32> to vector<8x32xf32>
    %138 = arith.addf %134, %137 : vector<8x32xf32>
    %139 = arith.addf %122, %138 : vector<8x32xf32>
    %c0_63 = arith.constant 0 : index
    %c0_64 = arith.constant 0 : index
    %c0_65 = arith.constant 0 : index
    %140 = vector.load %arg13[%c0_63, %c0_64, %c0_65] : memref<2x1x32xf32, #tpu.memory_space<vmem>>, vector<1x1x32xf32>
    %141 = vector.shape_cast %140 : vector<1x1x32xf32> to vector<1x32xf32>
    %c0_66 = arith.constant 0 : index
    %c0_67 = arith.constant 0 : index
    %c0_68 = arith.constant 0 : index
    %142 = vector.load %arg14[%c0_66, %c0_67, %c0_68] : memref<2x1x32xf32, #tpu.memory_space<vmem>>, vector<1x1x32xf32>
    %143 = vector.shape_cast %142 : vector<1x1x32xf32> to vector<1x32xf32>
    %cst_69 = arith.constant dense<0.000000e+00> : vector<8xf32>
    %144 = vector.multi_reduction <add>, %139, %cst_69 [1] : vector<8x32xf32> to vector<8xf32>
    %145 = vector.shape_cast %144 : vector<8xf32> to vector<8x1xf32>
    %cst_70 = arith.constant 3.200000e+01 : f32
    %146 = vector.broadcast %cst_70 : f32 to vector<8x1xf32>
    %147 = arith.divf %145, %146 : vector<8x1xf32>
    %148 = vector.broadcast %147 : vector<8x1xf32> to vector<8x32xf32>
    %149 = arith.subf %139, %148 : vector<8x32xf32>
    %150 = arith.mulf %149, %149 : vector<8x32xf32>
    %cst_71 = arith.constant dense<0.000000e+00> : vector<8xf32>
    %151 = vector.multi_reduction <add>, %150, %cst_71 [1] : vector<8x32xf32> to vector<8xf32>
    %152 = vector.shape_cast %151 : vector<8xf32> to vector<8x1xf32>
    %cst_72 = arith.constant 3.200000e+01 : f32
    %153 = vector.broadcast %cst_72 : f32 to vector<8x1xf32>
    %154 = arith.divf %152, %153 : vector<8x1xf32>
    %155 = vector.broadcast %147 : vector<8x1xf32> to vector<8x32xf32>
    %156 = arith.subf %139, %155 : vector<8x32xf32>
    %cst_73 = arith.constant 9.99999974E-6 : f32
    %157 = vector.broadcast %cst_73 : f32 to vector<8x1xf32>
    %158 = arith.addf %154, %157 : vector<8x1xf32>
    %159 = math.rsqrt %158 : vector<8x1xf32>
    %160 = vector.broadcast %159 : vector<8x1xf32> to vector<8x32xf32>
    %161 = arith.mulf %156, %160 : vector<8x32xf32>
    %162 = vector.broadcast %141 : vector<1x32xf32> to vector<8x32xf32>
    %163 = arith.mulf %161, %162 : vector<8x32xf32>
    %164 = vector.broadcast %143 : vector<1x32xf32> to vector<8x32xf32>
    %165 = arith.addf %163, %164 : vector<8x32xf32>
    %c1 = arith.constant 1 : index
    %c0_74 = arith.constant 0 : index
    %c0_75 = arith.constant 0 : index
    %166 = vector.load %arg3[%c1, %c0_74, %c0_75] : memref<2x32x96xf32, #tpu.memory_space<vmem>>, vector<1x32x96xf32>
    %167 = vector.shape_cast %166 : vector<1x32x96xf32> to vector<32x96xf32>
    %cst_76 = arith.constant dense<0.000000e+00> : vector<8x96xf32>
    %168 = tpu.matmul %165, %167, %cst_76 {dimension_numbers = #tpu.dot_dimension_numbers<[1], [0], [0], [1], [0, 0, 1, 1], [], []>} : vector<8x32xf32>, vector<32x96xf32>, vector<8x96xf32> -> vector<8x96xf32>
    %c1_77 = arith.constant 1 : index
    %c0_78 = arith.constant 0 : index
    %c0_79 = arith.constant 0 : index
    %169 = vector.load %arg4[%c1_77, %c0_78, %c0_79] : memref<2x1x96xf32, #tpu.memory_space<vmem>>, vector<1x1x96xf32>
    %170 = vector.shape_cast %169 : vector<1x1x96xf32> to vector<1x96xf32>
    %171 = vector.broadcast %170 : vector<1x96xf32> to vector<8x96xf32>
    %172 = arith.addf %168, %171 : vector<8x96xf32>
    %173 = vector.extract_strided_slice %172 {offsets = [0, 0], sizes = [8, 32], strides = [1, 1]} : vector<8x96xf32> to vector<8x32xf32>
    %174 = vector.extract_strided_slice %172 {offsets = [0, 32], sizes = [8, 32], strides = [1, 1]} : vector<8x96xf32> to vector<8x32xf32>
    %175 = vector.extract_strided_slice %172 {offsets = [0, 64], sizes = [8, 32], strides = [1, 1]} : vector<8x96xf32> to vector<8x32xf32>
    %cst_80 = arith.constant 0.353553385 : f32
    %176 = vector.broadcast %cst_80 : f32 to vector<8x32xf32>
    %177 = arith.mulf %173, %176 : vector<8x32xf32>
    %178 = vector.extract_strided_slice %177 {offsets = [0, 0], sizes = [8, 8], strides = [1, 1]} : vector<8x32xf32> to vector<8x8xf32>
    %179 = vector.extract_strided_slice %174 {offsets = [0, 0], sizes = [8, 8], strides = [1, 1]} : vector<8x32xf32> to vector<8x8xf32>
    %cst_81 = arith.constant dense<0.000000e+00> : vector<8x8xf32>
    %180 = tpu.matmul %178, %179, %cst_81 {dimension_numbers = #tpu.dot_dimension_numbers<[1], [1], [0], [0], [0, 0, 1, 0], [], []>} : vector<8x8xf32>, vector<8x8xf32>, vector<8x8xf32> -> vector<8x8xf32>
    %181 = vector.broadcast %7 : vector<1x8xf32> to vector<8x8xf32>
    %182 = arith.addf %180, %181 : vector<8x8xf32>
    %cst_82 = arith.constant dense<0xFF800000> : vector<8xf32>
    %183 = vector.multi_reduction <maximumf>, %182, %cst_82 [1] : vector<8x8xf32> to vector<8xf32>
    %184 = vector.shape_cast %183 : vector<8xf32> to vector<8x1xf32>
    %185 = vector.broadcast %184 : vector<8x1xf32> to vector<8x8xf32>
    %186 = arith.subf %182, %185 : vector<8x8xf32>
    %187 = math.exp %186 : vector<8x8xf32>
    %cst_83 = arith.constant dense<0.000000e+00> : vector<8xf32>
    %188 = vector.multi_reduction <add>, %187, %cst_83 [1] : vector<8x8xf32> to vector<8xf32>
    %189 = vector.shape_cast %188 : vector<8xf32> to vector<8x1xf32>
    %190 = tpu.reciprocal %189 {approx = true} : vector<8x1xf32> -> vector<8x1xf32>
    %191 = vector.broadcast %190 : vector<8x1xf32> to vector<8x8xf32>
    %192 = arith.mulf %187, %191 : vector<8x8xf32>
    %193 = vector.extract_strided_slice %175 {offsets = [0, 0], sizes = [8, 8], strides = [1, 1]} : vector<8x32xf32> to vector<8x8xf32>
    %cst_84 = arith.constant dense<0.000000e+00> : vector<8x8xf32>
    %194 = tpu.matmul %192, %193, %cst_84 {dimension_numbers = #tpu.dot_dimension_numbers<[1], [0], [0], [1], [0, 0, 1, 1], [], []>} : vector<8x8xf32>, vector<8x8xf32>, vector<8x8xf32> -> vector<8x8xf32>
    %195 = vector.extract_strided_slice %177 {offsets = [0, 8], sizes = [8, 8], strides = [1, 1]} : vector<8x32xf32> to vector<8x8xf32>
    %196 = vector.extract_strided_slice %174 {offsets = [0, 8], sizes = [8, 8], strides = [1, 1]} : vector<8x32xf32> to vector<8x8xf32>
    %cst_85 = arith.constant dense<0.000000e+00> : vector<8x8xf32>
    %197 = tpu.matmul %195, %196, %cst_85 {dimension_numbers = #tpu.dot_dimension_numbers<[1], [1], [0], [0], [0, 0, 1, 0], [], []>} : vector<8x8xf32>, vector<8x8xf32>, vector<8x8xf32> -> vector<8x8xf32>
    %198 = vector.broadcast %7 : vector<1x8xf32> to vector<8x8xf32>
    %199 = arith.addf %197, %198 : vector<8x8xf32>
    %cst_86 = arith.constant dense<0xFF800000> : vector<8xf32>
    %200 = vector.multi_reduction <maximumf>, %199, %cst_86 [1] : vector<8x8xf32> to vector<8xf32>
    %201 = vector.shape_cast %200 : vector<8xf32> to vector<8x1xf32>
    %202 = vector.broadcast %201 : vector<8x1xf32> to vector<8x8xf32>
    %203 = arith.subf %199, %202 : vector<8x8xf32>
    %204 = math.exp %203 : vector<8x8xf32>
    %cst_87 = arith.constant dense<0.000000e+00> : vector<8xf32>
    %205 = vector.multi_reduction <add>, %204, %cst_87 [1] : vector<8x8xf32> to vector<8xf32>
    %206 = vector.shape_cast %205 : vector<8xf32> to vector<8x1xf32>
    %207 = tpu.reciprocal %206 {approx = true} : vector<8x1xf32> -> vector<8x1xf32>
    %208 = vector.broadcast %207 : vector<8x1xf32> to vector<8x8xf32>
    %209 = arith.mulf %204, %208 : vector<8x8xf32>
    %210 = vector.extract_strided_slice %175 {offsets = [0, 8], sizes = [8, 8], strides = [1, 1]} : vector<8x32xf32> to vector<8x8xf32>
    %cst_88 = arith.constant dense<0.000000e+00> : vector<8x8xf32>
    %211 = tpu.matmul %209, %210, %cst_88 {dimension_numbers = #tpu.dot_dimension_numbers<[1], [0], [0], [1], [0, 0, 1, 1], [], []>} : vector<8x8xf32>, vector<8x8xf32>, vector<8x8xf32> -> vector<8x8xf32>
    %212 = vector.extract_strided_slice %177 {offsets = [0, 16], sizes = [8, 8], strides = [1, 1]} : vector<8x32xf32> to vector<8x8xf32>
    %213 = vector.extract_strided_slice %174 {offsets = [0, 16], sizes = [8, 8], strides = [1, 1]} : vector<8x32xf32> to vector<8x8xf32>
    %cst_89 = arith.constant dense<0.000000e+00> : vector<8x8xf32>
    %214 = tpu.matmul %212, %213, %cst_89 {dimension_numbers = #tpu.dot_dimension_numbers<[1], [1], [0], [0], [0, 0, 1, 0], [], []>} : vector<8x8xf32>, vector<8x8xf32>, vector<8x8xf32> -> vector<8x8xf32>
    %215 = vector.broadcast %7 : vector<1x8xf32> to vector<8x8xf32>
    %216 = arith.addf %214, %215 : vector<8x8xf32>
    %cst_90 = arith.constant dense<0xFF800000> : vector<8xf32>
    %217 = vector.multi_reduction <maximumf>, %216, %cst_90 [1] : vector<8x8xf32> to vector<8xf32>
    %218 = vector.shape_cast %217 : vector<8xf32> to vector<8x1xf32>
    %219 = vector.broadcast %218 : vector<8x1xf32> to vector<8x8xf32>
    %220 = arith.subf %216, %219 : vector<8x8xf32>
    %221 = math.exp %220 : vector<8x8xf32>
    %cst_91 = arith.constant dense<0.000000e+00> : vector<8xf32>
    %222 = vector.multi_reduction <add>, %221, %cst_91 [1] : vector<8x8xf32> to vector<8xf32>
    %223 = vector.shape_cast %222 : vector<8xf32> to vector<8x1xf32>
    %224 = tpu.reciprocal %223 {approx = true} : vector<8x1xf32> -> vector<8x1xf32>
    %225 = vector.broadcast %224 : vector<8x1xf32> to vector<8x8xf32>
    %226 = arith.mulf %221, %225 : vector<8x8xf32>
    %227 = vector.extract_strided_slice %175 {offsets = [0, 16], sizes = [8, 8], strides = [1, 1]} : vector<8x32xf32> to vector<8x8xf32>
    %cst_92 = arith.constant dense<0.000000e+00> : vector<8x8xf32>
    %228 = tpu.matmul %226, %227, %cst_92 {dimension_numbers = #tpu.dot_dimension_numbers<[1], [0], [0], [1], [0, 0, 1, 1], [], []>} : vector<8x8xf32>, vector<8x8xf32>, vector<8x8xf32> -> vector<8x8xf32>
    %229 = vector.extract_strided_slice %177 {offsets = [0, 24], sizes = [8, 8], strides = [1, 1]} : vector<8x32xf32> to vector<8x8xf32>
    %230 = vector.extract_strided_slice %174 {offsets = [0, 24], sizes = [8, 8], strides = [1, 1]} : vector<8x32xf32> to vector<8x8xf32>
    %cst_93 = arith.constant dense<0.000000e+00> : vector<8x8xf32>
    %231 = tpu.matmul %229, %230, %cst_93 {dimension_numbers = #tpu.dot_dimension_numbers<[1], [1], [0], [0], [0, 0, 1, 0], [], []>} : vector<8x8xf32>, vector<8x8xf32>, vector<8x8xf32> -> vector<8x8xf32>
    %232 = vector.broadcast %7 : vector<1x8xf32> to vector<8x8xf32>
    %233 = arith.addf %231, %232 : vector<8x8xf32>
    %cst_94 = arith.constant dense<0xFF800000> : vector<8xf32>
    %234 = vector.multi_reduction <maximumf>, %233, %cst_94 [1] : vector<8x8xf32> to vector<8xf32>
    %235 = vector.shape_cast %234 : vector<8xf32> to vector<8x1xf32>
    %236 = vector.broadcast %235 : vector<8x1xf32> to vector<8x8xf32>
    %237 = arith.subf %233, %236 : vector<8x8xf32>
    %238 = math.exp %237 : vector<8x8xf32>
    %cst_95 = arith.constant dense<0.000000e+00> : vector<8xf32>
    %239 = vector.multi_reduction <add>, %238, %cst_95 [1] : vector<8x8xf32> to vector<8xf32>
    %240 = vector.shape_cast %239 : vector<8xf32> to vector<8x1xf32>
    %241 = tpu.reciprocal %240 {approx = true} : vector<8x1xf32> -> vector<8x1xf32>
    %242 = vector.broadcast %241 : vector<8x1xf32> to vector<8x8xf32>
    %243 = arith.mulf %238, %242 : vector<8x8xf32>
    %244 = vector.extract_strided_slice %175 {offsets = [0, 24], sizes = [8, 8], strides = [1, 1]} : vector<8x32xf32> to vector<8x8xf32>
    %cst_96 = arith.constant dense<0.000000e+00> : vector<8x8xf32>
    %245 = tpu.matmul %243, %244, %cst_96 {dimension_numbers = #tpu.dot_dimension_numbers<[1], [0], [0], [1], [0, 0, 1, 1], [], []>} : vector<8x8xf32>, vector<8x8xf32>, vector<8x8xf32> -> vector<8x8xf32>
    %246 = tpu.concatenate %194, %211, %228, %245 in 1 : vector<8x8xf32>, vector<8x8xf32>, vector<8x8xf32>, vector<8x8xf32> -> vector<8x32xf32>
    %c1_97 = arith.constant 1 : index
    %c0_98 = arith.constant 0 : index
    %c0_99 = arith.constant 0 : index
    %247 = vector.load %arg5[%c1_97, %c0_98, %c0_99] : memref<2x32x32xf32, #tpu.memory_space<vmem>>, vector<1x32x32xf32>
    %248 = vector.shape_cast %247 : vector<1x32x32xf32> to vector<32x32xf32>
    %cst_100 = arith.constant dense<0.000000e+00> : vector<8x32xf32>
    %249 = tpu.matmul %246, %248, %cst_100 {dimension_numbers = #tpu.dot_dimension_numbers<[1], [0], [0], [1], [0, 0, 1, 1], [], []>} : vector<8x32xf32>, vector<32x32xf32>, vector<8x32xf32> -> vector<8x32xf32>
    %c1_101 = arith.constant 1 : index
    %c0_102 = arith.constant 0 : index
    %c0_103 = arith.constant 0 : index
    %250 = vector.load %arg6[%c1_101, %c0_102, %c0_103] : memref<2x1x32xf32, #tpu.memory_space<vmem>>, vector<1x1x32xf32>
    %251 = vector.shape_cast %250 : vector<1x1x32xf32> to vector<1x32xf32>
    %252 = vector.broadcast %251 : vector<1x32xf32> to vector<8x32xf32>
    %253 = arith.addf %249, %252 : vector<8x32xf32>
    %254 = arith.addf %165, %253 : vector<8x32xf32>
    %c1_104 = arith.constant 1 : index
    %c0_105 = arith.constant 0 : index
    %c0_106 = arith.constant 0 : index
    %255 = vector.load %arg7[%c1_104, %c0_105, %c0_106] : memref<2x1x32xf32, #tpu.memory_space<vmem>>, vector<1x1x32xf32>
    %256 = vector.shape_cast %255 : vector<1x1x32xf32> to vector<1x32xf32>
    %c1_107 = arith.constant 1 : index
    %c0_108 = arith.constant 0 : index
    %c0_109 = arith.constant 0 : index
    %257 = vector.load %arg8[%c1_107, %c0_108, %c0_109] : memref<2x1x32xf32, #tpu.memory_space<vmem>>, vector<1x1x32xf32>
    %258 = vector.shape_cast %257 : vector<1x1x32xf32> to vector<1x32xf32>
    %cst_110 = arith.constant dense<0.000000e+00> : vector<8xf32>
    %259 = vector.multi_reduction <add>, %254, %cst_110 [1] : vector<8x32xf32> to vector<8xf32>
    %260 = vector.shape_cast %259 : vector<8xf32> to vector<8x1xf32>
    %cst_111 = arith.constant 3.200000e+01 : f32
    %261 = vector.broadcast %cst_111 : f32 to vector<8x1xf32>
    %262 = arith.divf %260, %261 : vector<8x1xf32>
    %263 = vector.broadcast %262 : vector<8x1xf32> to vector<8x32xf32>
    %264 = arith.subf %254, %263 : vector<8x32xf32>
    %265 = arith.mulf %264, %264 : vector<8x32xf32>
    %cst_112 = arith.constant dense<0.000000e+00> : vector<8xf32>
    %266 = vector.multi_reduction <add>, %265, %cst_112 [1] : vector<8x32xf32> to vector<8xf32>
    %267 = vector.shape_cast %266 : vector<8xf32> to vector<8x1xf32>
    %cst_113 = arith.constant 3.200000e+01 : f32
    %268 = vector.broadcast %cst_113 : f32 to vector<8x1xf32>
    %269 = arith.divf %267, %268 : vector<8x1xf32>
    %270 = vector.broadcast %262 : vector<8x1xf32> to vector<8x32xf32>
    %271 = arith.subf %254, %270 : vector<8x32xf32>
    %cst_114 = arith.constant 9.99999974E-6 : f32
    %272 = vector.broadcast %cst_114 : f32 to vector<8x1xf32>
    %273 = arith.addf %269, %272 : vector<8x1xf32>
    %274 = math.rsqrt %273 : vector<8x1xf32>
    %275 = vector.broadcast %274 : vector<8x1xf32> to vector<8x32xf32>
    %276 = arith.mulf %271, %275 : vector<8x32xf32>
    %277 = vector.broadcast %256 : vector<1x32xf32> to vector<8x32xf32>
    %278 = arith.mulf %276, %277 : vector<8x32xf32>
    %279 = vector.broadcast %258 : vector<1x32xf32> to vector<8x32xf32>
    %280 = arith.addf %278, %279 : vector<8x32xf32>
    %c1_115 = arith.constant 1 : index
    %c0_116 = arith.constant 0 : index
    %c0_117 = arith.constant 0 : index
    %281 = vector.load %arg9[%c1_115, %c0_116, %c0_117] : memref<2x32x128xf32, #tpu.memory_space<vmem>>, vector<1x32x128xf32>
    %282 = vector.shape_cast %281 : vector<1x32x128xf32> to vector<32x128xf32>
    %cst_118 = arith.constant dense<0.000000e+00> : vector<8x128xf32>
    %283 = tpu.matmul %280, %282, %cst_118 {dimension_numbers = #tpu.dot_dimension_numbers<[1], [0], [0], [1], [0, 0, 1, 1], [], []>} : vector<8x32xf32>, vector<32x128xf32>, vector<8x128xf32> -> vector<8x128xf32>
    %c1_119 = arith.constant 1 : index
    %c0_120 = arith.constant 0 : index
    %c0_121 = arith.constant 0 : index
    %284 = vector.load %arg10[%c1_119, %c0_120, %c0_121] : memref<2x1x128xf32, #tpu.memory_space<vmem>>, vector<1x1x128xf32>
    %285 = vector.shape_cast %284 : vector<1x1x128xf32> to vector<1x128xf32>
    %286 = vector.broadcast %285 : vector<1x128xf32> to vector<8x128xf32>
    %287 = arith.addf %283, %286 : vector<8x128xf32>
    %cst_122 = arith.constant 0.000000e+00 : f32
    %288 = vector.broadcast %cst_122 : f32 to vector<8x128xf32>
    %289 = arith.maximumf %287, %288 : vector<8x128xf32>
    %c1_123 = arith.constant 1 : index
    %c0_124 = arith.constant 0 : index
    %c0_125 = arith.constant 0 : index
    %290 = vector.load %arg11[%c1_123, %c0_124, %c0_125] : memref<2x128x32xf32, #tpu.memory_space<vmem>>, vector<1x128x32xf32>
    %291 = vector.shape_cast %290 : vector<1x128x32xf32> to vector<128x32xf32>
    %cst_126 = arith.constant dense<0.000000e+00> : vector<8x32xf32>
    %292 = tpu.matmul %289, %291, %cst_126 {dimension_numbers = #tpu.dot_dimension_numbers<[1], [0], [0], [1], [0, 0, 1, 1], [], []>} : vector<8x128xf32>, vector<128x32xf32>, vector<8x32xf32> -> vector<8x32xf32>
    %c1_127 = arith.constant 1 : index
    %c0_128 = arith.constant 0 : index
    %c0_129 = arith.constant 0 : index
    %293 = vector.load %arg12[%c1_127, %c0_128, %c0_129] : memref<2x1x32xf32, #tpu.memory_space<vmem>>, vector<1x1x32xf32>
    %294 = vector.shape_cast %293 : vector<1x1x32xf32> to vector<1x32xf32>
    %295 = vector.broadcast %294 : vector<1x32xf32> to vector<8x32xf32>
    %296 = arith.addf %292, %295 : vector<8x32xf32>
    %297 = arith.addf %280, %296 : vector<8x32xf32>
    %c1_130 = arith.constant 1 : index
    %c0_131 = arith.constant 0 : index
    %c0_132 = arith.constant 0 : index
    %298 = vector.load %arg13[%c1_130, %c0_131, %c0_132] : memref<2x1x32xf32, #tpu.memory_space<vmem>>, vector<1x1x32xf32>
    %299 = vector.shape_cast %298 : vector<1x1x32xf32> to vector<1x32xf32>
    %c1_133 = arith.constant 1 : index
    %c0_134 = arith.constant 0 : index
    %c0_135 = arith.constant 0 : index
    %300 = vector.load %arg14[%c1_133, %c0_134, %c0_135] : memref<2x1x32xf32, #tpu.memory_space<vmem>>, vector<1x1x32xf32>
    %301 = vector.shape_cast %300 : vector<1x1x32xf32> to vector<1x32xf32>
    %cst_136 = arith.constant dense<0.000000e+00> : vector<8xf32>
    %302 = vector.multi_reduction <add>, %297, %cst_136 [1] : vector<8x32xf32> to vector<8xf32>
    %303 = vector.shape_cast %302 : vector<8xf32> to vector<8x1xf32>
    %cst_137 = arith.constant 3.200000e+01 : f32
    %304 = vector.broadcast %cst_137 : f32 to vector<8x1xf32>
    %305 = arith.divf %303, %304 : vector<8x1xf32>
    %306 = vector.broadcast %305 : vector<8x1xf32> to vector<8x32xf32>
    %307 = arith.subf %297, %306 : vector<8x32xf32>
    %308 = arith.mulf %307, %307 : vector<8x32xf32>
    %cst_138 = arith.constant dense<0.000000e+00> : vector<8xf32>
    %309 = vector.multi_reduction <add>, %308, %cst_138 [1] : vector<8x32xf32> to vector<8xf32>
    %310 = vector.shape_cast %309 : vector<8xf32> to vector<8x1xf32>
    %cst_139 = arith.constant 3.200000e+01 : f32
    %311 = vector.broadcast %cst_139 : f32 to vector<8x1xf32>
    %312 = arith.divf %310, %311 : vector<8x1xf32>
    %313 = vector.broadcast %305 : vector<8x1xf32> to vector<8x32xf32>
    %314 = arith.subf %297, %313 : vector<8x32xf32>
    %cst_140 = arith.constant 9.99999974E-6 : f32
    %315 = vector.broadcast %cst_140 : f32 to vector<8x1xf32>
    %316 = arith.addf %312, %315 : vector<8x1xf32>
    %317 = math.rsqrt %316 : vector<8x1xf32>
    %318 = vector.broadcast %317 : vector<8x1xf32> to vector<8x32xf32>
    %319 = arith.mulf %314, %318 : vector<8x32xf32>
    %320 = vector.broadcast %299 : vector<1x32xf32> to vector<8x32xf32>
    %321 = arith.mulf %319, %320 : vector<8x32xf32>
    %322 = vector.broadcast %301 : vector<1x32xf32> to vector<8x32xf32>
    %323 = arith.addf %321, %322 : vector<8x32xf32>
    %c0_141 = arith.constant 0 : index
    %c0_142 = arith.constant 0 : index
    %324 = vector.load %arg15[%c0_141, %c0_142] : memref<4x32xf32, #tpu.memory_space<vmem>>, vector<4x32xf32>
    %c0_143 = arith.constant 0 : index
    %c0_144 = arith.constant 0 : index
    %325 = vector.load %arg16[%c0_143, %c0_144] : memref<32x32xf32, #tpu.memory_space<vmem>>, vector<32x32xf32>
    %cst_145 = arith.constant dense<0.000000e+00> : vector<4x32xf32>
    %326 = tpu.matmul %324, %325, %cst_145 {dimension_numbers = #tpu.dot_dimension_numbers<[1], [0], [0], [1], [0, 0, 1, 1], [], []>} : vector<4x32xf32>, vector<32x32xf32>, vector<4x32xf32> -> vector<4x32xf32>
    %c0_146 = arith.constant 0 : index
    %c0_147 = arith.constant 0 : index
    %327 = vector.load %arg17[%c0_146, %c0_147] : memref<1x32xf32, #tpu.memory_space<vmem>>, vector<1x32xf32>
    %328 = vector.broadcast %327 : vector<1x32xf32> to vector<4x32xf32>
    %329 = arith.addf %326, %328 : vector<4x32xf32>
    %c0_148 = arith.constant 0 : index
    %c0_149 = arith.constant 0 : index
    %330 = vector.load %arg18[%c0_148, %c0_149] : memref<32x64xf32, #tpu.memory_space<vmem>>, vector<32x64xf32>
    %cst_150 = arith.constant dense<0.000000e+00> : vector<8x64xf32>
    %331 = tpu.matmul %323, %330, %cst_150 {dimension_numbers = #tpu.dot_dimension_numbers<[1], [0], [0], [1], [0, 0, 1, 1], [], []>} : vector<8x32xf32>, vector<32x64xf32>, vector<8x64xf32> -> vector<8x64xf32>
    %c0_151 = arith.constant 0 : index
    %c0_152 = arith.constant 0 : index
    %332 = vector.load %arg19[%c0_151, %c0_152] : memref<1x64xf32, #tpu.memory_space<vmem>>, vector<1x64xf32>
    %333 = vector.broadcast %332 : vector<1x64xf32> to vector<8x64xf32>
    %334 = arith.addf %331, %333 : vector<8x64xf32>
    %335 = vector.extract_strided_slice %334 {offsets = [0, 0], sizes = [8, 32], strides = [1, 1]} : vector<8x64xf32> to vector<8x32xf32>
    %336 = vector.extract_strided_slice %334 {offsets = [0, 32], sizes = [8, 32], strides = [1, 1]} : vector<8x64xf32> to vector<8x32xf32>
    %cst_153 = arith.constant 0.353553385 : f32
    %337 = vector.broadcast %cst_153 : f32 to vector<4x32xf32>
    %338 = arith.mulf %329, %337 : vector<4x32xf32>
    %339 = vector.extract_strided_slice %338 {offsets = [0, 0], sizes = [4, 8], strides = [1, 1]} : vector<4x32xf32> to vector<4x8xf32>
    %340 = vector.extract_strided_slice %335 {offsets = [0, 0], sizes = [8, 8], strides = [1, 1]} : vector<8x32xf32> to vector<8x8xf32>
    %cst_154 = arith.constant dense<0.000000e+00> : vector<4x8xf32>
    %341 = tpu.matmul %339, %340, %cst_154 {dimension_numbers = #tpu.dot_dimension_numbers<[1], [1], [0], [0], [0, 0, 1, 0], [], []>} : vector<4x8xf32>, vector<8x8xf32>, vector<4x8xf32> -> vector<4x8xf32>
    %342 = vector.broadcast %7 : vector<1x8xf32> to vector<4x8xf32>
    %343 = arith.addf %341, %342 : vector<4x8xf32>
    %cst_155 = arith.constant dense<0xFF800000> : vector<4xf32>
    %344 = vector.multi_reduction <maximumf>, %343, %cst_155 [1] : vector<4x8xf32> to vector<4xf32>
    %345 = vector.shape_cast %344 : vector<4xf32> to vector<4x1xf32>
    %346 = vector.broadcast %345 : vector<4x1xf32> to vector<4x8xf32>
    %347 = arith.subf %343, %346 : vector<4x8xf32>
    %348 = math.exp %347 : vector<4x8xf32>
    %cst_156 = arith.constant dense<0.000000e+00> : vector<4xf32>
    %349 = vector.multi_reduction <add>, %348, %cst_156 [1] : vector<4x8xf32> to vector<4xf32>
    %350 = vector.shape_cast %349 : vector<4xf32> to vector<4x1xf32>
    %351 = tpu.reciprocal %350 {approx = true} : vector<4x1xf32> -> vector<4x1xf32>
    %352 = vector.broadcast %351 : vector<4x1xf32> to vector<4x8xf32>
    %353 = arith.mulf %348, %352 : vector<4x8xf32>
    %354 = vector.extract_strided_slice %336 {offsets = [0, 0], sizes = [8, 8], strides = [1, 1]} : vector<8x32xf32> to vector<8x8xf32>
    %cst_157 = arith.constant dense<0.000000e+00> : vector<4x8xf32>
    %355 = tpu.matmul %353, %354, %cst_157 {dimension_numbers = #tpu.dot_dimension_numbers<[1], [0], [0], [1], [0, 0, 1, 1], [], []>} : vector<4x8xf32>, vector<8x8xf32>, vector<4x8xf32> -> vector<4x8xf32>
    %356 = vector.extract_strided_slice %338 {offsets = [0, 8], sizes = [4, 8], strides = [1, 1]} : vector<4x32xf32> to vector<4x8xf32>
    %357 = vector.extract_strided_slice %335 {offsets = [0, 8], sizes = [8, 8], strides = [1, 1]} : vector<8x32xf32> to vector<8x8xf32>
    %cst_158 = arith.constant dense<0.000000e+00> : vector<4x8xf32>
    %358 = tpu.matmul %356, %357, %cst_158 {dimension_numbers = #tpu.dot_dimension_numbers<[1], [1], [0], [0], [0, 0, 1, 0], [], []>} : vector<4x8xf32>, vector<8x8xf32>, vector<4x8xf32> -> vector<4x8xf32>
    %359 = vector.broadcast %7 : vector<1x8xf32> to vector<4x8xf32>
    %360 = arith.addf %358, %359 : vector<4x8xf32>
    %cst_159 = arith.constant dense<0xFF800000> : vector<4xf32>
    %361 = vector.multi_reduction <maximumf>, %360, %cst_159 [1] : vector<4x8xf32> to vector<4xf32>
    %362 = vector.shape_cast %361 : vector<4xf32> to vector<4x1xf32>
    %363 = vector.broadcast %362 : vector<4x1xf32> to vector<4x8xf32>
    %364 = arith.subf %360, %363 : vector<4x8xf32>
    %365 = math.exp %364 : vector<4x8xf32>
    %cst_160 = arith.constant dense<0.000000e+00> : vector<4xf32>
    %366 = vector.multi_reduction <add>, %365, %cst_160 [1] : vector<4x8xf32> to vector<4xf32>
    %367 = vector.shape_cast %366 : vector<4xf32> to vector<4x1xf32>
    %368 = tpu.reciprocal %367 {approx = true} : vector<4x1xf32> -> vector<4x1xf32>
    %369 = vector.broadcast %368 : vector<4x1xf32> to vector<4x8xf32>
    %370 = arith.mulf %365, %369 : vector<4x8xf32>
    %371 = vector.extract_strided_slice %336 {offsets = [0, 8], sizes = [8, 8], strides = [1, 1]} : vector<8x32xf32> to vector<8x8xf32>
    %cst_161 = arith.constant dense<0.000000e+00> : vector<4x8xf32>
    %372 = tpu.matmul %370, %371, %cst_161 {dimension_numbers = #tpu.dot_dimension_numbers<[1], [0], [0], [1], [0, 0, 1, 1], [], []>} : vector<4x8xf32>, vector<8x8xf32>, vector<4x8xf32> -> vector<4x8xf32>
    %373 = vector.extract_strided_slice %338 {offsets = [0, 16], sizes = [4, 8], strides = [1, 1]} : vector<4x32xf32> to vector<4x8xf32>
    %374 = vector.extract_strided_slice %335 {offsets = [0, 16], sizes = [8, 8], strides = [1, 1]} : vector<8x32xf32> to vector<8x8xf32>
    %cst_162 = arith.constant dense<0.000000e+00> : vector<4x8xf32>
    %375 = tpu.matmul %373, %374, %cst_162 {dimension_numbers = #tpu.dot_dimension_numbers<[1], [1], [0], [0], [0, 0, 1, 0], [], []>} : vector<4x8xf32>, vector<8x8xf32>, vector<4x8xf32> -> vector<4x8xf32>
    %376 = vector.broadcast %7 : vector<1x8xf32> to vector<4x8xf32>
    %377 = arith.addf %375, %376 : vector<4x8xf32>
    %cst_163 = arith.constant dense<0xFF800000> : vector<4xf32>
    %378 = vector.multi_reduction <maximumf>, %377, %cst_163 [1] : vector<4x8xf32> to vector<4xf32>
    %379 = vector.shape_cast %378 : vector<4xf32> to vector<4x1xf32>
    %380 = vector.broadcast %379 : vector<4x1xf32> to vector<4x8xf32>
    %381 = arith.subf %377, %380 : vector<4x8xf32>
    %382 = math.exp %381 : vector<4x8xf32>
    %cst_164 = arith.constant dense<0.000000e+00> : vector<4xf32>
    %383 = vector.multi_reduction <add>, %382, %cst_164 [1] : vector<4x8xf32> to vector<4xf32>
    %384 = vector.shape_cast %383 : vector<4xf32> to vector<4x1xf32>
    %385 = tpu.reciprocal %384 {approx = true} : vector<4x1xf32> -> vector<4x1xf32>
    %386 = vector.broadcast %385 : vector<4x1xf32> to vector<4x8xf32>
    %387 = arith.mulf %382, %386 : vector<4x8xf32>
    %388 = vector.extract_strided_slice %336 {offsets = [0, 16], sizes = [8, 8], strides = [1, 1]} : vector<8x32xf32> to vector<8x8xf32>
    %cst_165 = arith.constant dense<0.000000e+00> : vector<4x8xf32>
    %389 = tpu.matmul %387, %388, %cst_165 {dimension_numbers = #tpu.dot_dimension_numbers<[1], [0], [0], [1], [0, 0, 1, 1], [], []>} : vector<4x8xf32>, vector<8x8xf32>, vector<4x8xf32> -> vector<4x8xf32>
    %390 = vector.extract_strided_slice %338 {offsets = [0, 24], sizes = [4, 8], strides = [1, 1]} : vector<4x32xf32> to vector<4x8xf32>
    %391 = vector.extract_strided_slice %335 {offsets = [0, 24], sizes = [8, 8], strides = [1, 1]} : vector<8x32xf32> to vector<8x8xf32>
    %cst_166 = arith.constant dense<0.000000e+00> : vector<4x8xf32>
    %392 = tpu.matmul %390, %391, %cst_166 {dimension_numbers = #tpu.dot_dimension_numbers<[1], [1], [0], [0], [0, 0, 1, 0], [], []>} : vector<4x8xf32>, vector<8x8xf32>, vector<4x8xf32> -> vector<4x8xf32>
    %393 = vector.broadcast %7 : vector<1x8xf32> to vector<4x8xf32>
    %394 = arith.addf %392, %393 : vector<4x8xf32>
    %cst_167 = arith.constant dense<0xFF800000> : vector<4xf32>
    %395 = vector.multi_reduction <maximumf>, %394, %cst_167 [1] : vector<4x8xf32> to vector<4xf32>
    %396 = vector.shape_cast %395 : vector<4xf32> to vector<4x1xf32>
    %397 = vector.broadcast %396 : vector<4x1xf32> to vector<4x8xf32>
    %398 = arith.subf %394, %397 : vector<4x8xf32>
    %399 = math.exp %398 : vector<4x8xf32>
    %cst_168 = arith.constant dense<0.000000e+00> : vector<4xf32>
    %400 = vector.multi_reduction <add>, %399, %cst_168 [1] : vector<4x8xf32> to vector<4xf32>
    %401 = vector.shape_cast %400 : vector<4xf32> to vector<4x1xf32>
    %402 = tpu.reciprocal %401 {approx = true} : vector<4x1xf32> -> vector<4x1xf32>
    %403 = vector.broadcast %402 : vector<4x1xf32> to vector<4x8xf32>
    %404 = arith.mulf %399, %403 : vector<4x8xf32>
    %405 = vector.extract_strided_slice %336 {offsets = [0, 24], sizes = [8, 8], strides = [1, 1]} : vector<8x32xf32> to vector<8x8xf32>
    %cst_169 = arith.constant dense<0.000000e+00> : vector<4x8xf32>
    %406 = tpu.matmul %404, %405, %cst_169 {dimension_numbers = #tpu.dot_dimension_numbers<[1], [0], [0], [1], [0, 0, 1, 1], [], []>} : vector<4x8xf32>, vector<8x8xf32>, vector<4x8xf32> -> vector<4x8xf32>
    %407 = tpu.concatenate %355, %372, %389, %406 in 1 : vector<4x8xf32>, vector<4x8xf32>, vector<4x8xf32>, vector<4x8xf32> -> vector<4x32xf32>
    %c0_170 = arith.constant 0 : index
    %c0_171 = arith.constant 0 : index
    %408 = vector.load %arg20[%c0_170, %c0_171] : memref<32x32xf32, #tpu.memory_space<vmem>>, vector<32x32xf32>
    %cst_172 = arith.constant dense<0.000000e+00> : vector<4x32xf32>
    %409 = tpu.matmul %407, %408, %cst_172 {dimension_numbers = #tpu.dot_dimension_numbers<[1], [0], [0], [1], [0, 0, 1, 1], [], []>} : vector<4x32xf32>, vector<32x32xf32>, vector<4x32xf32> -> vector<4x32xf32>
    %c0_173 = arith.constant 0 : index
    %c0_174 = arith.constant 0 : index
    %410 = vector.load %arg21[%c0_173, %c0_174] : memref<1x32xf32, #tpu.memory_space<vmem>>, vector<1x32xf32>
    %411 = vector.broadcast %410 : vector<1x32xf32> to vector<4x32xf32>
    %412 = arith.addf %409, %411 : vector<4x32xf32>
    %413 = arith.addf %324, %412 : vector<4x32xf32>
    %c0_175 = arith.constant 0 : index
    %c0_176 = arith.constant 0 : index
    %414 = vector.load %arg22[%c0_175, %c0_176] : memref<1x32xf32, #tpu.memory_space<vmem>>, vector<1x32xf32>
    %c0_177 = arith.constant 0 : index
    %c0_178 = arith.constant 0 : index
    %415 = vector.load %arg23[%c0_177, %c0_178] : memref<1x32xf32, #tpu.memory_space<vmem>>, vector<1x32xf32>
    %cst_179 = arith.constant dense<0.000000e+00> : vector<4xf32>
    %416 = vector.multi_reduction <add>, %413, %cst_179 [1] : vector<4x32xf32> to vector<4xf32>
    %417 = vector.shape_cast %416 : vector<4xf32> to vector<4x1xf32>
    %cst_180 = arith.constant 3.200000e+01 : f32
    %418 = vector.broadcast %cst_180 : f32 to vector<4x1xf32>
    %419 = arith.divf %417, %418 : vector<4x1xf32>
    %420 = vector.broadcast %419 : vector<4x1xf32> to vector<4x32xf32>
    %421 = arith.subf %413, %420 : vector<4x32xf32>
    %422 = arith.mulf %421, %421 : vector<4x32xf32>
    %cst_181 = arith.constant dense<0.000000e+00> : vector<4xf32>
    %423 = vector.multi_reduction <add>, %422, %cst_181 [1] : vector<4x32xf32> to vector<4xf32>
    %424 = vector.shape_cast %423 : vector<4xf32> to vector<4x1xf32>
    %cst_182 = arith.constant 3.200000e+01 : f32
    %425 = vector.broadcast %cst_182 : f32 to vector<4x1xf32>
    %426 = arith.divf %424, %425 : vector<4x1xf32>
    %427 = vector.broadcast %419 : vector<4x1xf32> to vector<4x32xf32>
    %428 = arith.subf %413, %427 : vector<4x32xf32>
    %cst_183 = arith.constant 9.99999974E-6 : f32
    %429 = vector.broadcast %cst_183 : f32 to vector<4x1xf32>
    %430 = arith.addf %426, %429 : vector<4x1xf32>
    %431 = math.rsqrt %430 : vector<4x1xf32>
    %432 = vector.broadcast %431 : vector<4x1xf32> to vector<4x32xf32>
    %433 = arith.mulf %428, %432 : vector<4x32xf32>
    %434 = vector.broadcast %414 : vector<1x32xf32> to vector<4x32xf32>
    %435 = arith.mulf %433, %434 : vector<4x32xf32>
    %436 = vector.broadcast %415 : vector<1x32xf32> to vector<4x32xf32>
    %437 = arith.addf %435, %436 : vector<4x32xf32>
    %c0_184 = arith.constant 0 : index
    %c0_185 = arith.constant 0 : index
    %438 = vector.load %arg24[%c0_184, %c0_185] : memref<4x32xf32, #tpu.memory_space<vmem>>, vector<4x32xf32>
    %cst_186 = arith.constant dense<0.000000e+00> : vector<4x4xf32>
    %439 = tpu.matmul %437, %438, %cst_186 {dimension_numbers = #tpu.dot_dimension_numbers<[1], [1], [0], [0], [0, 0, 1, 0], [], []>} : vector<4x32xf32>, vector<4x32xf32>, vector<4x4xf32> -> vector<4x4xf32>
    %440 = tpu.iota {dimensions = array<i32: 0>} : vector<4x4xi32>
    %441 = tpu.iota {dimensions = array<i32: 1>} : vector<4x4xi32>
    %442 = arith.cmpi eq, %440, %441 : vector<4x4xi32>
    %cst_187 = arith.constant 0.000000e+00 : f32
    %443 = vector.broadcast %cst_187 : f32 to vector<4x4xf32>
    %444 = arith.select %442, %439, %443 : vector<4x4xi1>, vector<4x4xf32>
    %cst_188 = arith.constant dense<0.000000e+00> : vector<4xf32>
    %445 = vector.multi_reduction <add>, %444, %cst_188 [0] : vector<4x4xf32> to vector<4xf32>
    %446 = vector.shape_cast %445 : vector<4xf32> to vector<1x4xf32>
    %c0_189 = arith.constant 0 : index
    %c0_190 = arith.constant 0 : index
    %447 = vector.load %arg25[%c0_189, %c0_190] : memref<1x4xf32, #tpu.memory_space<vmem>>, vector<1x4xf32>
    %448 = arith.addf %446, %447 : vector<1x4xf32>
    %c0_191 = arith.constant 0 : index
    %c0_192 = arith.constant 0 : index
    %c0_193 = arith.constant 0 : index
    %449 = vector.load %arg26[%c0_191, %c0_192, %c0_193] : memref<1x1x4xf32, #tpu.memory_space<vmem>>, vector<1x1x4xf32>
    %450 = vector.shape_cast %449 : vector<1x1x4xf32> to vector<1x4xf32>
    %451 = vector.shape_cast %448 : vector<1x4xf32> to vector<1x1x4xf32>
    tpu.vector_store %arg26[%c0_191, %c0_192, %c0_193], %451 {strides = array<i32>} : memref<1x1x4xf32, #tpu.memory_space<vmem>>, vector<1x1x4xf32>,
    return
  }
  func.func @transform_0(%arg0: i32) -> (i32, i32, i32) {
    %c0_i32 = arith.constant 0 : i32
    %c0_i32_0 = arith.constant 0 : i32
    %c0_i32_1 = arith.constant 0 : i32
    return %arg0, %c0_i32, %c0_i32_0 : i32, i32, i32
  }
  func.func @transform_1(%arg0: i32) -> (i32, i32, i32) {
    %c0_i32 = arith.constant 0 : i32
    %c0_i32_0 = arith.constant 0 : i32
    %c0_i32_1 = arith.constant 0 : i32
    return %arg0, %c0_i32, %c0_i32_0 : i32, i32, i32
  }
  func.func @transform_2(%arg0: i32) -> (i32, i32, i32) {
    %c0_i32 = arith.constant 0 : i32
    %c0_i32_0 = arith.constant 0 : i32
    %c0_i32_1 = arith.constant 0 : i32
    %c0_i32_2 = arith.constant 0 : i32
    return %c0_i32, %c0_i32_0, %c0_i32_1 : i32, i32, i32
  }
  func.func @transform_3(%arg0: i32) -> (i32, i32, i32) {
    %c0_i32 = arith.constant 0 : i32
    %c0_i32_0 = arith.constant 0 : i32
    %c0_i32_1 = arith.constant 0 : i32
    %c0_i32_2 = arith.constant 0 : i32
    return %c0_i32, %c0_i32_0, %c0_i32_1 : i32, i32, i32
  }
  func.func @transform_4(%arg0: i32) -> (i32, i32, i32) {
    %c0_i32 = arith.constant 0 : i32
    %c0_i32_0 = arith.constant 0 : i32
    %c0_i32_1 = arith.constant 0 : i32
    %c0_i32_2 = arith.constant 0 : i32
    return %c0_i32, %c0_i32_0, %c0_i32_1 : i32, i32, i32
  }
  func.func @transform_5(%arg0: i32) -> (i32, i32, i32) {
    %c0_i32 = arith.constant 0 : i32
    %c0_i32_0 = arith.constant 0 : i32
    %c0_i32_1 = arith.constant 0 : i32
    %c0_i32_2 = arith.constant 0 : i32
    return %c0_i32, %c0_i32_0, %c0_i32_1 : i32, i32, i32
  }
  func.func @transform_6(%arg0: i32) -> (i32, i32, i32) {
    %c0_i32 = arith.constant 0 : i32
    %c0_i32_0 = arith.constant 0 : i32
    %c0_i32_1 = arith.constant 0 : i32
    %c0_i32_2 = arith.constant 0 : i32
    return %c0_i32, %c0_i32_0, %c0_i32_1 : i32, i32, i32
  }
  func.func @transform_7(%arg0: i32) -> (i32, i32, i32) {
    %c0_i32 = arith.constant 0 : i32
    %c0_i32_0 = arith.constant 0 : i32
    %c0_i32_1 = arith.constant 0 : i32
    %c0_i32_2 = arith.constant 0 : i32
    return %c0_i32, %c0_i32_0, %c0_i32_1 : i32, i32, i32
  }
  func.func @transform_8(%arg0: i32) -> (i32, i32, i32) {
    %c0_i32 = arith.constant 0 : i32
    %c0_i32_0 = arith.constant 0 : i32
    %c0_i32_1 = arith.constant 0 : i32
    %c0_i32_2 = arith.constant 0 : i32
    return %c0_i32, %c0_i32_0, %c0_i32_1 : i32, i32, i32
  }
  func.func @transform_9(%arg0: i32) -> (i32, i32, i32) {
    %c0_i32 = arith.constant 0 : i32
    %c0_i32_0 = arith.constant 0 : i32
    %c0_i32_1 = arith.constant 0 : i32
    %c0_i32_2 = arith.constant 0 : i32
    return %c0_i32, %c0_i32_0, %c0_i32_1 : i32, i32, i32
  }
  func.func @transform_10(%arg0: i32) -> (i32, i32, i32) {
    %c0_i32 = arith.constant 0 : i32
    %c0_i32_0 = arith.constant 0 : i32
    %c0_i32_1 = arith.constant 0 : i32
    %c0_i32_2 = arith.constant 0 : i32
    return %c0_i32, %c0_i32_0, %c0_i32_1 : i32, i32, i32
  }
  func.func @transform_11(%arg0: i32) -> (i32, i32, i32) {
    %c0_i32 = arith.constant 0 : i32
    %c0_i32_0 = arith.constant 0 : i32
    %c0_i32_1 = arith.constant 0 : i32
    %c0_i32_2 = arith.constant 0 : i32
    return %c0_i32, %c0_i32_0, %c0_i32_1 : i32, i32, i32
  }
  func.func @transform_12(%arg0: i32) -> (i32, i32, i32) {
    %c0_i32 = arith.constant 0 : i32
    %c0_i32_0 = arith.constant 0 : i32
    %c0_i32_1 = arith.constant 0 : i32
    %c0_i32_2 = arith.constant 0 : i32
    return %c0_i32, %c0_i32_0, %c0_i32_1 : i32, i32, i32
  }
  func.func @transform_13(%arg0: i32) -> (i32, i32, i32) {
    %c0_i32 = arith.constant 0 : i32
    %c0_i32_0 = arith.constant 0 : i32
    %c0_i32_1 = arith.constant 0 : i32
    %c0_i32_2 = arith.constant 0 : i32
    return %c0_i32, %c0_i32_0, %c0_i32_1 : i32, i32, i32
  }
  func.func @transform_14(%arg0: i32) -> (i32, i32) {
    %c0_i32 = arith.constant 0 : i32
    %c0_i32_0 = arith.constant 0 : i32
    %c0_i32_1 = arith.constant 0 : i32
    return %c0_i32, %c0_i32_0 : i32, i32
  }
  func.func @transform_15(%arg0: i32) -> (i32, i32) {
    %c0_i32 = arith.constant 0 : i32
    %c0_i32_0 = arith.constant 0 : i32
    %c0_i32_1 = arith.constant 0 : i32
    return %c0_i32, %c0_i32_0 : i32, i32
  }
  func.func @transform_16(%arg0: i32) -> (i32, i32) {
    %c0_i32 = arith.constant 0 : i32
    %c0_i32_0 = arith.constant 0 : i32
    %c0_i32_1 = arith.constant 0 : i32
    return %c0_i32, %c0_i32_0 : i32, i32
  }
  func.func @transform_17(%arg0: i32) -> (i32, i32) {
    %c0_i32 = arith.constant 0 : i32
    %c0_i32_0 = arith.constant 0 : i32
    %c0_i32_1 = arith.constant 0 : i32
    return %c0_i32, %c0_i32_0 : i32, i32
  }
  func.func @transform_18(%arg0: i32) -> (i32, i32) {
    %c0_i32 = arith.constant 0 : i32
    %c0_i32_0 = arith.constant 0 : i32
    %c0_i32_1 = arith.constant 0 : i32
    return %c0_i32, %c0_i32_0 : i32, i32
  }
  func.func @transform_19(%arg0: i32) -> (i32, i32) {
    %c0_i32 = arith.constant 0 : i32
    %c0_i32_0 = arith.constant 0 : i32
    %c0_i32_1 = arith.constant 0 : i32
    return %c0_i32, %c0_i32_0 : i32, i32
  }
  func.func @transform_20(%arg0: i32) -> (i32, i32) {
    %c0_i32 = arith.constant 0 : i32
    %c0_i32_0 = arith.constant 0 : i32
    %c0_i32_1 = arith.constant 0 : i32
    return %c0_i32, %c0_i32_0 : i32, i32
  }
  func.func @transform_21(%arg0: i32) -> (i32, i32) {
    %c0_i32 = arith.constant 0 : i32
    %c0_i32_0 = arith.constant 0 : i32
    %c0_i32_1 = arith.constant 0 : i32
    return %c0_i32, %c0_i32_0 : i32, i32
  }
  func.func @transform_22(%arg0: i32) -> (i32, i32) {
    %c0_i32 = arith.constant 0 : i32
    %c0_i32_0 = arith.constant 0 : i32
    %c0_i32_1 = arith.constant 0 : i32
    return %c0_i32, %c0_i32_0 : i32, i32
  }
  func.func @transform_23(%arg0: i32) -> (i32, i32) {
    %c0_i32 = arith.constant 0 : i32
    %c0_i32_0 = arith.constant 0 : i32
    %c0_i32_1 = arith.constant 0 : i32
    return %c0_i32, %c0_i32_0 : i32, i32
  }
  func.func @transform_24(%arg0: i32) -> (i32, i32) {
    %c0_i32 = arith.constant 0 : i32
    %c0_i32_0 = arith.constant 0 : i32
    %c0_i32_1 = arith.constant 0 : i32
    return %c0_i32, %c0_i32_0 : i32, i32
  }
  func.func @transform_25(%arg0: i32) -> (i32, i32, i32) {
    %c0_i32 = arith.constant 0 : i32
    %c0_i32_0 = arith.constant 0 : i32
    %c0_i32_1 = arith.constant 0 : i32
    return %arg0, %c0_i32, %c0_i32_0 : i32, i32, i32
  }
}

</mosaic_0001>

<llo_original>
// kernel: attn_forward.1
$region0: #{attn_forward.1}
  #allocation0 [shape = 'u32[]', space=smem, size = 0x4, offset = 0x4, fixed_abs, tag = 'smem constant byte address 0x4 - core index']
  #allocation1 [shape = 'u32[144,128]{1,0:T(1,128)}', space=vmem, size = 0x12000, scoped, tag = 'internal scratch']
  %s0 = inlined_call_operand.vmem [shape: f32[2,8,32], index: 0, kind: input, shape index: {}]
  %s1 = inlined_call_operand.vmem [shape: f32[2,1,8], index: 1, kind: input, shape index: {}]
  %s2 = inlined_call_operand.vmem [shape: f32[2,32,96], index: 2, kind: input, shape index: {}]
  %s3 = inlined_call_operand.vmem [shape: f32[2,1,96], index: 3, kind: input, shape index: {}]
  %s4 = inlined_call_operand.vmem [shape: f32[2,32,32], index: 4, kind: input, shape index: {}]
  %s5 = inlined_call_operand.vmem [shape: f32[2,1,32], index: 5, kind: input, shape index: {}]
  %s6 = inlined_call_operand.vmem [shape: f32[2,1,32], index: 6, kind: input, shape index: {}]
  %s7 = inlined_call_operand.vmem [shape: f32[2,1,32], index: 7, kind: input, shape index: {}]
  %s8 = inlined_call_operand.vmem [shape: f32[2,32,128], index: 8, kind: input, shape index: {}]
  %s9 = inlined_call_operand.vmem [shape: f32[2,1,128], index: 9, kind: input, shape index: {}]
  %s10 = inlined_call_operand.vmem [shape: f32[2,128,32], index: 10, kind: input, shape index: {}]
  %s11 = inlined_call_operand.vmem [shape: f32[2,1,32], index: 11, kind: input, shape index: {}]
  %s12 = inlined_call_operand.vmem [shape: f32[2,1,32], index: 12, kind: input, shape index: {}]
  %s13 = inlined_call_operand.vmem [shape: f32[2,1,32], index: 13, kind: input, shape index: {}]
  %s14 = inlined_call_operand.vmem [shape: f32[4,32], index: 14, kind: input, shape index: {}]
  %s15 = inlined_call_operand.vmem [shape: f32[32,32], index: 15, kind: input, shape index: {}]
  %s16 = inlined_call_operand.vmem [shape: f32[1,32], index: 16, kind: input, shape index: {}]
  %s17 = inlined_call_operand.vmem [shape: f32[32,64], index: 17, kind: input, shape index: {}]
  %s18 = inlined_call_operand.hbm [shape: f32[1,64], index: 18, kind: input, shape index: {}]
  %s19 = inlined_call_operand.vmem [shape: f32[32,32], index: 19, kind: input, shape index: {}]
  %s20 = inlined_call_operand.hbm [shape: f32[1,32], index: 20, kind: input, shape index: {}]
  %s21 = inlined_call_operand.vmem [shape: f32[1,32], index: 21, kind: input, shape index: {}]
  %s22 = inlined_call_operand.vmem [shape: f32[1,32], index: 22, kind: input, shape index: {}]
  %s23 = inlined_call_operand.vmem [shape: f32[4,32], index: 23, kind: input, shape index: {}]
  %s24 = inlined_call_operand.vmem [shape: f32[1,4], index: 24, kind: input, shape index: {}]
  %s25 = inlined_call_operand.hbm [shape: f32[2,1,4], index: 25, kind: output, shape index: {}]
  %s26 = sld [smem:[#allocation0]]
  $region141: #{attn_forward.1} parent=0
    _
  %s28 = ssub.s32 1, %s26
  %s29 = scalar_select 0, %s28, %s26
  $region1: #{attn_forward.1} parent=0
    #allocation2 [shape = 'u8[512]{0}', space=vmem, size = 0x400, scoped, tag = 'input window, operand 18, single buffered']
    #allocation3 [shape = 's32[2]{0}', space=sflag, size = 0x8, scoped, tag = 'scoped memory for attn_forward.1']
    #allocation4 [shape = 's32[2]{0}', space=sflag, size = 0x8, scoped, tag = 'scoped memory for attn_forward.1']
    #allocation5 [shape = 'u8[512]{0}', space=vmem, size = 0x400, scoped, tag = 'input window, operand 20, single buffered']
    #allocation6 [shape = 's32[1]{0}', space=sflag, size = 0x4, scoped, tag = 'scoped memory for attn_forward.1']
    #allocation7 [shape = 'u8[1024]{0}', space=vmem, size = 0x400, scoped, tag = 'output window, operand 0']
    %30 = vsyncpa [#allocation3], 0
    %31 = vsyncpa [#allocation6], 0
    %32 = vsyncpa [#allocation4], 0
    %s33 = scalar_lea.sflag [#allocation4], 1
    %34 = vsyncpa %s33, 0
    loop: start=0, step=1, limit=4
    $region2: #{attn_forward.1} parent=1 // loop_pre_header
      _
    $region3: #{attn_forward.1} parent=1 // loop_header
      %s36 = sphi 0, %s40
      %p37 = scmp.ge.s32.totalorder %s36, 4
      %s46 = sphi 0, %s48
      %s49 = sphi 0, %s46
      %s50 = sphi 0, %s49
      %s66 = sphi 0, %s50
      %s72 = sphi 0, %s74
      %s75 = sphi 0, %s72
      %s76 = sphi 0, %s75
      %s92 = sphi 0, %s76
      %s96 = sphi 0, %s96
      %s98 = sphi 0, %s96
      %s99 = sphi 0, %s98
      %s113 = sphi 0, %s99
      %s117 = sphi 0, %s117
      %s119 = sphi 0, %s117
      %s120 = sphi 0, %s119
      %s134 = sphi 0, %s120
      %s138 = sphi 0, %s138
      %s140 = sphi 0, %s138
      %s141 = sphi 0, %s140
      %s155 = sphi 0, %s141
      %s159 = sphi 0, %s159
      %s161 = sphi 0, %s159
      %s162 = sphi 0, %s161
      %s176 = sphi 0, %s162
      %s180 = sphi 0, %s180
      %s182 = sphi 0, %s180
      %s183 = sphi 0, %s182
      %s197 = sphi 0, %s183
      %s201 = sphi 0, %s201
      %s203 = sphi 0, %s201
      %s204 = sphi 0, %s203
      %s218 = sphi 0, %s204
      %s222 = sphi 0, %s222
      %s224 = sphi 0, %s222
      %s225 = sphi 0, %s224
      %s239 = sphi 0, %s225
      %s243 = sphi 0, %s243
      %s245 = sphi 0, %s243
      %s246 = sphi 0, %s245
      %s260 = sphi 0, %s246
      %s264 = sphi 0, %s264
      %s266 = sphi 0, %s264
      %s267 = sphi 0, %s266
      %s281 = sphi 0, %s267
      %s285 = sphi 0, %s285
      %s287 = sphi 0, %s285
      %s288 = sphi 0, %s287
      %s302 = sphi 0, %s288
      %s306 = sphi 0, %s306
      %s308 = sphi 0, %s306
      %s309 = sphi 0, %s308
      %s323 = sphi 0, %s309
      %s327 = sphi 0, %s327
      %s329 = sphi 0, %s327
      %s330 = sphi 0, %s329
      %s344 = sphi 0, %s330
      %s348 = sphi 0, %s348
      %s350 = sphi 0, %s348
      %s351 = sphi 0, %s350
      %s365 = sphi 0, %s351
      %s369 = sphi 0, %s369
      %s371 = sphi 0, %s369
      %s372 = sphi 0, %s371
      %s386 = sphi 0, %s372
      %s390 = sphi 0, %s390
      %s392 = sphi 0, %s390
      %s393 = sphi 0, %s392
      %s407 = sphi 0, %s393
      %s411 = sphi 0, %s411
      %s413 = sphi 0, %s411
      %s414 = sphi 0, %s413
      %s428 = sphi 0, %s414
      %s432 = sphi 0, %s432
      %s434 = sphi 0, %s432
      %s435 = sphi 0, %s434
      %s449 = sphi 0, %s435
      %s453 = sphi 0, %s453
      %s455 = sphi 0, %s453
      %s456 = sphi 0, %s455
      %s470 = sphi 0, %s456
      %s474 = sphi 0, %s474
      %s476 = sphi 0, %s474
      %s477 = sphi 0, %s476
      %s491 = sphi 0, %s477
      %s495 = sphi 0, %s495
      %s497 = sphi 0, %s495
      %s498 = sphi 0, %s497
      %s512 = sphi 0, %s498
      %s516 = sphi 0, %s516
      %s518 = sphi 0, %s516
      %s519 = sphi 0, %s518
      %s533 = sphi 0, %s519
      %s537 = sphi 0, %s537
      %s539 = sphi 0, %s537
      %s540 = sphi 0, %s539
      %s554 = sphi 0, %s540
      %s558 = sphi 0, %s558
      %s560 = sphi 0, %s558
      %s561 = sphi 0, %s560
      %s575 = sphi 0, %s561
      %s581 = sphi 0, %s583
      %s584 = sphi 0, %s581
      %s585 = sphi 0, %s584
      %s601 = sphi 0, %s585
    $region4: #{attn_forward.1} parent=1 // loop_header_branch
      %39 = sbr.rel (%p37) target = $region8
    $region5: #{attn_forward.1} parent=1 // loop_body
      %s41 = ssub.s32 %s36, 1
      %s42 = ssub.s32 %s36, 2
      %s43 = sadd.s32 %s36, 1
      %s44 = ssub.s32 %s36, %s43
      %p45 = scmp.eq.s32.totalorder %s44, 0
      %s47 = sadd.s32 %s46, 1
      %s48 = scalar_select %p45, %s46, %s47
      %p51 = pneg %p45
      %p52 = scmp.eq.s32.totalorder %s36, 1
      %p53 = por %p51, %p52
      %p54 = scmp.ne.s32.totalorder %s46, %s49
      %p55 = scmp.eq.s32.totalorder %s36, 0
      %p56 = por %p54, %p55
      %p57 = scmp.ne.s32.totalorder %s46, %s49
      %p58 = scmp.eq.s32.totalorder %s41, 1
      %p59 = por %p57, %p58
      %p60 = scmp.ne.s32.totalorder %s49, %s50
      %p61 = scmp.eq.s32.totalorder %s41, 0
      %p62 = por %p60, %p61
      %p63 = scmp.ne.s32.totalorder %s49, %s50
      %p64 = scmp.eq.s32.totalorder %s42, 1
      %p65 = por %p63, %p64
      %p67 = scmp.ne.s32.totalorder %s50, %s66
      %p68 = scmp.eq.s32.totalorder %s42, 0
      %p69 = por %p67, %p68
      %s70 = ssub.s32 %s36, %s43
      %p71 = scmp.eq.s32.totalorder %s70, 0
      %s73 = sadd.s32 %s72, 1
      %s74 = scalar_select %p71, %s72, %s73
      %p77 = pneg %p71
      %p78 = scmp.eq.s32.totalorder %s36, 1
      %p79 = por %p77, %p78
      %p80 = scmp.ne.s32.totalorder %s72, %s75
      %p81 = scmp.eq.s32.totalorder %s36, 0
      %p82 = por %p80, %p81
      %p83 = scmp.ne.s32.totalorder %s72, %s75
      %p84 = scmp.eq.s32.totalorder %s41, 1
      %p85 = por %p83, %p84
      %p86 = scmp.ne.s32.totalorder %s75, %s76
      %p87 = scmp.eq.s32.totalorder %s41, 0
      %p88 = por %p86, %p87
      %p89 = scmp.ne.s32.totalorder %s75, %s76
      %p90 = scmp.eq.s32.totalorder %s42, 1
      %p91 = por %p89, %p90
      %p93 = scmp.ne.s32.totalorder %s76, %s92
      %p94 = scmp.eq.s32.totalorder %s42, 0
      %p95 = por %p93, %p94
      %s97 = sadd.s32 %s96, 1
      %p100 = scmp.eq.s32.totalorder %s36, 1
      %p101 = scmp.ne.s32.totalorder %s96, %s98
      %p102 = scmp.eq.s32.totalorder %s36, 0
      %p103 = por %p101, %p102
      %p104 = scmp.ne.s32.totalorder %s96, %s98
      %p105 = scmp.eq.s32.totalorder %s41, 1
      %p106 = por %p104, %p105
      %p107 = scmp.ne.s32.totalorder %s98, %s99
      %p108 = scmp.eq.s32.totalorder %s41, 0
      %p109 = por %p107, %p108
      %p110 = scmp.ne.s32.totalorder %s98, %s99
      %p111 = scmp.eq.s32.totalorder %s42, 1
      %p112 = por %p110, %p111
      %p114 = scmp.ne.s32.totalorder %s99, %s113
      %p115 = scmp.eq.s32.totalorder %s42, 0
      %p116 = por %p114, %p115
      %s118 = sadd.s32 %s117, 1
      %p121 = scmp.eq.s32.totalorder %s36, 1
      %p122 = scmp.ne.s32.totalorder %s117, %s119
      %p123 = scmp.eq.s32.totalorder %s36, 0
      %p124 = por %p122, %p123
      %p125 = scmp.ne.s32.totalorder %s117, %s119
      %p126 = scmp.eq.s32.totalorder %s41, 1
      %p127 = por %p125, %p126
      %p128 = scmp.ne.s32.totalorder %s119, %s120
      %p129 = scmp.eq.s32.totalorder %s41, 0
      %p130 = por %p128, %p129
      %p131 = scmp.ne.s32.totalorder %s119, %s120
      %p132 = scmp.eq.s32.totalorder %s42, 1
      %p133 = por %p131, %p132
      %p135 = scmp.ne.s32.totalorder %s120, %s134
      %p136 = scmp.eq.s32.totalorder %s42, 0
      %p137 = por %p135, %p136
      %s139 = sadd.s32 %s138, 1
      %p142 = scmp.eq.s32.totalorder %s36, 1
      %p143 = scmp.ne.s32.totalorder %s138, %s140
      %p144 = scmp.eq.s32.totalorder %s36, 0
      %p145 = por %p143, %p144
      %p146 = scmp.ne.s32.totalorder %s138, %s140
      %p147 = scmp.eq.s32.totalorder %s41, 1
      %p148 = por %p146, %p147
      %p149 = scmp.ne.s32.totalorder %s140, %s141
      %p150 = scmp.eq.s32.totalorder %s41, 0
      %p151 = por %p149, %p150
      %p152 = scmp.ne.s32.totalorder %s140, %s141
      %p153 = scmp.eq.s32.totalorder %s42, 1
      %p154 = por %p152, %p153
      %p156 = scmp.ne.s32.totalorder %s141, %s155
      %p157 = scmp.eq.s32.totalorder %s42, 0
      %p158 = por %p156, %p157
      %s160 = sadd.s32 %s159, 1
      %p163 = scmp.eq.s32.totalorder %s36, 1
      %p164 = scmp.ne.s32.totalorder %s159, %s161
      %p165 = scmp.eq.s32.totalorder %s36, 0
      %p166 = por %p164, %p165
      %p167 = scmp.ne.s32.totalorder %s159, %s161
      %p168 = scmp.eq.s32.totalorder %s41, 1
      %p169 = por %p167, %p168
      %p170 = scmp.ne.s32.totalorder %s161, %s162
      %p171 = scmp.eq.s32.totalorder %s41, 0
      %p172 = por %p170, %p171
      %p173 = scmp.ne.s32.totalorder %s161, %s162
      %p174 = scmp.eq.s32.totalorder %s42, 1
      %p175 = por %p173, %p174
      %p177 = scmp.ne.s32.totalorder %s162, %s176
      %p178 = scmp.eq.s32.totalorder %s42, 0
      %p179 = por %p177, %p178
      %s181 = sadd.s32 %s180, 1
      %p184 = scmp.eq.s32.totalorder %s36, 1
      %p185 = scmp.ne.s32.totalorder %s180, %s182
      %p186 = scmp.eq.s32.totalorder %s36, 0
      %p187 = por %p185, %p186
      %p188 = scmp.ne.s32.totalorder %s180, %s182
      %p189 = scmp.eq.s32.totalorder %s41, 1
      %p190 = por %p188, %p189
      %p191 = scmp.ne.s32.totalorder %s182, %s183
      %p192 = scmp.eq.s32.totalorder %s41, 0
      %p193 = por %p191, %p192
      %p194 = scmp.ne.s32.totalorder %s182, %s183
      %p195 = scmp.eq.s32.totalorder %s42, 1
      %p196 = por %p194, %p195
      %p198 = scmp.ne.s32.totalorder %s183, %s197
      %p199 = scmp.eq.s32.totalorder %s42, 0
      %p200 = por %p198, %p199
      %s202 = sadd.s32 %s201, 1
      %p205 = scmp.eq.s32.totalorder %s36, 1
      %p206 = scmp.ne.s32.totalorder %s201, %s203
      %p207 = scmp.eq.s32.totalorder %s36, 0
      %p208 = por %p206, %p207
      %p209 = scmp.ne.s32.totalorder %s201, %s203
      %p210 = scmp.eq.s32.totalorder %s41, 1
      %p211 = por %p209, %p210
      %p212 = scmp.ne.s32.totalorder %s203, %s204
      %p213 = scmp.eq.s32.totalorder %s41, 0
      %p214 = por %p212, %p213
      %p215 = scmp.ne.s32.totalorder %s203, %s204
      %p216 = scmp.eq.s32.totalorder %s42, 1
      %p217 = por %p215, %p216
      %p219 = scmp.ne.s32.totalorder %s204, %s218
      %p220 = scmp.eq.s32.totalorder %s42, 0
      %p221 = por %p219, %p220
      %s223 = sadd.s32 %s222, 1
      %p226 = scmp.eq.s32.totalorder %s36, 1
      %p227 = scmp.ne.s32.totalorder %s222, %s224
      %p228 = scmp.eq.s32.totalorder %s36, 0
      %p229 = por %p227, %p228
      %p230 = scmp.ne.s32.totalorder %s222, %s224
      %p231 = scmp.eq.s32.totalorder %s41, 1
      %p232 = por %p230, %p231
      %p233 = scmp.ne.s32.totalorder %s224, %s225
      %p234 = scmp.eq.s32.totalorder %s41, 0
      %p235 = por %p233, %p234
      %p236 = scmp.ne.s32.totalorder %s224, %s225
      %p237 = scmp.eq.s32.totalorder %s42, 1
      %p238 = por %p236, %p237
      %p240 = scmp.ne.s32.totalorder %s225, %s239
      %p241 = scmp.eq.s32.totalorder %s42, 0
      %p242 = por %p240, %p241
      %s244 = sadd.s32 %s243, 1
      %p247 = scmp.eq.s32.totalorder %s36, 1
      %p248 = scmp.ne.s32.totalorder %s243, %s245
      %p249 = scmp.eq.s32.totalorder %s36, 0
      %p250 = por %p248, %p249
      %p251 = scmp.ne.s32.totalorder %s243, %s245
      %p252 = scmp.eq.s32.totalorder %s41, 1
      %p253 = por %p251, %p252
      %p254 = scmp.ne.s32.totalorder %s245, %s246
      %p255 = scmp.eq.s32.totalorder %s41, 0
      %p256 = por %p254, %p255
      %p257 = scmp.ne.s32.totalorder %s245, %s246
      %p258 = scmp.eq.s32.totalorder %s42, 1
      %p259 = por %p257, %p258
      %p261 = scmp.ne.s32.totalorder %s246, %s260
      %p262 = scmp.eq.s32.totalorder %s42, 0
      %p263 = por %p261, %p262
      %s265 = sadd.s32 %s264, 1
      %p268 = scmp.eq.s32.totalorder %s36, 1
      %p269 = scmp.ne.s32.totalorder %s264, %s266
      %p270 = scmp.eq.s32.totalorder %s36, 0
      %p271 = por %p269, %p270
      %p272 = scmp.ne.s32.totalorder %s264, %s266
      %p273 = scmp.eq.s32.totalorder %s41, 1
      %p274 = por %p272, %p273
      %p275 = scmp.ne.s32.totalorder %s266, %s267
      %p276 = scmp.eq.s32.totalorder %s41, 0
      %p277 = por %p275, %p276
      %p278 = scmp.ne.s32.totalorder %s266, %s267
      %p279 = scmp.eq.s32.totalorder %s42, 1
      %p280 = por %p278, %p279
      %p282 = scmp.ne.s32.totalorder %s267, %s281
      %p283 = scmp.eq.s32.totalorder %s42, 0
      %p284 = por %p282, %p283
      %s286 = sadd.s32 %s285, 1
      %p289 = scmp.eq.s32.totalorder %s36, 1
      %p290 = scmp.ne.s32.totalorder %s285, %s287
      %p291 = scmp.eq.s32.totalorder %s36, 0
      %p292 = por %p290, %p291
      %p293 = scmp.ne.s32.totalorder %s285, %s287
      %p294 = scmp.eq.s32.totalorder %s41, 1
      %p295 = por %p293, %p294
      %p296 = scmp.ne.s32.totalorder %s287, %s288
      %p297 = scmp.eq.s32.totalorder %s41, 0
      %p298 = por %p296, %p297
      %p299 = scmp.ne.s32.totalorder %s287, %s288
      %p300 = scmp.eq.s32.totalorder %s42, 1
      %p301 = por %p299, %p300
      %p303 = scmp.ne.s32.totalorder %s288, %s302
      %p304 = scmp.eq.s32.totalorder %s42, 0
      %p305 = por %p303, %p304
      %s307 = sadd.s32 %s306, 1
      %p310 = scmp.eq.s32.totalorder %s36, 1
      %p311 = scmp.ne.s32.totalorder %s306, %s308
      %p312 = scmp.eq.s32.totalorder %s36, 0
      %p313 = por %p311, %p312
      %p314 = scmp.ne.s32.totalorder %s306, %s308
      %p315 = scmp.eq.s32.totalorder %s41, 1
      %p316 = por %p314, %p315
      %p317 = scmp.ne.s32.totalorder %s308, %s309
      %p318 = scmp.eq.s32.totalorder %s41, 0
      %p319 = por %p317, %p318
      %p320 = scmp.ne.s32.totalorder %s308, %s309
      %p321 = scmp.eq.s32.totalorder %s42, 1
      %p322 = por %p320, %p321
      %p324 = scmp.ne.s32.totalorder %s309, %s323
      %p325 = scmp.eq.s32.totalorder %s42, 0
      %p326 = por %p324, %p325
      %s328 = sadd.s32 %s327, 1
      %p331 = scmp.eq.s32.totalorder %s36, 1
      %p332 = scmp.ne.s32.totalorder %s327, %s329
      %p333 = scmp.eq.s32.totalorder %s36, 0
      %p334 = por %p332, %p333
      %p335 = scmp.ne.s32.totalorder %s327, %s329
      %p336 = scmp.eq.s32.totalorder %s41, 1
      %p337 = por %p335, %p336
      %p338 = scmp.ne.s32.totalorder %s329, %s330
      %p339 = scmp.eq.s32.totalorder %s41, 0
      %p340 = por %p338, %p339
      %p341 = scmp.ne.s32.totalorder %s329, %s330
      %p342 = scmp.eq.s32.totalorder %s42, 1
      %p343 = por %p341, %p342
      %p345 = scmp.ne.s32.totalorder %s330, %s344
      %p346 = scmp.eq.s32.totalorder %s42, 0
      %p347 = por %p345, %p346
      %s349 = sadd.s32 %s348, 1
      %p352 = scmp.eq.s32.totalorder %s36, 1
      %p353 = scmp.ne.s32.totalorder %s348, %s350
      %p354 = scmp.eq.s32.totalorder %s36, 0
      %p355 = por %p353, %p354
      %p356 = scmp.ne.s32.totalorder %s348, %s350
      %p357 = scmp.eq.s32.totalorder %s41, 1
      %p358 = por %p356, %p357
      %p359 = scmp.ne.s32.totalorder %s350, %s351
      %p360 = scmp.eq.s32.totalorder %s41, 0
      %p361 = por %p359, %p360
      %p362 = scmp.ne.s32.totalorder %s350, %s351
      %p363 = scmp.eq.s32.totalorder %s42, 1
      %p364 = por %p362, %p363
      %p366 = scmp.ne.s32.totalorder %s351, %s365
      %p367 = scmp.eq.s32.totalorder %s42, 0
      %p368 = por %p366, %p367
      %s370 = sadd.s32 %s369, 1
      %p373 = scmp.eq.s32.totalorder %s36, 1
      %p374 = scmp.ne.s32.totalorder %s369, %s371
      %p375 = scmp.eq.s32.totalorder %s36, 0
      %p376 = por %p374, %p375
      %p377 = scmp.ne.s32.totalorder %s369, %s371
      %p378 = scmp.eq.s32.totalorder %s41, 1
      %p379 = por %p377, %p378
      %p380 = scmp.ne.s32.totalorder %s371, %s372
      %p381 = scmp.eq.s32.totalorder %s41, 0
      %p382 = por %p380, %p381
      %p383 = scmp.ne.s32.totalorder %s371, %s372
      %p384 = scmp.eq.s32.totalorder %s42, 1
      %p385 = por %p383, %p384
      %p387 = scmp.ne.s32.totalorder %s372, %s386
      %p388 = scmp.eq.s32.totalorder %s42, 0
      %p389 = por %p387, %p388
      %s391 = sadd.s32 %s390, 1
      %p394 = scmp.eq.s32.totalorder %s36, 1
      %p395 = scmp.ne.s32.totalorder %s390, %s392
      %p396 = scmp.eq.s32.totalorder %s36, 0
      %p397 = por %p395, %p396
      %p398 = scmp.ne.s32.totalorder %s390, %s392
      %p399 = scmp.eq.s32.totalorder %s41, 1
      %p400 = por %p398, %p399
      %p401 = scmp.ne.s32.totalorder %s392, %s393
      %p402 = scmp.eq.s32.totalorder %s41, 0
      %p403 = por %p401, %p402
      %p404 = scmp.ne.s32.totalorder %s392, %s393
      %p405 = scmp.eq.s32.totalorder %s42, 1
      %p406 = por %p404, %p405
      %p408 = scmp.ne.s32.totalorder %s393, %s407
      %p409 = scmp.eq.s32.totalorder %s42, 0
      %p410 = por %p408, %p409
      %s412 = sadd.s32 %s411, 1
      %p415 = scmp.eq.s32.totalorder %s36, 1
      %p416 = scmp.ne.s32.totalorder %s411, %s413
      %p417 = scmp.eq.s32.totalorder %s36, 0
      %p418 = por %p416, %p417
      %p419 = scmp.ne.s32.totalorder %s411, %s413
      %p420 = scmp.eq.s32.totalorder %s41, 1
      %p421 = por %p419, %p420
      %p422 = scmp.ne.s32.totalorder %s413, %s414
      %p423 = scmp.eq.s32.totalorder %s41, 0
      %p424 = por %p422, %p423
      %p425 = scmp.ne.s32.totalorder %s413, %s414
      %p426 = scmp.eq.s32.totalorder %s42, 1
      %p427 = por %p425, %p426
      %p429 = scmp.ne.s32.totalorder %s414, %s428
      %p430 = scmp.eq.s32.totalorder %s42, 0
      %p431 = por %p429, %p430
      %s433 = sadd.s32 %s432, 1
      %p436 = scmp.eq.s32.totalorder %s36, 1
      %p437 = scmp.ne.s32.totalorder %s432, %s434
      %p438 = scmp.eq.s32.totalorder %s36, 0
      %p439 = por %p437, %p438
      %p440 = scmp.ne.s32.totalorder %s432, %s434
      %p441 = scmp.eq.s32.totalorder %s41, 1
      %p442 = por %p440, %p441
      %p443 = scmp.ne.s32.totalorder %s434, %s435
      %p444 = scmp.eq.s32.totalorder %s41, 0
      %p445 = por %p443, %p444
      %p446 = scmp.ne.s32.totalorder %s434, %s435
      %p447 = scmp.eq.s32.totalorder %s42, 1
      %p448 = por %p446, %p447
      %p450 = scmp.ne.s32.totalorder %s435, %s449
      %p451 = scmp.eq.s32.totalorder %s42, 0
      %p452 = por %p450, %p451
      %s454 = sadd.s32 %s453, 1
      %p457 = scmp.eq.s32.totalorder %s36, 1
      %p458 = scmp.ne.s32.totalorder %s453, %s455
      %p459 = scmp.eq.s32.totalorder %s36, 0
      %p460 = por %p458, %p459
      %p461 = scmp.ne.s32.totalorder %s453, %s455
      %p462 = scmp.eq.s32.totalorder %s41, 1
      %p463 = por %p461, %p462
      %p464 = scmp.ne.s32.totalorder %s455, %s456
      %p465 = scmp.eq.s32.totalorder %s41, 0
      %p466 = por %p464, %p465
      %p467 = scmp.ne.s32.totalorder %s455, %s456
      %p468 = scmp.eq.s32.totalorder %s42, 1
      %p469 = por %p467, %p468
      %p471 = scmp.ne.s32.totalorder %s456, %s470
      %p472 = scmp.eq.s32.totalorder %s42, 0
      %p473 = por %p471, %p472
      %s475 = sadd.s32 %s474, 1
      %p478 = scmp.eq.s32.totalorder %s36, 1
      %p479 = scmp.ne.s32.totalorder %s474, %s476
      %p480 = scmp.eq.s32.totalorder %s36, 0
      %p481 = por %p479, %p480
      %p482 = scmp.ne.s32.totalorder %s474, %s476
      %p483 = scmp.eq.s32.totalorder %s41, 1
      %p484 = por %p482, %p483
      %p485 = scmp.ne.s32.totalorder %s476, %s477
      %p486 = scmp.eq.s32.totalorder %s41, 0
      %p487 = por %p485, %p486
      %p488 = scmp.ne.s32.totalorder %s476, %s477
      %p489 = scmp.eq.s32.totalorder %s42, 1
      %p490 = por %p488, %p489
      %p492 = scmp.ne.s32.totalorder %s477, %s491
      %p493 = scmp.eq.s32.totalorder %s42, 0
      %p494 = por %p492, %p493
      %s496 = sadd.s32 %s495, 1
      %p499 = scmp.eq.s32.totalorder %s36, 1
      %p500 = scmp.ne.s32.totalorder %s495, %s497
      %p501 = scmp.eq.s32.totalorder %s36, 0
      %p502 = por %p500, %p501
      %p503 = scmp.ne.s32.totalorder %s495, %s497
      %p504 = scmp.eq.s32.totalorder %s41, 1
      %p505 = por %p503, %p504
      %p506 = scmp.ne.s32.totalorder %s497, %s498
      %p507 = scmp.eq.s32.totalorder %s41, 0
      %p508 = por %p506, %p507
      %p509 = scmp.ne.s32.totalorder %s497, %s498
      %p510 = scmp.eq.s32.totalorder %s42, 1
      %p511 = por %p509, %p510
      %p513 = scmp.ne.s32.totalorder %s498, %s512
      %p514 = scmp.eq.s32.totalorder %s42, 0
      %p515 = por %p513, %p514
      %s517 = sadd.s32 %s516, 1
      %p520 = scmp.eq.s32.totalorder %s36, 1
      %p521 = scmp.ne.s32.totalorder %s516, %s518
      %p522 = scmp.eq.s32.totalorder %s36, 0
      %p523 = por %p521, %p522
      %p524 = scmp.ne.s32.totalorder %s516, %s518
      %p525 = scmp.eq.s32.totalorder %s41, 1
      %p526 = por %p524, %p525
      %p527 = scmp.ne.s32.totalorder %s518, %s519
      %p528 = scmp.eq.s32.totalorder %s41, 0
      %p529 = por %p527, %p528
      %p530 = scmp.ne.s32.totalorder %s518, %s519
      %p531 = scmp.eq.s32.totalorder %s42, 1
      %p532 = por %p530, %p531
      %p534 = scmp.ne.s32.totalorder %s519, %s533
      %p535 = scmp.eq.s32.totalorder %s42, 0
      %p536 = por %p534, %p535
      %s538 = sadd.s32 %s537, 1
      %p541 = scmp.eq.s32.totalorder %s36, 1
      %p542 = scmp.ne.s32.totalorder %s537, %s539
      %p543 = scmp.eq.s32.totalorder %s36, 0
      %p544 = por %p542, %p543
      %p545 = scmp.ne.s32.totalorder %s537, %s539
      %p546 = scmp.eq.s32.totalorder %s41, 1
      %p547 = por %p545, %p546
      %p548 = scmp.ne.s32.totalorder %s539, %s540
      %p549 = scmp.eq.s32.totalorder %s41, 0
      %p550 = por %p548, %p549
      %p551 = scmp.ne.s32.totalorder %s539, %s540
      %p552 = scmp.eq.s32.totalorder %s42, 1
      %p553 = por %p551, %p552
      %p555 = scmp.ne.s32.totalorder %s540, %s554
      %p556 = scmp.eq.s32.totalorder %s42, 0
      %p557 = por %p555, %p556
      %s559 = sadd.s32 %s558, 1
      %p562 = scmp.eq.s32.totalorder %s36, 1
      %p563 = scmp.ne.s32.totalorder %s558, %s560
      %p564 = scmp.eq.s32.totalorder %s36, 0
      %p565 = por %p563, %p564
      %p566 = scmp.ne.s32.totalorder %s558, %s560
      %p567 = scmp.eq.s32.totalorder %s41, 1
      %p568 = por %p566, %p567
      %p569 = scmp.ne.s32.totalorder %s560, %s561
      %p570 = scmp.eq.s32.totalorder %s41, 0
      %p571 = por %p569, %p570
      %p572 = scmp.ne.s32.totalorder %s560, %s561
      %p573 = scmp.eq.s32.totalorder %s42, 1
      %p574 = por %p572, %p573
      %p576 = scmp.ne.s32.totalorder %s561, %s575
      %p577 = scmp.eq.s32.totalorder %s42, 0
      %p578 = por %p576, %p577
      %s579 = ssub.s32 %s36, %s43
      %p580 = scmp.eq.s32.totalorder %s579, 0
      %s582 = sadd.s32 %s581, 1
      %s583 = scalar_select %p580, %s581, %s582
      %p586 = pneg %p580
      %p587 = scmp.eq.s32.totalorder %s36, 1
      %p588 = por %p586, %p587
      %p589 = scmp.ne.s32.totalorder %s581, %s584
      %p590 = scmp.eq.s32.totalorder %s36, 0
      %p591 = por %p589, %p590
      %p592 = scmp.ne.s32.totalorder %s581, %s584
      %p593 = scmp.eq.s32.totalorder %s41, 1
      %p594 = por %p592, %p593
      %p595 = scmp.ne.s32.totalorder %s584, %s585
      %p596 = scmp.eq.s32.totalorder %s41, 0
      %p597 = por %p595, %p596
      %p598 = scmp.ne.s32.totalorder %s584, %s585
      %p599 = scmp.eq.s32.totalorder %s42, 1
      %p600 = por %p598, %p599
      %p602 = scmp.ne.s32.totalorder %s585, %s601
      %p603 = scmp.eq.s32.totalorder %s42, 0
      %p604 = por %p602, %p603
      %p605 = scmp.le.s32.totalorder 1, %s36
      %p606 = scmp.lt.s32.totalorder %s36, 3
      %p607 = pnand %p605, %p606
      %p608 = pneg %p607
      // Predicated region
      $region9: #{attn_forward.1} parent=5 // pred_check
        _
      $region10: #{attn_forward.1} parent=5 // pred_check_branch
        %610 = sbr.rel (%p607) target = $region12
      $region11: #{attn_forward.1} parent=5 // pred_region
        %s611 = ssub.s32 %s36, 1
        // Predicated region
        $region13: #{attn_forward.1} parent=11 // pred_check
          %p612 = pneg %p109
        $region14: #{attn_forward.1} parent=11 // pred_check_branch
          %614 = sbr.rel (%p612) target = $region16
        $region15: #{attn_forward.1} parent=11 // pred_region
          _
        $region16: #{attn_forward.1} parent=11 // pred_fallthru
          _
        // Predicated region
        $region17: #{attn_forward.1} parent=11 // pred_check
          %p615 = pneg %p130
        $region18: #{attn_forward.1} parent=11 // pred_check_branch
          %617 = sbr.rel (%p615) target = $region20
        $region19: #{attn_forward.1} parent=11 // pred_region
          _
        $region20: #{attn_forward.1} parent=11 // pred_fallthru
          _
        // Predicated region
        $region21: #{attn_forward.1} parent=11 // pred_check
          %p618 = pneg %p151
        $region22: #{attn_forward.1} parent=11 // pred_check_branch
          %620 = sbr.rel (%p618) target = $region24
        $region23: #{attn_forward.1} parent=11 // pred_region
          _
        $region24: #{attn_forward.1} parent=11 // pred_fallthru
          _
        // Predicated region
        $region25: #{attn_forward.1} parent=11 // pred_check
          %p621 = pneg %p172
        $region26: #{attn_forward.1} parent=11 // pred_check_branch
          %623 = sbr.rel (%p621) target = $region28
        $region27: #{attn_forward.1} parent=11 // pred_region
          _
        $region28: #{attn_forward.1} parent=11 // pred_fallthru
          _
        // Predicated region
        $region29: #{attn_forward.1} parent=11 // pred_check
          %p624 = pneg %p193
        $region30: #{attn_forward.1} parent=11 // pred_check_branch
          %626 = sbr.rel (%p624) target = $region32
        $region31: #{attn_forward.1} parent=11 // pred_region
          _
        $region32: #{attn_forward.1} parent=11 // pred_fallthru
          _
        // Predicated region
        $region33: #{attn_forward.1} parent=11 // pred_check
          %p627 = pneg %p214
        $region34: #{attn_forward.1} parent=11 // pred_check_branch
          %629 = sbr.rel (%p627) target = $region36
        $region35: #{attn_forward.1} parent=11 // pred_region
          _
        $region36: #{attn_forward.1} parent=11 // pred_fallthru
          _
        // Predicated region
        $region37: #{attn_forward.1} parent=11 // pred_check
          %p630 = pneg %p235
        $region38: #{attn_forward.1} parent=11 // pred_check_branch
          %632 = sbr.rel (%p630) target = $region40
        $region39: #{attn_forward.1} parent=11 // pred_region
          _
        $region40: #{attn_forward.1} parent=11 // pred_fallthru
          _
        // Predicated region
        $region41: #{attn_forward.1} parent=11 // pred_check
          %p633 = pneg %p256
        $region42: #{attn_forward.1} parent=11 // pred_check_branch
          %635 = sbr.rel (%p633) target = $region44
        $region43: #{attn_forward.1} parent=11 // pred_region
          _
        $region44: #{attn_forward.1} parent=11 // pred_fallthru
          _
        // Predicated region
        $region45: #{attn_forward.1} parent=11 // pred_check
          %p636 = pneg %p277
        $region46: #{attn_forward.1} parent=11 // pred_check_branch
          %638 = sbr.rel (%p636) target = $region48
        $region47: #{attn_forward.1} parent=11 // pred_region
          _
        $region48: #{attn_forward.1} parent=11 // pred_fallthru
          _
        // Predicated region
        $region49: #{attn_forward.1} parent=11 // pred_check
          %p639 = pneg %p298
        $region50: #{attn_forward.1} parent=11 // pred_check_branch
          %641 = sbr.rel (%p639) target = $region52
        $region51: #{attn_forward.1} parent=11 // pred_region
          _
        $region52: #{attn_forward.1} parent=11 // pred_fallthru
          _
        // Predicated region
        $region53: #{attn_forward.1} parent=11 // pred_check
          %p642 = pneg %p319
        $region54: #{attn_forward.1} parent=11 // pred_check_branch
          %644 = sbr.rel (%p642) target = $region56
        $region55: #{attn_forward.1} parent=11 // pred_region
          _
        $region56: #{attn_forward.1} parent=11 // pred_fallthru
          _
        // Predicated region
        $region57: #{attn_forward.1} parent=11 // pred_check
          %p645 = pneg %p340
        $region58: #{attn_forward.1} parent=11 // pred_check_branch
          %647 = sbr.rel (%p645) target = $region60
        $region59: #{attn_forward.1} parent=11 // pred_region
          _
        $region60: #{attn_forward.1} parent=11 // pred_fallthru
          _
        // Predicated region
        $region61: #{attn_forward.1} parent=11 // pred_check
          %p648 = pneg %p361
        $region62: #{attn_forward.1} parent=11 // pred_check_branch
          %650 = sbr.rel (%p648) target = $region64
        $region63: #{attn_forward.1} parent=11 // pred_region
          _
        $region64: #{attn_forward.1} parent=11 // pred_fallthru
          _
        // Predicated region
        $region65: #{attn_forward.1} parent=11 // pred_check
          %p651 = pneg %p382
        $region66: #{attn_forward.1} parent=11 // pred_check_branch
          %653 = sbr.rel (%p651) target = $region68
        $region67: #{attn_forward.1} parent=11 // pred_region
          _
        $region68: #{attn_forward.1} parent=11 // pred_fallthru
          _
        // Predicated region
        $region69: #{attn_forward.1} parent=11 // pred_check
          %p654 = pneg %p403
        $region70: #{attn_forward.1} parent=11 // pred_check_branch
          %656 = sbr.rel (%p654) target = $region72
        $region71: #{attn_forward.1} parent=11 // pred_region
          _
        $region72: #{attn_forward.1} parent=11 // pred_fallthru
          _
        // Predicated region
        $region73: #{attn_forward.1} parent=11 // pred_check
          %p657 = pneg %p424
        $region74: #{attn_forward.1} parent=11 // pred_check_branch
          %659 = sbr.rel (%p657) target = $region76
        $region75: #{attn_forward.1} parent=11 // pred_region
          _
        $region76: #{attn_forward.1} parent=11 // pred_fallthru
          _
        // Predicated region
        $region77: #{attn_forward.1} parent=11 // pred_check
          %p660 = pneg %p445
        $region78: #{attn_forward.1} parent=11 // pred_check_branch
          %662 = sbr.rel (%p660) target = $region80
        $region79: #{attn_forward.1} parent=11 // pred_region
          %s664 = ssub.s32 16, 16
          %665 = vsyncadd [#allocation3], %s664
          %s667 = sshll.u32 [#allocation2], 4
          %s668 = int_to_ptr.vmem [resolvable:$true] %s667
          %670 = dma.hbm_to_vmem [thread:$0]  %s18, 16, %s668, [#allocation3]
        $region80: #{attn_forward.1} parent=11 // pred_fallthru
          _
        // Predicated region
        $region81: #{attn_forward.1} parent=11 // pred_check
          %p671 = pneg %p466
        $region82: #{attn_forward.1} parent=11 // pred_check_branch
          %673 = sbr.rel (%p671) target = $region84
        $region83: #{attn_forward.1} parent=11 // pred_region
          _
        $region84: #{attn_forward.1} parent=11 // pred_fallthru
          _
        // Predicated region
        $region85: #{attn_forward.1} parent=11 // pred_check
          %p674 = pneg %p487
        $region86: #{attn_forward.1} parent=11 // pred_check_branch
          %676 = sbr.rel (%p674) target = $region88
        $region87: #{attn_forward.1} parent=11 // pred_region
          %s678 = ssub.s32 16, 16
          %679 = vsyncadd [#allocation6], %s678
          %s681 = sshll.u32 [#allocation5], 4
          %s682 = int_to_ptr.vmem [resolvable:$true] %s681
          %684 = dma.hbm_to_vmem [thread:$0]  %s20, 16, %s682, [#allocation6]
        $region88: #{attn_forward.1} parent=11 // pred_fallthru
          _
        // Predicated region
        $region89: #{attn_forward.1} parent=11 // pred_check
          %p685 = pneg %p508
        $region90: #{attn_forward.1} parent=11 // pred_check_branch
          %687 = sbr.rel (%p685) target = $region92
        $region91: #{attn_forward.1} parent=11 // pred_region
          _
        $region92: #{attn_forward.1} parent=11 // pred_fallthru
          _
        // Predicated region
        $region93: #{attn_forward.1} parent=11 // pred_check
          %p688 = pneg %p529
        $region94: #{attn_forward.1} parent=11 // pred_check_branch
          %690 = sbr.rel (%p688) target = $region96
        $region95: #{attn_forward.1} parent=11 // pred_region
          _
        $region96: #{attn_forward.1} parent=11 // pred_fallthru
          _
        // Predicated region
        $region97: #{attn_forward.1} parent=11 // pred_check
          %p691 = pneg %p550
        $region98: #{attn_forward.1} parent=11 // pred_check_branch
          %693 = sbr.rel (%p691) target = $region100
        $region99: #{attn_forward.1} parent=11 // pred_region
          _
        $region100: #{attn_forward.1} parent=11 // pred_fallthru
          _
        // Predicated region
        $region101: #{attn_forward.1} parent=11 // pred_check
          %p694 = pneg %p571
        $region102: #{attn_forward.1} parent=11 // pred_check_branch
          %696 = sbr.rel (%p694) target = $region104
        $region103: #{attn_forward.1} parent=11 // pred_region
          _
        $region104: #{attn_forward.1} parent=11 // pred_fallthru
          _
      $region12: #{attn_forward.1} parent=5 // pred_fallthru
        _
      %p697 = scmp.lt.s32.totalorder %s36, 2
      // Predicated region
      $region105: #{attn_forward.1} parent=5 // pred_check
        %p698 = pneg %p697
      $region106: #{attn_forward.1} parent=5 // pred_check_branch
        %700 = sbr.rel (%p698) target = $region108
      $region107: #{attn_forward.1} parent=5 // pred_region
        // Predicated region
        $region109: #{attn_forward.1} parent=107 // pred_check
          %p701 = pneg %p56
        $region110: #{attn_forward.1} parent=107 // pred_check_branch
          %703 = sbr.rel (%p701) target = $region112
        $region111: #{attn_forward.1} parent=107 // pred_region
          %p704 = scmp.lt.s32.totalorder %s36, 1
          %s705 = scalar_select %p704, %s36, 1
          %s706 = smul.addr %s705, 8
          %s707 = scalar_lea.vmem %s0, %s706
        $region112: #{attn_forward.1} parent=107 // pred_fallthru
          _
        // Predicated region
        $region113: #{attn_forward.1} parent=107 // pred_check
          %p708 = pneg %p82
        $region114: #{attn_forward.1} parent=107 // pred_check_branch
          %710 = sbr.rel (%p708) target = $region116
        $region115: #{attn_forward.1} parent=107 // pred_region
          %p711 = scmp.lt.s32.totalorder %s36, 1
          %s712 = scalar_select %p711, %s36, 1
          %s713 = scalar_lea.vmem %s1, %s712
        $region116: #{attn_forward.1} parent=107 // pred_fallthru
          _
      $region108: #{attn_forward.1} parent=5 // pred_fallthru
        _
      %p714 = scmp.le.s32.totalorder 1, %s36
      %p715 = scmp.lt.s32.totalorder %s36, 3
      %p716 = pnand %p714, %p715
      %p717 = pneg %p716
      // Predicated region
      $region117: #{attn_forward.1} parent=5 // pred_check
        _
      $region118: #{attn_forward.1} parent=5 // pred_check_branch
        %719 = sbr.rel (%p716) target = $region120
      $region119: #{attn_forward.1} parent=5 // pred_region
        %s720 = ssub.s32 %s36, 1
        // Predicated region
        $region121: #{attn_forward.1} parent=119 // pred_check
          %p721 = pneg %p445
        $region122: #{attn_forward.1} parent=119 // pred_check_branch
          %723 = sbr.rel (%p721) target = $region124
        $region123: #{attn_forward.1} parent=119 // pred_region
          %724 = dma.done [#allocation3], 16
        $region124: #{attn_forward.1} parent=119 // pred_fallthru
          _
        // Predicated region
        $region125: #{attn_forward.1} parent=119 // pred_check
          %p725 = pneg %p487
        $region126: #{attn_forward.1} parent=119 // pred_check_branch
          %727 = sbr.rel (%p725) target = $region128
        $region127: #{attn_forward.1} parent=119 // pred_region
          %728 = dma.done [#allocation6], 16
        $region128: #{attn_forward.1} parent=119 // pred_fallthru
          _
        %p729 = scmp.lt.s32.totalorder %s41, 1
        %s730 = scalar_select %p729, %s41, 1
        %s731 = smul.addr %s730, 8
        %s732 = scalar_lea.vmem %s0, %s731
        %p733 = pneg %p62
        %p734 = pneg %p59
        %p735 = scmp.lt.s32.totalorder %s41, 1
        %s736 = scalar_select %p735, %s41, 1
        %s737 = scalar_lea.vmem %s1, %s736
        %p738 = pneg %p88
        %p739 = pneg %p85
        %p740 = pneg %p109
        %p741 = pneg %p106
        %p742 = pneg %p130
        %p743 = pneg %p127
        %p744 = pneg %p151
        %p745 = pneg %p148
        %p746 = pneg %p172
        %p747 = pneg %p169
        %p748 = pneg %p193
        %p749 = pneg %p190
        %p750 = pneg %p214
        %p751 = pneg %p211
        %p752 = pneg %p235
        %p753 = pneg %p232
        %p754 = pneg %p256
        %p755 = pneg %p253
        %p756 = pneg %p277
        %p757 = pneg %p274
        %p758 = pneg %p298
        %p759 = pneg %p295
        %p760 = pneg %p319
        %p761 = pneg %p316
        %p762 = pneg %p340
        %p763 = pneg %p337
        %p764 = pneg %p361
        %p765 = pneg %p358
        %p766 = pneg %p382
        %p767 = pneg %p379
        %p768 = pneg %p403
        %p769 = pneg %p400
        %p770 = pneg %p424
        %p771 = pneg %p421
        %p772 = pneg %p445
        %p773 = pneg %p442
        %p774 = pneg %p466
        %p775 = pneg %p463
        %p776 = pneg %p487
        %p777 = pneg %p484
        %p778 = pneg %p508
        %p779 = pneg %p505
        %p780 = pneg %p529
        %p781 = pneg %p526
        %p782 = pneg %p550
        %p783 = pneg %p547
        %p784 = pneg %p571
        %p785 = pneg %p568
        %p786 = pneg %p597
        %p787 = pneg %p594
        %s788 = sand.u32 %s584, 1
        %s789 = scalar_lea.sflag [#allocation4], %s788
        %s790 = sand.u32 %s584, 1
        %s791 = scalar_lea.vmem [#allocation7], %s790
        %p792 = scmp.lt.s32.totalorder %s41, 1
        %s793 = scalar_select %p792, %s41, 1
        %s794 = smul.addr %s793, 8
        %s795 = scalar_lea.vmem %s0, %s794
        %p796 = scmp.lt.s32.totalorder %s41, 1
        %s797 = scalar_select %p796, %s41, 1
        %s798 = scalar_lea.vmem %s1, %s797
        %v799 = vld [vmem:[%s795] sm:$0xff]
        %v800 = vld [vmem:[%s798] sm:$0x1]
        %v801 = vsub.f32 1.0, %v800
        %v802 = vmul.f32 %v801, -1e+09
        %v803 = vld [vmem:[%s2] sm:$0xff]
        %v804 = vld [vmem:[%s2 + $0x8] sm:$0xff]
        %v805 = vld [vmem:[%s2 + $0x10] sm:$0xff]
        %v806 = vld [vmem:[%s2 + $0x18] sm:$0xff]
        %v807 = vld [vmem:[%s3] sm:$0x1]
        %v809 = vlaneseq
        %v810 = vshrl.u32 %v809, 7
        %v811 = vsub.s32 0, %v810
        %v812 = vrot.slane %v807, %v811
        %vm814 = vcmask 261120
        %v816 = vsel %vm814, %v799, 0
        %818 = vmatprep.subr.mxu0 0.0
        %819 = vmatpush1.msra.mxu0 %v803
        %820 = vmatprep.subr.mxu0 0.0
        %821 = vmatpush1.msra.mxu0 %v804
        %822 = vmatprep.subr.mxu0 0.0
        %823 = vmatpush1.msra.mxu0 %v805
        %824 = vmatprep.subr.mxu0 0.0
        %825 = vmatpush1.msra.mxu0 %v806
        %826 = vmatprep.subr.mxu0 0.0
        %827 = vmatpush1.msra.mxu0 0.0
        %828 = vmatprep.subr.mxu0 0.0
        %829 = vmatpush1.msra.mxu0 0.0
        %830 = vmatprep.subr.mxu0 0.0
        %831 = vmatpush1.msra.mxu0 0.0
        %832 = vmatprep.subr.mxu0 0.0
        %833 = vmatpush1.msra.mxu0 0.0
        %834 = vmatprep.subr.mxu0 0.0
        %835 = vmatpush1.msra.mxu0 0.0
        %836 = vmatprep.subr.mxu0 0.0
        %837 = vmatpush1.msra.mxu0 0.0
        %838 = vmatprep.subr.mxu0 0.0
        %839 = vmatpush1.msra.mxu0 0.0
        %840 = vmatprep.subr.mxu0 0.0
        %841 = vmatpush1.msra.mxu0 0.0
        %842 = vmatprep.subr.mxu0 0.0
        %843 = vmatpush1.msra.mxu0 0.0
        %844 = vmatprep.subr.mxu0 0.0
        %845 = vmatpush1.msra.mxu0 0.0
        %846 = vmatprep.subr.mxu0 0.0
        %847 = vmatpush1.msra.mxu0 0.0
        %848 = vmatprep.subr.mxu0 0.0
        %849 = vmatpush1.msra.mxu0 0.0
        %850 = vmatprep.subr.mxu0 0.0
        %851 = vmatpush1.msra.mxu0 0.0
        %852 = vmatprep.subr.mxu0 0.0
        %853 = vmatpush1.msra.mxu0 0.0
        %854 = vmatprep.subr.mxu0 0.0
        %855 = vmatpush1.msra.mxu0 0.0
        %856 = vmatprep.subr.mxu0 0.0
        %857 = vmatpush1.msra.mxu0 0.0
        %858 = vmatprep.subr.mxu0 0.0
        %859 = vmatpush1.msra.mxu0 0.0
        %860 = vmatprep.subr.mxu0 0.0
        %861 = vmatpush1.msra.mxu0 0.0
        %862 = vmatprep.subr.mxu0 0.0
        %863 = vmatpush1.msra.mxu0 0.0
        %864 = vmatprep.subr.mxu0 0.0
        %865 = vmatpush1.msra.mxu0 0.0
        %866 = vmatprep.subr.mxu0 0.0
        %867 = vmatpush1.msra.mxu0 0.0
        %868 = vmatprep.subr.mxu0 0.0
        %869 = vmatpush1.msra.mxu0 0.0
        %870 = vmatprep.subr.mxu0 0.0
        %871 = vmatpush1.msra.mxu0 0.0
        %872 = vmatprep.subr.mxu0 0.0
        %873 = vmatpush1.msra.mxu0 0.0
        %874 = vmatprep.subr.mxu0 0.0
        %875 = vmatpush1.msra.mxu0 0.0
        %876 = vmatprep.subr.mxu0 0.0
        %877 = vmatpush1.msra.mxu0 0.0
        %878 = vmatprep.subr.mxu0 0.0
        %879 = vmatpush1.msra.mxu0 0.0
        %880 = vmatprep.subr.mxu0 0.0
        %881 = vmatpush1.msra.mxu0 0.0
        %882 = vmatprep.mubr.f32.mxu0 0.0
        %883 = vmatmul.mubr.f32.gmra.mrb[0].mxu0 %v816
        %v884 = vpop.f32.mrb[0].mxu0
        %v885 = vadd.f32 %v812, %v884
        %v886 = vpop.f32.mrb[0].mxu0
        %887 = vdwg.mxu0
        %v888 = vmul.f32 %v885, 0.35355338
        %v890 = vlaneseq
        %v891 = vshrl.u32 %v890, 7
        %v892 = vsub.s32 0, %v891
        %v893 = vrot.slane %v802, %v892
        %896 = vrot.lane.b32.xlu0 %v885, 96
        %v897 = vpop.permute.xlu0 %896
        %vm898 = vcmask 64512
        %v900 = vsel %vm898, %v888, 0
        %v902 = vsel %vm898, %v897, 0
        %904 = vmatprep.subr.mxu0 0.0
        %905 = vmatpush1.xpose.msra.mxu0 %v902
        %906 = vmatprep.subr.mxu0 0.0
        %907 = vmatpush1.xpose.msra.mxu0 0.0
        %908 = vmatprep.subr.mxu0 0.0
        %909 = vmatpush1.xpose.msra.mxu0 0.0
        %910 = vmatprep.subr.mxu0 0.0
        %911 = vmatpush1.xpose.msra.mxu0 0.0
        %912 = vmatprep.subr.mxu0 0.0
        %913 = vmatpush1.xpose.msra.mxu0 0.0
        %914 = vmatprep.subr.mxu0 0.0
        %915 = vmatpush1.xpose.msra.mxu0 0.0
        %916 = vmatprep.subr.mxu0 0.0
        %917 = vmatpush1.xpose.msra.mxu0 0.0
        %918 = vmatprep.subr.mxu0 0.0
        %919 = vmatpush1.xpose.msra.mxu0 0.0
        %920 = vmatprep.subr.mxu0 0.0
        %921 = vmatpush1.xpose.msra.mxu0 0.0
        %922 = vmatprep.subr.mxu0 0.0
        %923 = vmatpush1.xpose.msra.mxu0 0.0
        %924 = vmatprep.subr.mxu0 0.0
        %925 = vmatpush1.xpose.msra.mxu0 0.0
        %926 = vmatprep.subr.mxu0 0.0
        %927 = vmatpush1.xpose.msra.mxu0 0.0
        %928 = vmatprep.subr.mxu0 0.0
        %929 = vmatpush1.xpose.msra.mxu0 0.0
        %930 = vmatprep.subr.mxu0 0.0
        %931 = vmatpush1.xpose.msra.mxu0 0.0
        %932 = vmatprep.subr.mxu0 0.0
        %933 = vmatpush1.xpose.msra.mxu0 0.0
        %934 = vmatprep.subr.mxu0 0.0
        %935 = vmatpush1.xpose.msra.mxu0 0.0
        %936 = vmatprep.subr.mxu0 0.0
        %937 = vmatpush1.xpose.msra.mxu0 0.0
        %938 = vmatprep.subr.mxu0 0.0
        %939 = vmatpush1.xpose.msra.mxu0 0.0
        %940 = vmatprep.subr.mxu0 0.0
        %941 = vmatpush1.xpose.msra.mxu0 0.0
        %942 = vmatprep.subr.mxu0 0.0
        %943 = vmatpush1.xpose.msra.mxu0 0.0
        %944 = vmatprep.subr.mxu0 0.0
        %945 = vmatpush1.xpose.msra.mxu0 0.0
        %946 = vmatprep.subr.mxu0 0.0
        %947 = vmatpush1.xpose.msra.mxu0 0.0
        %948 = vmatprep.subr.mxu0 0.0
        %949 = vmatpush1.xpose.msra.mxu0 0.0
        %950 = vmatprep.subr.mxu0 0.0
        %951 = vmatpush1.xpose.msra.mxu0 0.0
        %952 = vmatprep.subr.mxu0 0.0
        %953 = vmatpush1.xpose.msra.mxu0 0.0
        %954 = vmatprep.subr.mxu0 0.0
        %955 = vmatpush1.xpose.msra.mxu0 0.0
        %956 = vmatprep.subr.mxu0 0.0
        %957 = vmatpush1.xpose.msra.mxu0 0.0
        %958 = vmatprep.subr.mxu0 0.0
        %959 = vmatpush1.xpose.msra.mxu0 0.0
        %960 = vmatprep.subr.mxu0 0.0
        %961 = vmatpush1.xpose.msra.mxu0 0.0
        %962 = vmatprep.subr.mxu0 0.0
        %963 = vmatpush1.xpose.msra.mxu0 0.0
        %964 = vmatprep.subr.mxu0 0.0
        %965 = vmatpush1.xpose.msra.mxu0 0.0
        %966 = vmatprep.subr.mxu0 0.0
        %967 = vmatpush1.xpose.msra.mxu0 0.0
        %968 = vmatprep.mubr.f32.mxu0 0.0
        %969 = vmatmul.mubr.f32.gmra.mrb[0].mxu0 %v900
        %v970 = vpop.f32.mrb[0].mxu0
        %v971 = vadd.f32 %v893, %v970
        %v972 = vpop.f32.mrb[0].mxu0
        %973 = vdwg.mxu0
        %v974 = vsel %vm898, %v971, -inf
        %975 = vmax.xlane.f32.xlu0 %v974
        %v976 = vpop.xlane.xlu0 %975
        %v977 = vsub.f32 %v971, %v976
        %v978 = vmul.f32 %v977, 1.442695
        %v979 = vpow.pop %v978
        %v980 = vsel %vm898, %v979, 0.0
        %981 = vadd.xlane.f32.xlu0 %v980
        %v982 = vpop.xlane.xlu0 %981
        %v983 = vrcp.pop %v982
        %v984 = vmul.f32 %v979, %v983
        %985 = vrot.lane.b32.xlu0 %v885, 64
        %v986 = vpop.permute.xlu0 %985
        %v989 = vsel %vm898, %v984, 0
        %991 = vmatprep.subr.mxu0 0.0
        %992 = vmatpush1.msra.mxu0 %v986
        %993 = vmatprep.subr.mxu0 0.0
        %994 = vmatpush1.msra.mxu0 0.0
        %995 = vmatprep.subr.mxu0 0.0
        %996 = vmatpush1.msra.mxu0 0.0
        %997 = vmatprep.subr.mxu0 0.0
        %998 = vmatpush1.msra.mxu0 0.0
        %999 = vmatprep.subr.mxu0 0.0
        %1000 = vmatpush1.msra.mxu0 0.0
        %1001 = vmatprep.subr.mxu0 0.0
        %1002 = vmatpush1.msra.mxu0 0.0
        %1003 = vmatprep.subr.mxu0 0.0
        %1004 = vmatpush1.msra.mxu0 0.0
        %1005 = vmatprep.subr.mxu0 0.0
        %1006 = vmatpush1.msra.mxu0 0.0
        %1007 = vmatprep.subr.mxu0 0.0
        %1008 = vmatpush1.msra.mxu0 0.0
        %1009 = vmatprep.subr.mxu0 0.0
        %1010 = vmatpush1.msra.mxu0 0.0
        %1011 = vmatprep.subr.mxu0 0.0
        %1012 = vmatpush1.msra.mxu0 0.0
        %1013 = vmatprep.subr.mxu0 0.0
        %1014 = vmatpush1.msra.mxu0 0.0
        %1015 = vmatprep.subr.mxu0 0.0
        %1016 = vmatpush1.msra.mxu0 0.0
        %1017 = vmatprep.subr.mxu0 0.0
        %1018 = vmatpush1.msra.mxu0 0.0
        %1019 = vmatprep.subr.mxu0 0.0
        %1020 = vmatpush1.msra.mxu0 0.0
        %1021 = vmatprep.subr.mxu0 0.0
        %1022 = vmatpush1.msra.mxu0 0.0
        %1023 = vmatprep.subr.mxu0 0.0
        %1024 = vmatpush1.msra.mxu0 0.0
        %1025 = vmatprep.subr.mxu0 0.0
        %1026 = vmatpush1.msra.mxu0 0.0
        %1027 = vmatprep.subr.mxu0 0.0
        %1028 = vmatpush1.msra.mxu0 0.0
        %1029 = vmatprep.subr.mxu0 0.0
        %1030 = vmatpush1.msra.mxu0 0.0
        %1031 = vmatprep.subr.mxu0 0.0
        %1032 = vmatpush1.msra.mxu0 0.0
        %1033 = vmatprep.subr.mxu0 0.0
        %1034 = vmatpush1.msra.mxu0 0.0
        %1035 = vmatprep.subr.mxu0 0.0
        %1036 = vmatpush1.msra.mxu0 0.0
        %1037 = vmatprep.subr.mxu0 0.0
        %1038 = vmatpush1.msra.mxu0 0.0
        %1039 = vmatprep.subr.mxu0 0.0
        %1040 = vmatpush1.msra.mxu0 0.0
        %1041 = vmatprep.subr.mxu0 0.0
        %1042 = vmatpush1.msra.mxu0 0.0
        %1043 = vmatprep.subr.mxu0 0.0
        %1044 = vmatpush1.msra.mxu0 0.0
        %1045 = vmatprep.subr.mxu0 0.0
        %1046 = vmatpush1.msra.mxu0 0.0
        %1047 = vmatprep.subr.mxu0 0.0
        %1048 = vmatpush1.msra.mxu0 0.0
        %1049 = vmatprep.subr.mxu0 0.0
        %1050 = vmatpush1.msra.mxu0 0.0
        %1051 = vmatprep.subr.mxu0 0.0
        %1052 = vmatpush1.msra.mxu0 0.0
        %1053 = vmatprep.subr.mxu0 0.0
        %1054 = vmatpush1.msra.mxu0 0.0
        %1055 = vmatprep.mubr.f32.mxu0 0.0
        %1056 = vmatmul.mubr.f32.gmra.mrb[0].mxu0 %v989
        %v1057 = vpop.f32.mrb[0].mxu0
        %v1058 = vadd.f32 0.0, %v1057
        %v1059 = vpop.f32.mrb[0].mxu0
        %1060 = vdwg.mxu0
        %1061 = vrot.lane.b32.xlu0 %v888, 120
        %v1062 = vpop.permute.xlu0 %1061
        %1063 = vrot.lane.b32.xlu0 %v885, 88
        %v1064 = vpop.permute.xlu0 %1063
        %v1065 = vsel %vm898, %v1062, 0
        %v1067 = vsel %vm898, %v1064, 0
        %1069 = vmatprep.subr.mxu0 0.0
        %1070 = vmatpush1.xpose.msra.mxu0 %v1067
        %1071 = vmatprep.subr.mxu0 0.0
        %1072 = vmatpush1.xpose.msra.mxu0 0.0
        %1073 = vmatprep.subr.mxu0 0.0
        %1074 = vmatpush1.xpose.msra.mxu0 0.0
        %1075 = vmatprep.subr.mxu0 0.0
        %1076 = vmatpush1.xpose.msra.mxu0 0.0
        %1077 = vmatprep.subr.mxu0 0.0
        %1078 = vmatpush1.xpose.msra.mxu0 0.0
        %1079 = vmatprep.subr.mxu0 0.0
        %1080 = vmatpush1.xpose.msra.mxu0 0.0
        %1081 = vmatprep.subr.mxu0 0.0
        %1082 = vmatpush1.xpose.msra.mxu0 0.0
        %1083 = vmatprep.subr.mxu0 0.0
        %1084 = vmatpush1.xpose.msra.mxu0 0.0
        %1085 = vmatprep.subr.mxu0 0.0
        %1086 = vmatpush1.xpose.msra.mxu0 0.0
        %1087 = vmatprep.subr.mxu0 0.0
        %1088 = vmatpush1.xpose.msra.mxu0 0.0
        %1089 = vmatprep.subr.mxu0 0.0
        %1090 = vmatpush1.xpose.msra.mxu0 0.0
        %1091 = vmatprep.subr.mxu0 0.0
        %1092 = vmatpush1.xpose.msra.mxu0 0.0
        %1093 = vmatprep.subr.mxu0 0.0
        %1094 = vmatpush1.xpose.msra.mxu0 0.0
        %1095 = vmatprep.subr.mxu0 0.0
        %1096 = vmatpush1.xpose.msra.mxu0 0.0
        %1097 = vmatprep.subr.mxu0 0.0
        %1098 = vmatpush1.xpose.msra.mxu0 0.0
        %1099 = vmatprep.subr.mxu0 0.0
        %1100 = vmatpush1.xpose.msra.mxu0 0.0
        %1101 = vmatprep.subr.mxu0 0.0
        %1102 = vmatpush1.xpose.msra.mxu0 0.0
        %1103 = vmatprep.subr.mxu0 0.0
        %1104 = vmatpush1.xpose.msra.mxu0 0.0
        %1105 = vmatprep.subr.mxu0 0.0
        %1106 = vmatpush1.xpose.msra.mxu0 0.0
        %1107 = vmatprep.subr.mxu0 0.0
        %1108 = vmatpush1.xpose.msra.mxu0 0.0
        %1109 = vmatprep.subr.mxu0 0.0
        %1110 = vmatpush1.xpose.msra.mxu0 0.0
        %1111 = vmatprep.subr.mxu0 0.0
        %1112 = vmatpush1.xpose.msra.mxu0 0.0
        %1113 = vmatprep.subr.mxu0 0.0
        %1114 = vmatpush1.xpose.msra.mxu0 0.0
        %1115 = vmatprep.subr.mxu0 0.0
        %1116 = vmatpush1.xpose.msra.mxu0 0.0
        %1117 = vmatprep.subr.mxu0 0.0
        %1118 = vmatpush1.xpose.msra.mxu0 0.0
        %1119 = vmatprep.subr.mxu0 0.0
        %1120 = vmatpush1.xpose.msra.mxu0 0.0
        %1121 = vmatprep.subr.mxu0 0.0
        %1122 = vmatpush1.xpose.msra.mxu0 0.0
        %1123 = vmatprep.subr.mxu0 0.0
        %1124 = vmatpush1.xpose.msra.mxu0 0.0
        %1125 = vmatprep.subr.mxu0 0.0
        %1126 = vmatpush1.xpose.msra.mxu0 0.0
        %1127 = vmatprep.subr.mxu0 0.0
        %1128 = vmatpush1.xpose.msra.mxu0 0.0
        %1129 = vmatprep.subr.mxu0 0.0
        %1130 = vmatpush1.xpose.msra.mxu0 0.0
        %1131 = vmatprep.subr.mxu0 0.0
        %1132 = vmatpush1.xpose.msra.mxu0 0.0
        %1133 = vmatprep.mubr.f32.mxu0 0.0
        %1134 = vmatmul.mubr.f32.gmra.mrb[0].mxu0 %v1065
        %v1135 = vpop.f32.mrb[0].mxu0
        %v1136 = vadd.f32 %v893, %v1135
        %v1137 = vpop.f32.mrb[0].mxu0
        %1138 = vdwg.mxu0
        %v1139 = vsel %vm898, %v1136, -inf
        %1140 = vmax.xlane.f32.xlu0 %v1139
        %v1141 = vpop.xlane.xlu0 %1140
        %v1142 = vsub.f32 %v1136, %v1141
        %v1143 = vmul.f32 %v1142, 1.442695
        %v1144 = vpow.pop %v1143
        %v1145 = vsel %vm898, %v1144, 0.0
        %1146 = vadd.xlane.f32.xlu0 %v1145
        %v1147 = vpop.xlane.xlu0 %1146
        %v1148 = vrcp.pop %v1147
        %v1149 = vmul.f32 %v1144, %v1148
        %1150 = vrot.lane.b32.xlu0 %v885, 56
        %v1151 = vpop.permute.xlu0 %1150
        %v1154 = vsel %vm898, %v1149, 0
        %1156 = vmatprep.subr.mxu0 0.0
        %1157 = vmatpush1.msra.mxu0 %v1151
        %1158 = vmatprep.subr.mxu0 0.0
        %1159 = vmatpush1.msra.mxu0 0.0
        %1160 = vmatprep.subr.mxu0 0.0
        %1161 = vmatpush1.msra.mxu0 0.0
        %1162 = vmatprep.subr.mxu0 0.0
        %1163 = vmatpush1.msra.mxu0 0.0
        %1164 = vmatprep.subr.mxu0 0.0
        %1165 = vmatpush1.msra.mxu0 0.0
        %1166 = vmatprep.subr.mxu0 0.0
        %1167 = vmatpush1.msra.mxu0 0.0
        %1168 = vmatprep.subr.mxu0 0.0
        %1169 = vmatpush1.msra.mxu0 0.0
        %1170 = vmatprep.subr.mxu0 0.0
        %1171 = vmatpush1.msra.mxu0 0.0
        %1172 = vmatprep.subr.mxu0 0.0
        %1173 = vmatpush1.msra.mxu0 0.0
        %1174 = vmatprep.subr.mxu0 0.0
        %1175 = vmatpush1.msra.mxu0 0.0
        %1176 = vmatprep.subr.mxu0 0.0
        %1177 = vmatpush1.msra.mxu0 0.0
        %1178 = vmatprep.subr.mxu0 0.0
        %1179 = vmatpush1.msra.mxu0 0.0
        %1180 = vmatprep.subr.mxu0 0.0
        %1181 = vmatpush1.msra.mxu0 0.0
        %1182 = vmatprep.subr.mxu0 0.0
        %1183 = vmatpush1.msra.mxu0 0.0
        %1184 = vmatprep.subr.mxu0 0.0
        %1185 = vmatpush1.msra.mxu0 0.0
        %1186 = vmatprep.subr.mxu0 0.0
        %1187 = vmatpush1.msra.mxu0 0.0
        %1188 = vmatprep.subr.mxu0 0.0
        %1189 = vmatpush1.msra.mxu0 0.0
        %1190 = vmatprep.subr.mxu0 0.0
        %1191 = vmatpush1.msra.mxu0 0.0
        %1192 = vmatprep.subr.mxu0 0.0
        %1193 = vmatpush1.msra.mxu0 0.0
        %1194 = vmatprep.subr.mxu0 0.0
        %1195 = vmatpush1.msra.mxu0 0.0
        %1196 = vmatprep.subr.mxu0 0.0
        %1197 = vmatpush1.msra.mxu0 0.0
        %1198 = vmatprep.subr.mxu0 0.0
        %1199 = vmatpush1.msra.mxu0 0.0
        %1200 = vmatprep.subr.mxu0 0.0
        %1201 = vmatpush1.msra.mxu0 0.0
        %1202 = vmatprep.subr.mxu0 0.0
        %1203 = vmatpush1.msra.mxu0 0.0
        %1204 = vmatprep.subr.mxu0 0.0
        %1205 = vmatpush1.msra.mxu0 0.0
        %1206 = vmatprep.subr.mxu0 0.0
        %1207 = vmatpush1.msra.mxu0 0.0
        %1208 = vmatprep.subr.mxu0 0.0
        %1209 = vmatpush1.msra.mxu0 0.0
        %1210 = vmatprep.subr.mxu0 0.0
        %1211 = vmatpush1.msra.mxu0 0.0
        %1212 = vmatprep.subr.mxu0 0.0
        %1213 = vmatpush1.msra.mxu0 0.0
        %1214 = vmatprep.subr.mxu0 0.0
        %1215 = vmatpush1.msra.mxu0 0.0
        %1216 = vmatprep.subr.mxu0 0.0
        %1217 = vmatpush1.msra.mxu0 0.0
        %1218 = vmatprep.subr.mxu0 0.0
        %1219 = vmatpush1.msra.mxu0 0.0
        %1220 = vmatprep.mubr.f32.mxu0 0.0
        %1221 = vmatmul.mubr.f32.gmra.mrb[0].mxu0 %v1154
        %v1222 = vpop.f32.mrb[0].mxu0
        %v1223 = vadd.f32 0.0, %v1222
        %v1224 = vpop.f32.mrb[0].mxu0
        %1225 = vdwg.mxu0
        %1226 = vrot.lane.b32.xlu0 %v888, 112
        %v1227 = vpop.permute.xlu0 %1226
        %1228 = vrot.lane.b32.xlu0 %v885, 80
        %v1229 = vpop.permute.xlu0 %1228
        %v1230 = vsel %vm898, %v1227, 0
        %v1232 = vsel %vm898, %v1229, 0
        %1234 = vmatprep.subr.mxu0 0.0
        %1235 = vmatpush1.xpose.msra.mxu0 %v1232
        %1236 = vmatprep.subr.mxu0 0.0
        %1237 = vmatpush1.xpose.msra.mxu0 0.0
        %1238 = vmatprep.subr.mxu0 0.0
        %1239 = vmatpush1.xpose.msra.mxu0 0.0
        %1240 = vmatprep.subr.mxu0 0.0
        %1241 = vmatpush1.xpose.msra.mxu0 0.0
        %1242 = vmatprep.subr.mxu0 0.0
        %1243 = vmatpush1.xpose.msra.mxu0 0.0
        %1244 = vmatprep.subr.mxu0 0.0
        %1245 = vmatpush1.xpose.msra.mxu0 0.0
        %1246 = vmatprep.subr.mxu0 0.0
        %1247 = vmatpush1.xpose.msra.mxu0 0.0
        %1248 = vmatprep.subr.mxu0 0.0
        %1249 = vmatpush1.xpose.msra.mxu0 0.0
        %1250 = vmatprep.subr.mxu0 0.0
        %1251 = vmatpush1.xpose.msra.mxu0 0.0
        %1252 = vmatprep.subr.mxu0 0.0
        %1253 = vmatpush1.xpose.msra.mxu0 0.0
        %1254 = vmatprep.subr.mxu0 0.0
        %1255 = vmatpush1.xpose.msra.mxu0 0.0
        %1256 = vmatprep.subr.mxu0 0.0
        %1257 = vmatpush1.xpose.msra.mxu0 0.0
        %1258 = vmatprep.subr.mxu0 0.0
        %1259 = vmatpush1.xpose.msra.mxu0 0.0
        %1260 = vmatprep.subr.mxu0 0.0
        %1261 = vmatpush1.xpose.msra.mxu0 0.0
        %1262 = vmatprep.subr.mxu0 0.0
        %1263 = vmatpush1.xpose.msra.mxu0 0.0
        %1264 = vmatprep.subr.mxu0 0.0
        %1265 = vmatpush1.xpose.msra.mxu0 0.0
        %1266 = vmatprep.subr.mxu0 0.0
        %1267 = vmatpush1.xpose.msra.mxu0 0.0
        %1268 = vmatprep.subr.mxu0 0.0
        %1269 = vmatpush1.xpose.msra.mxu0 0.0
        %1270 = vmatprep.subr.mxu0 0.0
        %1271 = vmatpush1.xpose.msra.mxu0 0.0
        %1272 = vmatprep.subr.mxu0 0.0
        %1273 = vmatpush1.xpose.msra.mxu0 0.0
        %1274 = vmatprep.subr.mxu0 0.0
        %1275 = vmatpush1.xpose.msra.mxu0 0.0
        %1276 = vmatprep.subr.mxu0 0.0
        %1277 = vmatpush1.xpose.msra.mxu0 0.0
        %1278 = vmatprep.subr.mxu0 0.0
        %1279 = vmatpush1.xpose.msra.mxu0 0.0
        %1280 = vmatprep.subr.mxu0 0.0
        %1281 = vmatpush1.xpose.msra.mxu0 0.0
        %1282 = vmatprep.subr.mxu0 0.0
        %1283 = vmatpush1.xpose.msra.mxu0 0.0
        %1284 = vmatprep.subr.mxu0 0.0
        %1285 = vmatpush1.xpose.msra.mxu0 0.0
        %1286 = vmatprep.subr.mxu0 0.0
        %1287 = vmatpush1.xpose.msra.mxu0 0.0
        %1288 = vmatprep.subr.mxu0 0.0
        %1289 = vmatpush1.xpose.msra.mxu0 0.0
        %1290 = vmatprep.subr.mxu0 0.0
        %1291 = vmatpush1.xpose.msra.mxu0 0.0
        %1292 = vmatprep.subr.mxu0 0.0
        %1293 = vmatpush1.xpose.msra.mxu0 0.0
        %1294 = vmatprep.subr.mxu0 0.0
        %1295 = vmatpush1.xpose.msra.mxu0 0.0
        %1296 = vmatprep.subr.mxu0 0.0
        %1297 = vmatpush1.xpose.msra.mxu0 0.0
        %1298 = vmatprep.mubr.f32.mxu0 0.0
        %1299 = vmatmul.mubr.f32.gmra.mrb[0].mxu0 %v1230
        %v1300 = vpop.f32.mrb[0].mxu0
        %v1301 = vadd.f32 %v893, %v1300
        %v1302 = vpop.f32.mrb[0].mxu0
        %1303 = vdwg.mxu0
        %v1304 = vsel %vm898, %v1301, -inf
        %1305 = vmax.xlane.f32.xlu0 %v1304
        %v1306 = vpop.xlane.xlu0 %1305
        %v1307 = vsub.f32 %v1301, %v1306
        %v1308 = vmul.f32 %v1307, 1.442695
        %v1309 = vpow.pop %v1308
        %v1310 = vsel %vm898, %v1309, 0.0
        %1311 = vadd.xlane.f32.xlu0 %v1310
        %v1312 = vpop.xlane.xlu0 %1311
        %v1313 = vrcp.pop %v1312
        %v1314 = vmul.f32 %v1309, %v1313
        %1315 = vrot.lane.b32.xlu0 %v885, 48
        %v1316 = vpop.permute.xlu0 %1315
        %v1319 = vsel %vm898, %v1314, 0
        %1321 = vmatprep.subr.mxu0 0.0
        %1322 = vmatpush1.msra.mxu0 %v1316
        %1323 = vmatprep.subr.mxu0 0.0
        %1324 = vmatpush1.msra.mxu0 0.0
        %1325 = vmatprep.subr.mxu0 0.0
        %1326 = vmatpush1.msra.mxu0 0.0
        %1327 = vmatprep.subr.mxu0 0.0
        %1328 = vmatpush1.msra.mxu0 0.0
        %1329 = vmatprep.subr.mxu0 0.0
        %1330 = vmatpush1.msra.mxu0 0.0
        %1331 = vmatprep.subr.mxu0 0.0
        %1332 = vmatpush1.msra.mxu0 0.0
        %1333 = vmatprep.subr.mxu0 0.0
        %1334 = vmatpush1.msra.mxu0 0.0
        %1335 = vmatprep.subr.mxu0 0.0
        %1336 = vmatpush1.msra.mxu0 0.0
        %1337 = vmatprep.subr.mxu0 0.0
        %1338 = vmatpush1.msra.mxu0 0.0
        %1339 = vmatprep.subr.mxu0 0.0
        %1340 = vmatpush1.msra.mxu0 0.0
        %1341 = vmatprep.subr.mxu0 0.0
        %1342 = vmatpush1.msra.mxu0 0.0
        %1343 = vmatprep.subr.mxu0 0.0
        %1344 = vmatpush1.msra.mxu0 0.0
        %1345 = vmatprep.subr.mxu0 0.0
        %1346 = vmatpush1.msra.mxu0 0.0
        %1347 = vmatprep.subr.mxu0 0.0
        %1348 = vmatpush1.msra.mxu0 0.0
        %1349 = vmatprep.subr.mxu0 0.0
        %1350 = vmatpush1.msra.mxu0 0.0
        %1351 = vmatprep.subr.mxu0 0.0
        %1352 = vmatpush1.msra.mxu0 0.0
        %1353 = vmatprep.subr.mxu0 0.0
        %1354 = vmatpush1.msra.mxu0 0.0
        %1355 = vmatprep.subr.mxu0 0.0
        %1356 = vmatpush1.msra.mxu0 0.0
        %1357 = vmatprep.subr.mxu0 0.0
        %1358 = vmatpush1.msra.mxu0 0.0
        %1359 = vmatprep.subr.mxu0 0.0
        %1360 = vmatpush1.msra.mxu0 0.0
        %1361 = vmatprep.subr.mxu0 0.0
        %1362 = vmatpush1.msra.mxu0 0.0
        %1363 = vmatprep.subr.mxu0 0.0
        %1364 = vmatpush1.msra.mxu0 0.0
        %1365 = vmatprep.subr.mxu0 0.0
        %1366 = vmatpush1.msra.mxu0 0.0
        %1367 = vmatprep.subr.mxu0 0.0
        %1368 = vmatpush1.msra.mxu0 0.0
        %1369 = vmatprep.subr.mxu0 0.0
        %1370 = vmatpush1.msra.mxu0 0.0
        %1371 = vmatprep.subr.mxu0 0.0
        %1372 = vmatpush1.msra.mxu0 0.0
        %1373 = vmatprep.subr.mxu0 0.0
        %1374 = vmatpush1.msra.mxu0 0.0
        %1375 = vmatprep.subr.mxu0 0.0
        %1376 = vmatpush1.msra.mxu0 0.0
        %1377 = vmatprep.subr.mxu0 0.0
        %1378 = vmatpush1.msra.mxu0 0.0
        %1379 = vmatprep.subr.mxu0 0.0
        %1380 = vmatpush1.msra.mxu0 0.0
        %1381 = vmatprep.subr.mxu0 0.0
        %1382 = vmatpush1.msra.mxu0 0.0
        %1383 = vmatprep.subr.mxu0 0.0
        %1384 = vmatpush1.msra.mxu0 0.0
        %1385 = vmatprep.mubr.f32.mxu0 0.0
        %1386 = vmatmul.mubr.f32.gmra.mrb[0].mxu0 %v1319
        %v1387 = vpop.f32.mrb[0].mxu0
        %v1388 = vadd.f32 0.0, %v1387
        %v1389 = vpop.f32.mrb[0].mxu0
        %1390 = vdwg.mxu0
        %1391 = vrot.lane.b32.xlu0 %v888, 104
        %v1392 = vpop.permute.xlu0 %1391
        %1393 = vrot.lane.b32.xlu0 %v885, 72
        %v1394 = vpop.permute.xlu0 %1393
        %v1395 = vsel %vm898, %v1392, 0
        %v1397 = vsel %vm898, %v1394, 0
        %1399 = vmatprep.subr.mxu0 0.0
        %1400 = vmatpush1.xpose.msra.mxu0 %v1397
        %1401 = vmatprep.subr.mxu0 0.0
        %1402 = vmatpush1.xpose.msra.mxu0 0.0
        %1403 = vmatprep.subr.mxu0 0.0
        %1404 = vmatpush1.xpose.msra.mxu0 0.0
        %1405 = vmatprep.subr.mxu0 0.0
        %1406 = vmatpush1.xpose.msra.mxu0 0.0
        %1407 = vmatprep.subr.mxu0 0.0
        %1408 = vmatpush1.xpose.msra.mxu0 0.0
        %1409 = vmatprep.subr.mxu0 0.0
        %1410 = vmatpush1.xpose.msra.mxu0 0.0
        %1411 = vmatprep.subr.mxu0 0.0
        %1412 = vmatpush1.xpose.msra.mxu0 0.0
        %1413 = vmatprep.subr.mxu0 0.0
        %1414 = vmatpush1.xpose.msra.mxu0 0.0
        %1415 = vmatprep.subr.mxu0 0.0
        %1416 = vmatpush1.xpose.msra.mxu0 0.0
        %1417 = vmatprep.subr.mxu0 0.0
        %1418 = vmatpush1.xpose.msra.mxu0 0.0
        %1419 = vmatprep.subr.mxu0 0.0
        %1420 = vmatpush1.xpose.msra.mxu0 0.0
        %1421 = vmatprep.subr.mxu0 0.0
        %1422 = vmatpush1.xpose.msra.mxu0 0.0
        %1423 = vmatprep.subr.mxu0 0.0
        %1424 = vmatpush1.xpose.msra.mxu0 0.0
        %1425 = vmatprep.subr.mxu0 0.0
        %1426 = vmatpush1.xpose.msra.mxu0 0.0
        %1427 = vmatprep.subr.mxu0 0.0
        %1428 = vmatpush1.xpose.msra.mxu0 0.0
        %1429 = vmatprep.subr.mxu0 0.0
        %1430 = vmatpush1.xpose.msra.mxu0 0.0
        %1431 = vmatprep.subr.mxu0 0.0
        %1432 = vmatpush1.xpose.msra.mxu0 0.0
        %1433 = vmatprep.subr.mxu0 0.0
        %1434 = vmatpush1.xpose.msra.mxu0 0.0
        %1435 = vmatprep.subr.mxu0 0.0
        %1436 = vmatpush1.xpose.msra.mxu0 0.0
        %1437 = vmatprep.subr.mxu0 0.0
        %1438 = vmatpush1.xpose.msra.mxu0 0.0
        %1439 = vmatprep.subr.mxu0 0.0
        %1440 = vmatpush1.xpose.msra.mxu0 0.0
        %1441 = vmatprep.subr.mxu0 0.0
        %1442 = vmatpush1.xpose.msra.mxu0 0.0
        %1443 = vmatprep.subr.mxu0 0.0
        %1444 = vmatpush1.xpose.msra.mxu0 0.0
        %1445 = vmatprep.subr.mxu0 0.0
        %1446 = vmatpush1.xpose.msra.mxu0 0.0
        %1447 = vmatprep.subr.mxu0 0.0
        %1448 = vmatpush1.xpose.msra.mxu0 0.0
        %1449 = vmatprep.subr.mxu0 0.0
        %1450 = vmatpush1.xpose.msra.mxu0 0.0
        %1451 = vmatprep.subr.mxu0 0.0
        %1452 = vmatpush1.xpose.msra.mxu0 0.0
        %1453 = vmatprep.subr.mxu0 0.0
        %1454 = vmatpush1.xpose.msra.mxu0 0.0
        %1455 = vmatprep.subr.mxu0 0.0
        %1456 = vmatpush1.xpose.msra.mxu0 0.0
        %1457 = vmatprep.subr.mxu0 0.0
        %1458 = vmatpush1.xpose.msra.mxu0 0.0
        %1459 = vmatprep.subr.mxu0 0.0
        %1460 = vmatpush1.xpose.msra.mxu0 0.0
        %1461 = vmatprep.subr.mxu0 0.0
        %1462 = vmatpush1.xpose.msra.mxu0 0.0
        %1463 = vmatprep.mubr.f32.mxu0 0.0
        %1464 = vmatmul.mubr.f32.gmra.mrb[0].mxu0 %v1395
        %v1465 = vpop.f32.mrb[0].mxu0
        %v1466 = vadd.f32 %v893, %v1465
        %v1467 = vpop.f32.mrb[0].mxu0
        %1468 = vdwg.mxu0
        %v1469 = vsel %vm898, %v1466, -inf
        %1470 = vmax.xlane.f32.xlu0 %v1469
        %v1471 = vpop.xlane.xlu0 %1470
        %v1472 = vsub.f32 %v1466, %v1471
        %v1473 = vmul.f32 %v1472, 1.442695
        %v1474 = vpow.pop %v1473
        %v1475 = vsel %vm898, %v1474, 0.0
        %1476 = vadd.xlane.f32.xlu0 %v1475
        %v1477 = vpop.xlane.xlu0 %1476
        %v1478 = vrcp.pop %v1477
        %v1479 = vmul.f32 %v1474, %v1478
        %1480 = vrot.lane.b32.xlu0 %v885, 40
        %v1481 = vpop.permute.xlu0 %1480
        %v1484 = vsel %vm898, %v1479, 0
        %1486 = vmatprep.subr.mxu0 0.0
        %1487 = vmatpush1.msra.mxu0 %v1481
        %1488 = vmatprep.subr.mxu0 0.0
        %1489 = vmatpush1.msra.mxu0 0.0
        %1490 = vmatprep.subr.mxu0 0.0
        %1491 = vmatpush1.msra.mxu0 0.0
        %1492 = vmatprep.subr.mxu0 0.0
        %1493 = vmatpush1.msra.mxu0 0.0
        %1494 = vmatprep.subr.mxu0 0.0
        %1495 = vmatpush1.msra.mxu0 0.0
        %1496 = vmatprep.subr.mxu0 0.0
        %1497 = vmatpush1.msra.mxu0 0.0
        %1498 = vmatprep.subr.mxu0 0.0
        %1499 = vmatpush1.msra.mxu0 0.0
        %1500 = vmatprep.subr.mxu0 0.0
        %1501 = vmatpush1.msra.mxu0 0.0
        %1502 = vmatprep.subr.mxu0 0.0
        %1503 = vmatpush1.msra.mxu0 0.0
        %1504 = vmatprep.subr.mxu0 0.0
        %1505 = vmatpush1.msra.mxu0 0.0
        %1506 = vmatprep.subr.mxu0 0.0
        %1507 = vmatpush1.msra.mxu0 0.0
        %1508 = vmatprep.subr.mxu0 0.0
        %1509 = vmatpush1.msra.mxu0 0.0
        %1510 = vmatprep.subr.mxu0 0.0
        %1511 = vmatpush1.msra.mxu0 0.0
        %1512 = vmatprep.subr.mxu0 0.0
        %1513 = vmatpush1.msra.mxu0 0.0
        %1514 = vmatprep.subr.mxu0 0.0
        %1515 = vmatpush1.msra.mxu0 0.0
        %1516 = vmatprep.subr.mxu0 0.0
        %1517 = vmatpush1.msra.mxu0 0.0
        %1518 = vmatprep.subr.mxu0 0.0
        %1519 = vmatpush1.msra.mxu0 0.0
        %1520 = vmatprep.subr.mxu0 0.0
        %1521 = vmatpush1.msra.mxu0 0.0
        %1522 = vmatprep.subr.mxu0 0.0
        %1523 = vmatpush1.msra.mxu0 0.0
        %1524 = vmatprep.subr.mxu0 0.0
        %1525 = vmatpush1.msra.mxu0 0.0
        %1526 = vmatprep.subr.mxu0 0.0
        %1527 = vmatpush1.msra.mxu0 0.0
        %1528 = vmatprep.subr.mxu0 0.0
        %1529 = vmatpush1.msra.mxu0 0.0
        %1530 = vmatprep.subr.mxu0 0.0
        %1531 = vmatpush1.msra.mxu0 0.0
        %1532 = vmatprep.subr.mxu0 0.0
        %1533 = vmatpush1.msra.mxu0 0.0
        %1534 = vmatprep.subr.mxu0 0.0
        %1535 = vmatpush1.msra.mxu0 0.0
        %1536 = vmatprep.subr.mxu0 0.0
        %1537 = vmatpush1.msra.mxu0 0.0
        %1538 = vmatprep.subr.mxu0 0.0
        %1539 = vmatpush1.msra.mxu0 0.0
        %1540 = vmatprep.subr.mxu0 0.0
        %1541 = vmatpush1.msra.mxu0 0.0
        %1542 = vmatprep.subr.mxu0 0.0
        %1543 = vmatpush1.msra.mxu0 0.0
        %1544 = vmatprep.subr.mxu0 0.0
        %1545 = vmatpush1.msra.mxu0 0.0
        %1546 = vmatprep.subr.mxu0 0.0
        %1547 = vmatpush1.msra.mxu0 0.0
        %1548 = vmatprep.subr.mxu0 0.0
        %1549 = vmatpush1.msra.mxu0 0.0
        %1550 = vmatprep.mubr.f32.mxu0 0.0
        %1551 = vmatmul.mubr.f32.gmra.mrb[0].mxu0 %v1484
        %v1552 = vpop.f32.mrb[0].mxu0
        %v1553 = vadd.f32 0.0, %v1552
        %v1554 = vpop.f32.mrb[0].mxu0
        %1555 = vdwg.mxu0
        %1557 = vrot.lane.b32.xlu0 %v1223, 8
        %v1558 = vpop.permute.xlu0 %1557
        %1561 = vrot.lane.b32.xlu0 %v1388, 16
        %v1562 = vpop.permute.xlu0 %1561
        %1565 = vrot.lane.b32.xlu0 %v1553, 24
        %v1566 = vpop.permute.xlu0 %1565
        %v1568 = vsel %vm898, %v1058, %v1558
        %vm1569 = vcmask 130048
        %v1570 = vsel %vm1569, %v1568, %v1562
        %vm1571 = vcmask 195584
        %v1572 = vsel %vm1571, %v1570, %v1566
        %v1573 = vld [vmem:[%s4] sm:$0xff]
        %v1574 = vld [vmem:[%s4 + $0x8] sm:$0xff]
        %v1575 = vld [vmem:[%s4 + $0x10] sm:$0xff]
        %v1576 = vld [vmem:[%s4 + $0x18] sm:$0xff]
        %v1577 = vld [vmem:[%s5] sm:$0x1]
        %v1579 = vlaneseq
        %v1580 = vshrl.u32 %v1579, 7
        %v1581 = vsub.s32 0, %v1580
        %v1582 = vrot.slane %v1577, %v1581
        %v1585 = vsel %vm814, %v1572, 0
        %1587 = vmatprep.subr.mxu0 0.0
        %1588 = vmatpush1.msra.mxu0 %v1573
        %1589 = vmatprep.subr.mxu0 0.0
        %1590 = vmatpush1.msra.mxu0 %v1574
        %1591 = vmatprep.subr.mxu0 0.0
        %1592 = vmatpush1.msra.mxu0 %v1575
        %1593 = vmatprep.subr.mxu0 0.0
        %1594 = vmatpush1.msra.mxu0 %v1576
        %1595 = vmatprep.subr.mxu0 0.0
        %1596 = vmatpush1.msra.mxu0 0.0
        %1597 = vmatprep.subr.mxu0 0.0
        %1598 = vmatpush1.msra.mxu0 0.0
        %1599 = vmatprep.subr.mxu0 0.0
        %1600 = vmatpush1.msra.mxu0 0.0
        %1601 = vmatprep.subr.mxu0 0.0
        %1602 = vmatpush1.msra.mxu0 0.0
        %1603 = vmatprep.subr.mxu0 0.0
        %1604 = vmatpush1.msra.mxu0 0.0
        %1605 = vmatprep.subr.mxu0 0.0
        %1606 = vmatpush1.msra.mxu0 0.0
        %1607 = vmatprep.subr.mxu0 0.0
        %1608 = vmatpush1.msra.mxu0 0.0
        %1609 = vmatprep.subr.mxu0 0.0
        %1610 = vmatpush1.msra.mxu0 0.0
        %1611 = vmatprep.subr.mxu0 0.0
        %1612 = vmatpush1.msra.mxu0 0.0
        %1613 = vmatprep.subr.mxu0 0.0
        %1614 = vmatpush1.msra.mxu0 0.0
        %1615 = vmatprep.subr.mxu0 0.0
        %1616 = vmatpush1.msra.mxu0 0.0
        %1617 = vmatprep.subr.mxu0 0.0
        %1618 = vmatpush1.msra.mxu0 0.0
        %1619 = vmatprep.subr.mxu0 0.0
        %1620 = vmatpush1.msra.mxu0 0.0
        %1621 = vmatprep.subr.mxu0 0.0
        %1622 = vmatpush1.msra.mxu0 0.0
        %1623 = vmatprep.subr.mxu0 0.0
        %1624 = vmatpush1.msra.mxu0 0.0
        %1625 = vmatprep.subr.mxu0 0.0
        %1626 = vmatpush1.msra.mxu0 0.0
        %1627 = vmatprep.subr.mxu0 0.0
        %1628 = vmatpush1.msra.mxu0 0.0
        %1629 = vmatprep.subr.mxu0 0.0
        %1630 = vmatpush1.msra.mxu0 0.0
        %1631 = vmatprep.subr.mxu0 0.0
        %1632 = vmatpush1.msra.mxu0 0.0
        %1633 = vmatprep.subr.mxu0 0.0
        %1634 = vmatpush1.msra.mxu0 0.0
        %1635 = vmatprep.subr.mxu0 0.0
        %1636 = vmatpush1.msra.mxu0 0.0
        %1637 = vmatprep.subr.mxu0 0.0
        %1638 = vmatpush1.msra.mxu0 0.0
        %1639 = vmatprep.subr.mxu0 0.0
        %1640 = vmatpush1.msra.mxu0 0.0
        %1641 = vmatprep.subr.mxu0 0.0
        %1642 = vmatpush1.msra.mxu0 0.0
        %1643 = vmatprep.subr.mxu0 0.0
        %1644 = vmatpush1.msra.mxu0 0.0
        %1645 = vmatprep.subr.mxu0 0.0
        %1646 = vmatpush1.msra.mxu0 0.0
        %1647 = vmatprep.subr.mxu0 0.0
        %1648 = vmatpush1.msra.mxu0 0.0
        %1649 = vmatprep.subr.mxu0 0.0
        %1650 = vmatpush1.msra.mxu0 0.0
        %1651 = vmatprep.mubr.f32.mxu0 0.0
        %1652 = vmatmul.mubr.f32.gmra.mrb[0].mxu0 %v1585
        %v1653 = vpop.f32.mrb[0].mxu0
        %v1654 = vadd.f32 %v1582, %v1653
        %v1655 = vpop.f32.mrb[0].mxu0
        %1656 = vdwg.mxu0
        %v1657 = vadd.f32 %v799, %v1654
        %v1658 = vld [vmem:[%s6] sm:$0x1]
        %v1659 = vld [vmem:[%s7] sm:$0x1]
        %v1660 = vsel %vm814, %v1657, 0.0
        %1661 = vadd.xlane.f32.xlu0 %v1660
        %v1662 = vpop.xlane.xlu0 %1661
        %v1663 = vrcp.pop 32.0
        %v1664 = vmul.f32 %v1662, %v1663
        %v1665 = vsub.f32 %v1657, %v1664
        %v1666 = vmul.f32 %v1665, %v1665
        %v1667 = vsel %vm814, %v1666, 0.0
        %1668 = vadd.xlane.f32.xlu0 %v1667
        %v1669 = vpop.xlane.xlu0 %1668
        %v1670 = vmul.f32 %v1669, %v1663
        %v1671 = vadd.f32 %v1670, 1e-05
        %v1672 = vrsqrt.pop %v1671
        %v1673 = vmul.f32 %v1665, %v1672
        %v1675 = vlaneseq
        %v1676 = vshrl.u32 %v1675, 7
        %v1677 = vsub.s32 0, %v1676
        %v1678 = vrot.slane %v1658, %v1677
        %v1680 = vmul.f32 %v1673, %v1678
        %v1682 = vlaneseq
        %v1683 = vshrl.u32 %v1682, 7
        %v1684 = vsub.s32 0, %v1683
        %v1685 = vrot.slane %v1659, %v1684
        %v1687 = vadd.f32 %v1680, %v1685
        %v1688 = vld [vmem:[%s8] sm:$0xff]
        %v1689 = vld [vmem:[%s8 + $0x8] sm:$0xff]
        %v1690 = vld [vmem:[%s8 + $0x10] sm:$0xff]
        %v1691 = vld [vmem:[%s8 + $0x18] sm:$0xff]
        %v1692 = vld [vmem:[%s9] sm:$0x1]
        %v1694 = vlaneseq
        %v1695 = vshrl.u32 %v1694, 7
        %v1696 = vsub.s32 0, %v1695
        %v1697 = vrot.slane %v1692, %v1696
        %v1700 = vsel %vm814, %v1687, 0
        %1702 = vmatprep.subr.mxu0 0.0
        %1703 = vmatpush1.msra.mxu0 %v1688
        %1704 = vmatprep.subr.mxu0 0.0
        %1705 = vmatpush1.msra.mxu0 %v1689
        %1706 = vmatprep.subr.mxu0 0.0
        %1707 = vmatpush1.msra.mxu0 %v1690
        %1708 = vmatprep.subr.mxu0 0.0
        %1709 = vmatpush1.msra.mxu0 %v1691
        %1710 = vmatprep.subr.mxu0 0.0
        %1711 = vmatpush1.msra.mxu0 0.0
        %1712 = vmatprep.subr.mxu0 0.0
        %1713 = vmatpush1.msra.mxu0 0.0
        %1714 = vmatprep.subr.mxu0 0.0
        %1715 = vmatpush1.msra.mxu0 0.0
        %1716 = vmatprep.subr.mxu0 0.0
        %1717 = vmatpush1.msra.mxu0 0.0
        %1718 = vmatprep.subr.mxu0 0.0
        %1719 = vmatpush1.msra.mxu0 0.0
        %1720 = vmatprep.subr.mxu0 0.0
        %1721 = vmatpush1.msra.mxu0 0.0
        %1722 = vmatprep.subr.mxu0 0.0
        %1723 = vmatpush1.msra.mxu0 0.0
        %1724 = vmatprep.subr.mxu0 0.0
        %1725 = vmatpush1.msra.mxu0 0.0
        %1726 = vmatprep.subr.mxu0 0.0
        %1727 = vmatpush1.msra.mxu0 0.0
        %1728 = vmatprep.subr.mxu0 0.0
        %1729 = vmatpush1.msra.mxu0 0.0
        %1730 = vmatprep.subr.mxu0 0.0
        %1731 = vmatpush1.msra.mxu0 0.0
        %1732 = vmatprep.subr.mxu0 0.0
        %1733 = vmatpush1.msra.mxu0 0.0
        %1734 = vmatprep.subr.mxu0 0.0
        %1735 = vmatpush1.msra.mxu0 0.0
        %1736 = vmatprep.subr.mxu0 0.0
        %1737 = vmatpush1.msra.mxu0 0.0
        %1738 = vmatprep.subr.mxu0 0.0
        %1739 = vmatpush1.msra.mxu0 0.0
        %1740 = vmatprep.subr.mxu0 0.0
        %1741 = vmatpush1.msra.mxu0 0.0
        %1742 = vmatprep.subr.mxu0 0.0
        %1743 = vmatpush1.msra.mxu0 0.0
        %1744 = vmatprep.subr.mxu0 0.0
        %1745 = vmatpush1.msra.mxu0 0.0
        %1746 = vmatprep.subr.mxu0 0.0
        %1747 = vmatpush1.msra.mxu0 0.0
        %1748 = vmatprep.subr.mxu0 0.0
        %1749 = vmatpush1.msra.mxu0 0.0
        %1750 = vmatprep.subr.mxu0 0.0
        %1751 = vmatpush1.msra.mxu0 0.0
        %1752 = vmatprep.subr.mxu0 0.0
        %1753 = vmatpush1.msra.mxu0 0.0
        %1754 = vmatprep.subr.mxu0 0.0
        %1755 = vmatpush1.msra.mxu0 0.0
        %1756 = vmatprep.subr.mxu0 0.0
        %1757 = vmatpush1.msra.mxu0 0.0
        %1758 = vmatprep.subr.mxu0 0.0
        %1759 = vmatpush1.msra.mxu0 0.0
        %1760 = vmatprep.subr.mxu0 0.0
        %1761 = vmatpush1.msra.mxu0 0.0
        %1762 = vmatprep.subr.mxu0 0.0
        %1763 = vmatpush1.msra.mxu0 0.0
        %1764 = vmatprep.subr.mxu0 0.0
        %1765 = vmatpush1.msra.mxu0 0.0
        %1766 = vmatprep.mubr.f32.mxu0 0.0
        %1767 = vmatmul.mubr.f32.gmra.mrb[0].mxu0 %v1700
        %v1768 = vpop.f32.mrb[0].mxu0
        %v1769 = vadd.f32 %v1697, %v1768
        %v1770 = vpop.f32.mrb[0].mxu0
        %1771 = vdwg.mxu0
        %v1772 = vmax.f32 %v1769, 0.0
        %v1773 = vld [vmem:[%s10] sm:$0xff]
        %v1774 = vld [vmem:[%s10 + $0x8] sm:$0xff]
        %v1775 = vld [vmem:[%s10 + $0x10] sm:$0xff]
        %v1776 = vld [vmem:[%s10 + $0x18] sm:$0xff]
        %v1777 = vld [vmem:[%s10 + $0x20] sm:$0xff]
        %v1778 = vld [vmem:[%s10 + $0x28] sm:$0xff]
        %v1779 = vld [vmem:[%s10 + $0x30] sm:$0xff]
        %v1780 = vld [vmem:[%s10 + $0x38] sm:$0xff]
        %v1781 = vld [vmem:[%s10 + $0x40] sm:$0xff]
        %v1782 = vld [vmem:[%s10 + $0x48] sm:$0xff]
        %v1783 = vld [vmem:[%s10 + $0x50] sm:$0xff]
        %v1784 = vld [vmem:[%s10 + $0x58] sm:$0xff]
        %v1785 = vld [vmem:[%s10 + $0x60] sm:$0xff]
        %v1786 = vld [vmem:[%s10 + $0x68] sm:$0xff]
        %v1787 = vld [vmem:[%s10 + $0x70] sm:$0xff]
        %v1788 = vld [vmem:[%s10 + $0x78] sm:$0xff]
        %v1789 = vld [vmem:[%s11] sm:$0x1]
        %v1791 = vlaneseq
        %v1792 = vshrl.u32 %v1791, 7
        %v1793 = vsub.s32 0, %v1792
        %v1794 = vrot.slane %v1789, %v1793
        %1796 = vmatprep.subr.mxu0 0.0
        %1797 = vmatpush1.msra.mxu0 %v1773
        %1798 = vmatprep.subr.mxu0 0.0
        %1799 = vmatpush1.msra.mxu0 %v1774
        %1800 = vmatprep.subr.mxu0 0.0
        %1801 = vmatpush1.msra.mxu0 %v1775
        %1802 = vmatprep.subr.mxu0 0.0
        %1803 = vmatpush1.msra.mxu0 %v1776
        %1804 = vmatprep.subr.mxu0 0.0
        %1805 = vmatpush1.msra.mxu0 %v1777
        %1806 = vmatprep.subr.mxu0 0.0
        %1807 = vmatpush1.msra.mxu0 %v1778
        %1808 = vmatprep.subr.mxu0 0.0
        %1809 = vmatpush1.msra.mxu0 %v1779
        %1810 = vmatprep.subr.mxu0 0.0
        %1811 = vmatpush1.msra.mxu0 %v1780
        %1812 = vmatprep.subr.mxu0 0.0
        %1813 = vmatpush1.msra.mxu0 %v1781
        %1814 = vmatprep.subr.mxu0 0.0
        %1815 = vmatpush1.msra.mxu0 %v1782
        %1816 = vmatprep.subr.mxu0 0.0
        %1817 = vmatpush1.msra.mxu0 %v1783
        %1818 = vmatprep.subr.mxu0 0.0
        %1819 = vmatpush1.msra.mxu0 %v1784
        %1820 = vmatprep.subr.mxu0 0.0
        %1821 = vmatpush1.msra.mxu0 %v1785
        %1822 = vmatprep.subr.mxu0 0.0
        %1823 = vmatpush1.msra.mxu0 %v1786
        %1824 = vmatprep.subr.mxu0 0.0
        %1825 = vmatpush1.msra.mxu0 %v1787
        %1826 = vmatprep.subr.mxu0 0.0
        %1827 = vmatpush1.msra.mxu0 %v1788
        %1828 = vmatprep.subr.mxu0 0.0
        %1829 = vmatpush1.msra.mxu0 0.0
        %1830 = vmatprep.subr.mxu0 0.0
        %1831 = vmatpush1.msra.mxu0 0.0
        %1832 = vmatprep.subr.mxu0 0.0
        %1833 = vmatpush1.msra.mxu0 0.0
        %1834 = vmatprep.subr.mxu0 0.0
        %1835 = vmatpush1.msra.mxu0 0.0
        %1836 = vmatprep.subr.mxu0 0.0
        %1837 = vmatpush1.msra.mxu0 0.0
        %1838 = vmatprep.subr.mxu0 0.0
        %1839 = vmatpush1.msra.mxu0 0.0
        %1840 = vmatprep.subr.mxu0 0.0
        %1841 = vmatpush1.msra.mxu0 0.0
        %1842 = vmatprep.subr.mxu0 0.0
        %1843 = vmatpush1.msra.mxu0 0.0
        %1844 = vmatprep.subr.mxu0 0.0
        %1845 = vmatpush1.msra.mxu0 0.0
        %1846 = vmatprep.subr.mxu0 0.0
        %1847 = vmatpush1.msra.mxu0 0.0
        %1848 = vmatprep.subr.mxu0 0.0
        %1849 = vmatpush1.msra.mxu0 0.0
        %1850 = vmatprep.subr.mxu0 0.0
        %1851 = vmatpush1.msra.mxu0 0.0
        %1852 = vmatprep.subr.mxu0 0.0
        %1853 = vmatpush1.msra.mxu0 0.0
        %1854 = vmatprep.subr.mxu0 0.0
        %1855 = vmatpush1.msra.mxu0 0.0
        %1856 = vmatprep.subr.mxu0 0.0
        %1857 = vmatpush1.msra.mxu0 0.0
        %1858 = vmatprep.subr.mxu0 0.0
        %1859 = vmatpush1.msra.mxu0 0.0
        %1860 = vmatprep.mubr.f32.mxu0 0.0
        %1861 = vmatmul.mubr.f32.gmra.mrb[0].mxu0 %v1772
        %v1862 = vpop.f32.mrb[0].mxu0
        %v1863 = vadd.f32 %v1794, %v1862
        %v1864 = vpop.f32.mrb[0].mxu0
        %1865 = vdwg.mxu0
        %v1866 = vadd.f32 %v1687, %v1863
        %v1867 = vld [vmem:[%s12] sm:$0x1]
        %v1868 = vld [vmem:[%s13] sm:$0x1]
        %v1869 = vsel %vm814, %v1866, 0.0
        %1870 = vadd.xlane.f32.xlu0 %v1869
        %v1871 = vpop.xlane.xlu0 %1870
        %v1872 = vmul.f32 %v1871, %v1663
        %v1873 = vsub.f32 %v1866, %v1872
        %v1874 = vmul.f32 %v1873, %v1873
        %v1875 = vsel %vm814, %v1874, 0.0
        %1876 = vadd.xlane.f32.xlu0 %v1875
        %v1877 = vpop.xlane.xlu0 %1876
        %v1878 = vmul.f32 %v1877, %v1663
        %v1879 = vadd.f32 %v1878, 1e-05
        %v1880 = vrsqrt.pop %v1879
        %v1881 = vmul.f32 %v1873, %v1880
        %v1883 = vlaneseq
        %v1884 = vshrl.u32 %v1883, 7
        %v1885 = vsub.s32 0, %v1884
        %v1886 = vrot.slane %v1867, %v1885
        %v1888 = vmul.f32 %v1881, %v1886
        %v1890 = vlaneseq
        %v1891 = vshrl.u32 %v1890, 7
        %v1892 = vsub.s32 0, %v1891
        %v1893 = vrot.slane %v1868, %v1892
        %v1895 = vadd.f32 %v1888, %v1893
        %s1896 = scalar_lea.vmem %s2, 32
        %v1897 = vld [vmem:[%s1896] sm:$0xff]
        %v1898 = vld [vmem:[%s1896 + $0x8] sm:$0xff]
        %v1899 = vld [vmem:[%s1896 + $0x10] sm:$0xff]
        %v1900 = vld [vmem:[%s1896 + $0x18] sm:$0xff]
        %s1901 = scalar_lea.vmem %s3, 1
        %v1902 = vld [vmem:[%s1901] sm:$0x1]
        %v1904 = vlaneseq
        %v1905 = vshrl.u32 %v1904, 7
        %v1906 = vsub.s32 0, %v1905
        %v1907 = vrot.slane %v1902, %v1906
        %v1910 = vsel %vm814, %v1895, 0
        %1912 = vmatprep.subr.mxu0 0.0
        %1913 = vmatpush1.msra.mxu0 %v1897
        %1914 = vmatprep.subr.mxu0 0.0
        %1915 = vmatpush1.msra.mxu0 %v1898
        %1916 = vmatprep.subr.mxu0 0.0
        %1917 = vmatpush1.msra.mxu0 %v1899
        %1918 = vmatprep.subr.mxu0 0.0
        %1919 = vmatpush1.msra.mxu0 %v1900
        %1920 = vmatprep.subr.mxu0 0.0
        %1921 = vmatpush1.msra.mxu0 0.0
        %1922 = vmatprep.subr.mxu0 0.0
        %1923 = vmatpush1.msra.mxu0 0.0
        %1924 = vmatprep.subr.mxu0 0.0
        %1925 = vmatpush1.msra.mxu0 0.0
        %1926 = vmatprep.subr.mxu0 0.0
        %1927 = vmatpush1.msra.mxu0 0.0
        %1928 = vmatprep.subr.mxu0 0.0
        %1929 = vmatpush1.msra.mxu0 0.0
        %1930 = vmatprep.subr.mxu0 0.0
        %1931 = vmatpush1.msra.mxu0 0.0
        %1932 = vmatprep.subr.mxu0 0.0
        %1933 = vmatpush1.msra.mxu0 0.0
        %1934 = vmatprep.subr.mxu0 0.0
        %1935 = vmatpush1.msra.mxu0 0.0
        %1936 = vmatprep.subr.mxu0 0.0
        %1937 = vmatpush1.msra.mxu0 0.0
        %1938 = vmatprep.subr.mxu0 0.0
        %1939 = vmatpush1.msra.mxu0 0.0
        %1940 = vmatprep.subr.mxu0 0.0
        %1941 = vmatpush1.msra.mxu0 0.0
        %1942 = vmatprep.subr.mxu0 0.0
        %1943 = vmatpush1.msra.mxu0 0.0
        %1944 = vmatprep.subr.mxu0 0.0
        %1945 = vmatpush1.msra.mxu0 0.0
        %1946 = vmatprep.subr.mxu0 0.0
        %1947 = vmatpush1.msra.mxu0 0.0
        %1948 = vmatprep.subr.mxu0 0.0
        %1949 = vmatpush1.msra.mxu0 0.0
        %1950 = vmatprep.subr.mxu0 0.0
        %1951 = vmatpush1.msra.mxu0 0.0
        %1952 = vmatprep.subr.mxu0 0.0
        %1953 = vmatpush1.msra.mxu0 0.0
        %1954 = vmatprep.subr.mxu0 0.0
        %1955 = vmatpush1.msra.mxu0 0.0
        %1956 = vmatprep.subr.mxu0 0.0
        %1957 = vmatpush1.msra.mxu0 0.0
        %1958 = vmatprep.subr.mxu0 0.0
        %1959 = vmatpush1.msra.mxu0 0.0
        %1960 = vmatprep.subr.mxu0 0.0
        %1961 = vmatpush1.msra.mxu0 0.0
        %1962 = vmatprep.subr.mxu0 0.0
        %1963 = vmatpush1.msra.mxu0 0.0
        %1964 = vmatprep.subr.mxu0 0.0
        %1965 = vmatpush1.msra.mxu0 0.0
        %1966 = vmatprep.subr.mxu0 0.0
        %1967 = vmatpush1.msra.mxu0 0.0
        %1968 = vmatprep.subr.mxu0 0.0
        %1969 = vmatpush1.msra.mxu0 0.0
        %1970 = vmatprep.subr.mxu0 0.0
        %1971 = vmatpush1.msra.mxu0 0.0
        %1972 = vmatprep.subr.mxu0 0.0
        %1973 = vmatpush1.msra.mxu0 0.0
        %1974 = vmatprep.subr.mxu0 0.0
        %1975 = vmatpush1.msra.mxu0 0.0
        %1976 = vmatprep.mubr.f32.mxu0 0.0
        %1977 = vmatmul.mubr.f32.gmra.mrb[0].mxu0 %v1910
        %v1978 = vpop.f32.mrb[0].mxu0
        %v1979 = vadd.f32 %v1907, %v1978
        %v1980 = vpop.f32.mrb[0].mxu0
        %1981 = vdwg.mxu0
        %v1982 = vmul.f32 %v1979, 0.35355338
        %1984 = vrot.lane.b32.xlu0 %v1979, 96
        %v1985 = vpop.permute.xlu0 %1984
        %v1987 = vsel %vm898, %v1982, 0
        %v1989 = vsel %vm898, %v1985, 0
        %1991 = vmatprep.subr.mxu0 0.0
        %1992 = vmatpush1.xpose.msra.mxu0 %v1989
        %1993 = vmatprep.subr.mxu0 0.0
        %1994 = vmatpush1.xpose.msra.mxu0 0.0
        %1995 = vmatprep.subr.mxu0 0.0
        %1996 = vmatpush1.xpose.msra.mxu0 0.0
        %1997 = vmatprep.subr.mxu0 0.0
        %1998 = vmatpush1.xpose.msra.mxu0 0.0
        %1999 = vmatprep.subr.mxu0 0.0
        %2000 = vmatpush1.xpose.msra.mxu0 0.0
        %2001 = vmatprep.subr.mxu0 0.0
        %2002 = vmatpush1.xpose.msra.mxu0 0.0
        %2003 = vmatprep.subr.mxu0 0.0
        %2004 = vmatpush1.xpose.msra.mxu0 0.0
        %2005 = vmatprep.subr.mxu0 0.0
        %2006 = vmatpush1.xpose.msra.mxu0 0.0
        %2007 = vmatprep.subr.mxu0 0.0
        %2008 = vmatpush1.xpose.msra.mxu0 0.0
        %2009 = vmatprep.subr.mxu0 0.0
        %2010 = vmatpush1.xpose.msra.mxu0 0.0
        %2011 = vmatprep.subr.mxu0 0.0
        %2012 = vmatpush1.xpose.msra.mxu0 0.0
        %2013 = vmatprep.subr.mxu0 0.0
        %2014 = vmatpush1.xpose.msra.mxu0 0.0
        %2015 = vmatprep.subr.mxu0 0.0
        %2016 = vmatpush1.xpose.msra.mxu0 0.0
        %2017 = vmatprep.subr.mxu0 0.0
        %2018 = vmatpush1.xpose.msra.mxu0 0.0
        %2019 = vmatprep.subr.mxu0 0.0
        %2020 = vmatpush1.xpose.msra.mxu0 0.0
        %2021 = vmatprep.subr.mxu0 0.0
        %2022 = vmatpush1.xpose.msra.mxu0 0.0
        %2023 = vmatprep.subr.mxu0 0.0
        %2024 = vmatpush1.xpose.msra.mxu0 0.0
        %2025 = vmatprep.subr.mxu0 0.0
        %2026 = vmatpush1.xpose.msra.mxu0 0.0
        %2027 = vmatprep.subr.mxu0 0.0
        %2028 = vmatpush1.xpose.msra.mxu0 0.0
        %2029 = vmatprep.subr.mxu0 0.0
        %2030 = vmatpush1.xpose.msra.mxu0 0.0
        %2031 = vmatprep.subr.mxu0 0.0
        %2032 = vmatpush1.xpose.msra.mxu0 0.0
        %2033 = vmatprep.subr.mxu0 0.0
        %2034 = vmatpush1.xpose.msra.mxu0 0.0
        %2035 = vmatprep.subr.mxu0 0.0
        %2036 = vmatpush1.xpose.msra.mxu0 0.0
        %2037 = vmatprep.subr.mxu0 0.0
        %2038 = vmatpush1.xpose.msra.mxu0 0.0
        %2039 = vmatprep.subr.mxu0 0.0
        %2040 = vmatpush1.xpose.msra.mxu0 0.0
        %2041 = vmatprep.subr.mxu0 0.0
        %2042 = vmatpush1.xpose.msra.mxu0 0.0
        %2043 = vmatprep.subr.mxu0 0.0
        %2044 = vmatpush1.xpose.msra.mxu0 0.0
        %2045 = vmatprep.subr.mxu0 0.0
        %2046 = vmatpush1.xpose.msra.mxu0 0.0
        %2047 = vmatprep.subr.mxu0 0.0
        %2048 = vmatpush1.xpose.msra.mxu0 0.0
        %2049 = vmatprep.subr.mxu0 0.0
        %2050 = vmatpush1.xpose.msra.mxu0 0.0
        %2051 = vmatprep.subr.mxu0 0.0
        %2052 = vmatpush1.xpose.msra.mxu0 0.0
        %2053 = vmatprep.subr.mxu0 0.0
        %2054 = vmatpush1.xpose.msra.mxu0 0.0
        %2055 = vmatprep.mubr.f32.mxu0 0.0
        %2056 = vmatmul.mubr.f32.gmra.mrb[0].mxu0 %v1987
        %v2057 = vpop.f32.mrb[0].mxu0
        %v2058 = vadd.f32 %v893, %v2057
        %v2059 = vpop.f32.mrb[0].mxu0
        %2060 = vdwg.mxu0
        %v2061 = vsel %vm898, %v2058, -inf
        %2062 = vmax.xlane.f32.xlu0 %v2061
        %v2063 = vpop.xlane.xlu0 %2062
        %v2064 = vsub.f32 %v2058, %v2063
        %v2065 = vmul.f32 %v2064, 1.442695
        %v2066 = vpow.pop %v2065
        %v2067 = vsel %vm898, %v2066, 0.0
        %2068 = vadd.xlane.f32.xlu0 %v2067
        %v2069 = vpop.xlane.xlu0 %2068
        %v2070 = vrcp.pop %v2069
        %v2071 = vmul.f32 %v2066, %v2070
        %2072 = vrot.lane.b32.xlu0 %v1979, 64
        %v2073 = vpop.permute.xlu0 %2072
        %v2076 = vsel %vm898, %v2071, 0
        %2078 = vmatprep.subr.mxu0 0.0
        %2079 = vmatpush1.msra.mxu0 %v2073
        %2080 = vmatprep.subr.mxu0 0.0
        %2081 = vmatpush1.msra.mxu0 0.0
        %2082 = vmatprep.subr.mxu0 0.0
        %2083 = vmatpush1.msra.mxu0 0.0
        %2084 = vmatprep.subr.mxu0 0.0
        %2085 = vmatpush1.msra.mxu0 0.0
        %2086 = vmatprep.subr.mxu0 0.0
        %2087 = vmatpush1.msra.mxu0 0.0
        %2088 = vmatprep.subr.mxu0 0.0
        %2089 = vmatpush1.msra.mxu0 0.0
        %2090 = vmatprep.subr.mxu0 0.0
        %2091 = vmatpush1.msra.mxu0 0.0
        %2092 = vmatprep.subr.mxu0 0.0
        %2093 = vmatpush1.msra.mxu0 0.0
        %2094 = vmatprep.subr.mxu0 0.0
        %2095 = vmatpush1.msra.mxu0 0.0
        %2096 = vmatprep.subr.mxu0 0.0
        %2097 = vmatpush1.msra.mxu0 0.0
        %2098 = vmatprep.subr.mxu0 0.0
        %2099 = vmatpush1.msra.mxu0 0.0
        %2100 = vmatprep.subr.mxu0 0.0
        %2101 = vmatpush1.msra.mxu0 0.0
        %2102 = vmatprep.subr.mxu0 0.0
        %2103 = vmatpush1.msra.mxu0 0.0
        %2104 = vmatprep.subr.mxu0 0.0
        %2105 = vmatpush1.msra.mxu0 0.0
        %2106 = vmatprep.subr.mxu0 0.0
        %2107 = vmatpush1.msra.mxu0 0.0
        %2108 = vmatprep.subr.mxu0 0.0
        %2109 = vmatpush1.msra.mxu0 0.0
        %2110 = vmatprep.subr.mxu0 0.0
        %2111 = vmatpush1.msra.mxu0 0.0
        %2112 = vmatprep.subr.mxu0 0.0
        %2113 = vmatpush1.msra.mxu0 0.0
        %2114 = vmatprep.subr.mxu0 0.0
        %2115 = vmatpush1.msra.mxu0 0.0
        %2116 = vmatprep.subr.mxu0 0.0
        %2117 = vmatpush1.msra.mxu0 0.0
        %2118 = vmatprep.subr.mxu0 0.0
        %2119 = vmatpush1.msra.mxu0 0.0
        %2120 = vmatprep.subr.mxu0 0.0
        %2121 = vmatpush1.msra.mxu0 0.0
        %2122 = vmatprep.subr.mxu0 0.0
        %2123 = vmatpush1.msra.mxu0 0.0
        %2124 = vmatprep.subr.mxu0 0.0
        %2125 = vmatpush1.msra.mxu0 0.0
        %2126 = vmatprep.subr.mxu0 0.0
        %2127 = vmatpush1.msra.mxu0 0.0
        %2128 = vmatprep.subr.mxu0 0.0
        %2129 = vmatpush1.msra.mxu0 0.0
        %2130 = vmatprep.subr.mxu0 0.0
        %2131 = vmatpush1.msra.mxu0 0.0
        %2132 = vmatprep.subr.mxu0 0.0
        %2133 = vmatpush1.msra.mxu0 0.0
        %2134 = vmatprep.subr.mxu0 0.0
        %2135 = vmatpush1.msra.mxu0 0.0
        %2136 = vmatprep.subr.mxu0 0.0
        %2137 = vmatpush1.msra.mxu0 0.0
        %2138 = vmatprep.subr.mxu0 0.0
        %2139 = vmatpush1.msra.mxu0 0.0
        %2140 = vmatprep.subr.mxu0 0.0
        %2141 = vmatpush1.msra.mxu0 0.0
        %2142 = vmatprep.mubr.f32.mxu0 0.0
        %2143 = vmatmul.mubr.f32.gmra.mrb[0].mxu0 %v2076
        %v2144 = vpop.f32.mrb[0].mxu0
        %v2145 = vadd.f32 0.0, %v2144
        %v2146 = vpop.f32.mrb[0].mxu0
        %2147 = vdwg.mxu0
        %2148 = vrot.lane.b32.xlu0 %v1982, 120
        %v2149 = vpop.permute.xlu0 %2148
        %2150 = vrot.lane.b32.xlu0 %v1979, 88
        %v2151 = vpop.permute.xlu0 %2150
        %v2152 = vsel %vm898, %v2149, 0
        %v2154 = vsel %vm898, %v2151, 0
        %2156 = vmatprep.subr.mxu0 0.0
        %2157 = vmatpush1.xpose.msra.mxu0 %v2154
        %2158 = vmatprep.subr.mxu0 0.0
        %2159 = vmatpush1.xpose.msra.mxu0 0.0
        %2160 = vmatprep.subr.mxu0 0.0
        %2161 = vmatpush1.xpose.msra.mxu0 0.0
        %2162 = vmatprep.subr.mxu0 0.0
        %2163 = vmatpush1.xpose.msra.mxu0 0.0
        %2164 = vmatprep.subr.mxu0 0.0
        %2165 = vmatpush1.xpose.msra.mxu0 0.0
        %2166 = vmatprep.subr.mxu0 0.0
        %2167 = vmatpush1.xpose.msra.mxu0 0.0
        %2168 = vmatprep.subr.mxu0 0.0
        %2169 = vmatpush1.xpose.msra.mxu0 0.0
        %2170 = vmatprep.subr.mxu0 0.0
        %2171 = vmatpush1.xpose.msra.mxu0 0.0
        %2172 = vmatprep.subr.mxu0 0.0
        %2173 = vmatpush1.xpose.msra.mxu0 0.0
        %2174 = vmatprep.subr.mxu0 0.0
        %2175 = vmatpush1.xpose.msra.mxu0 0.0
        %2176 = vmatprep.subr.mxu0 0.0
        %2177 = vmatpush1.xpose.msra.mxu0 0.0
        %2178 = vmatprep.subr.mxu0 0.0
        %2179 = vmatpush1.xpose.msra.mxu0 0.0
        %2180 = vmatprep.subr.mxu0 0.0
        %2181 = vmatpush1.xpose.msra.mxu0 0.0
        %2182 = vmatprep.subr.mxu0 0.0
        %2183 = vmatpush1.xpose.msra.mxu0 0.0
        %2184 = vmatprep.subr.mxu0 0.0
        %2185 = vmatpush1.xpose.msra.mxu0 0.0
        %2186 = vmatprep.subr.mxu0 0.0
        %2187 = vmatpush1.xpose.msra.mxu0 0.0
        %2188 = vmatprep.subr.mxu0 0.0
        %2189 = vmatpush1.xpose.msra.mxu0 0.0
        %2190 = vmatprep.subr.mxu0 0.0
        %2191 = vmatpush1.xpose.msra.mxu0 0.0
        %2192 = vmatprep.subr.mxu0 0.0
        %2193 = vmatpush1.xpose.msra.mxu0 0.0
        %2194 = vmatprep.subr.mxu0 0.0
        %2195 = vmatpush1.xpose.msra.mxu0 0.0
        %2196 = vmatprep.subr.mxu0 0.0
        %2197 = vmatpush1.xpose.msra.mxu0 0.0
        %2198 = vmatprep.subr.mxu0 0.0
        %2199 = vmatpush1.xpose.msra.mxu0 0.0
        %2200 = vmatprep.subr.mxu0 0.0
        %2201 = vmatpush1.xpose.msra.mxu0 0.0
        %2202 = vmatprep.subr.mxu0 0.0
        %2203 = vmatpush1.xpose.msra.mxu0 0.0
        %2204 = vmatprep.subr.mxu0 0.0
        %2205 = vmatpush1.xpose.msra.mxu0 0.0
        %2206 = vmatprep.subr.mxu0 0.0
        %2207 = vmatpush1.xpose.msra.mxu0 0.0
        %2208 = vmatprep.subr.mxu0 0.0
        %2209 = vmatpush1.xpose.msra.mxu0 0.0
        %2210 = vmatprep.subr.mxu0 0.0
        %2211 = vmatpush1.xpose.msra.mxu0 0.0
        %2212 = vmatprep.subr.mxu0 0.0
        %2213 = vmatpush1.xpose.msra.mxu0 0.0
        %2214 = vmatprep.subr.mxu0 0.0
        %2215 = vmatpush1.xpose.msra.mxu0 0.0
        %2216 = vmatprep.subr.mxu0 0.0
        %2217 = vmatpush1.xpose.msra.mxu0 0.0
        %2218 = vmatprep.subr.mxu0 0.0
        %2219 = vmatpush1.xpose.msra.mxu0 0.0
        %2220 = vmatprep.mubr.f32.mxu0 0.0
        %2221 = vmatmul.mubr.f32.gmra.mrb[0].mxu0 %v2152
        %v2222 = vpop.f32.mrb[0].mxu0
        %v2223 = vadd.f32 %v893, %v2222
        %v2224 = vpop.f32.mrb[0].mxu0
        %2225 = vdwg.mxu0
        %v2226 = vsel %vm898, %v2223, -inf
        %2227 = vmax.xlane.f32.xlu0 %v2226
        %v2228 = vpop.xlane.xlu0 %2227
        %v2229 = vsub.f32 %v2223, %v2228
        %v2230 = vmul.f32 %v2229, 1.442695
        %v2231 = vpow.pop %v2230
        %v2232 = vsel %vm898, %v2231, 0.0
        %2233 = vadd.xlane.f32.xlu0 %v2232
        %v2234 = vpop.xlane.xlu0 %2233
        %v2235 = vrcp.pop %v2234
        %v2236 = vmul.f32 %v2231, %v2235
        %2237 = vrot.lane.b32.xlu0 %v1979, 56
        %v2238 = vpop.permute.xlu0 %2237
        %v2241 = vsel %vm898, %v2236, 0
        %2243 = vmatprep.subr.mxu0 0.0
        %2244 = vmatpush1.msra.mxu0 %v2238
        %2245 = vmatprep.subr.mxu0 0.0
        %2246 = vmatpush1.msra.mxu0 0.0
        %2247 = vmatprep.subr.mxu0 0.0
        %2248 = vmatpush1.msra.mxu0 0.0
        %2249 = vmatprep.subr.mxu0 0.0
        %2250 = vmatpush1.msra.mxu0 0.0
        %2251 = vmatprep.subr.mxu0 0.0
        %2252 = vmatpush1.msra.mxu0 0.0
        %2253 = vmatprep.subr.mxu0 0.0
        %2254 = vmatpush1.msra.mxu0 0.0
        %2255 = vmatprep.subr.mxu0 0.0
        %2256 = vmatpush1.msra.mxu0 0.0
        %2257 = vmatprep.subr.mxu0 0.0
        %2258 = vmatpush1.msra.mxu0 0.0
        %2259 = vmatprep.subr.mxu0 0.0
        %2260 = vmatpush1.msra.mxu0 0.0
        %2261 = vmatprep.subr.mxu0 0.0
        %2262 = vmatpush1.msra.mxu0 0.0
        %2263 = vmatprep.subr.mxu0 0.0
        %2264 = vmatpush1.msra.mxu0 0.0
        %2265 = vmatprep.subr.mxu0 0.0
        %2266 = vmatpush1.msra.mxu0 0.0
        %2267 = vmatprep.subr.mxu0 0.0
        %2268 = vmatpush1.msra.mxu0 0.0
        %2269 = vmatprep.subr.mxu0 0.0
        %2270 = vmatpush1.msra.mxu0 0.0
        %2271 = vmatprep.subr.mxu0 0.0
        %2272 = vmatpush1.msra.mxu0 0.0
        %2273 = vmatprep.subr.mxu0 0.0
        %2274 = vmatpush1.msra.mxu0 0.0
        %2275 = vmatprep.subr.mxu0 0.0
        %2276 = vmatpush1.msra.mxu0 0.0
        %2277 = vmatprep.subr.mxu0 0.0
        %2278 = vmatpush1.msra.mxu0 0.0
        %2279 = vmatprep.subr.mxu0 0.0
        %2280 = vmatpush1.msra.mxu0 0.0
        %2281 = vmatprep.subr.mxu0 0.0
        %2282 = vmatpush1.msra.mxu0 0.0
        %2283 = vmatprep.subr.mxu0 0.0
        %2284 = vmatpush1.msra.mxu0 0.0
        %2285 = vmatprep.subr.mxu0 0.0
        %2286 = vmatpush1.msra.mxu0 0.0
        %2287 = vmatprep.subr.mxu0 0.0
        %2288 = vmatpush1.msra.mxu0 0.0
        %2289 = vmatprep.subr.mxu0 0.0
        %2290 = vmatpush1.msra.mxu0 0.0
        %2291 = vmatprep.subr.mxu0 0.0
        %2292 = vmatpush1.msra.mxu0 0.0
        %2293 = vmatprep.subr.mxu0 0.0
        %2294 = vmatpush1.msra.mxu0 0.0
        %2295 = vmatprep.subr.mxu0 0.0
        %2296 = vmatpush1.msra.mxu0 0.0
        %2297 = vmatprep.subr.mxu0 0.0
        %2298 = vmatpush1.msra.mxu0 0.0
        %2299 = vmatprep.subr.mxu0 0.0
        %2300 = vmatpush1.msra.mxu0 0.0
        %2301 = vmatprep.subr.mxu0 0.0
        %2302 = vmatpush1.msra.mxu0 0.0
        %2303 = vmatprep.subr.mxu0 0.0
        %2304 = vmatpush1.msra.mxu0 0.0
        %2305 = vmatprep.subr.mxu0 0.0
        %2306 = vmatpush1.msra.mxu0 0.0
        %2307 = vmatprep.mubr.f32.mxu0 0.0
        %2308 = vmatmul.mubr.f32.gmra.mrb[0].mxu0 %v2241
        %v2309 = vpop.f32.mrb[0].mxu0
        %v2310 = vadd.f32 0.0, %v2309
        %v2311 = vpop.f32.mrb[0].mxu0
        %2312 = vdwg.mxu0
        %2313 = vrot.lane.b32.xlu0 %v1982, 112
        %v2314 = vpop.permute.xlu0 %2313
        %2315 = vrot.lane.b32.xlu0 %v1979, 80
        %v2316 = vpop.permute.xlu0 %2315
        %v2317 = vsel %vm898, %v2314, 0
        %v2319 = vsel %vm898, %v2316, 0
        %2321 = vmatprep.subr.mxu0 0.0
        %2322 = vmatpush1.xpose.msra.mxu0 %v2319
        %2323 = vmatprep.subr.mxu0 0.0
        %2324 = vmatpush1.xpose.msra.mxu0 0.0
        %2325 = vmatprep.subr.mxu0 0.0
        %2326 = vmatpush1.xpose.msra.mxu0 0.0
        %2327 = vmatprep.subr.mxu0 0.0
        %2328 = vmatpush1.xpose.msra.mxu0 0.0
        %2329 = vmatprep.subr.mxu0 0.0
        %2330 = vmatpush1.xpose.msra.mxu0 0.0
        %2331 = vmatprep.subr.mxu0 0.0
        %2332 = vmatpush1.xpose.msra.mxu0 0.0
        %2333 = vmatprep.subr.mxu0 0.0
        %2334 = vmatpush1.xpose.msra.mxu0 0.0
        %2335 = vmatprep.subr.mxu0 0.0
        %2336 = vmatpush1.xpose.msra.mxu0 0.0
        %2337 = vmatprep.subr.mxu0 0.0
        %2338 = vmatpush1.xpose.msra.mxu0 0.0
        %2339 = vmatprep.subr.mxu0 0.0
        %2340 = vmatpush1.xpose.msra.mxu0 0.0
        %2341 = vmatprep.subr.mxu0 0.0
        %2342 = vmatpush1.xpose.msra.mxu0 0.0
        %2343 = vmatprep.subr.mxu0 0.0
        %2344 = vmatpush1.xpose.msra.mxu0 0.0
        %2345 = vmatprep.subr.mxu0 0.0
        %2346 = vmatpush1.xpose.msra.mxu0 0.0
        %2347 = vmatprep.subr.mxu0 0.0
        %2348 = vmatpush1.xpose.msra.mxu0 0.0
        %2349 = vmatprep.subr.mxu0 0.0
        %2350 = vmatpush1.xpose.msra.mxu0 0.0
        %2351 = vmatprep.subr.mxu0 0.0
        %2352 = vmatpush1.xpose.msra.mxu0 0.0
        %2353 = vmatprep.subr.mxu0 0.0
        %2354 = vmatpush1.xpose.msra.mxu0 0.0
        %2355 = vmatprep.subr.mxu0 0.0
        %2356 = vmatpush1.xpose.msra.mxu0 0.0
        %2357 = vmatprep.subr.mxu0 0.0
        %2358 = vmatpush1.xpose.msra.mxu0 0.0
        %2359 = vmatprep.subr.mxu0 0.0
        %2360 = vmatpush1.xpose.msra.mxu0 0.0
        %2361 = vmatprep.subr.mxu0 0.0
        %2362 = vmatpush1.xpose.msra.mxu0 0.0
        %2363 = vmatprep.subr.mxu0 0.0
        %2364 = vmatpush1.xpose.msra.mxu0 0.0
        %2365 = vmatprep.subr.mxu0 0.0
        %2366 = vmatpush1.xpose.msra.mxu0 0.0
        %2367 = vmatprep.subr.mxu0 0.0
        %2368 = vmatpush1.xpose.msra.mxu0 0.0
        %2369 = vmatprep.subr.mxu0 0.0
        %2370 = vmatpush1.xpose.msra.mxu0 0.0
        %2371 = vmatprep.subr.mxu0 0.0
        %2372 = vmatpush1.xpose.msra.mxu0 0.0
        %2373 = vmatprep.subr.mxu0 0.0
        %2374 = vmatpush1.xpose.msra.mxu0 0.0
        %2375 = vmatprep.subr.mxu0 0.0
        %2376 = vmatpush1.xpose.msra.mxu0 0.0
        %2377 = vmatprep.subr.mxu0 0.0
        %2378 = vmatpush1.xpose.msra.mxu0 0.0
        %2379 = vmatprep.subr.mxu0 0.0
        %2380 = vmatpush1.xpose.msra.mxu0 0.0
        %2381 = vmatprep.subr.mxu0 0.0
        %2382 = vmatpush1.xpose.msra.mxu0 0.0
        %2383 = vmatprep.subr.mxu0 0.0
        %2384 = vmatpush1.xpose.msra.mxu0 0.0
        %2385 = vmatprep.mubr.f32.mxu0 0.0
        %2386 = vmatmul.mubr.f32.gmra.mrb[0].mxu0 %v2317
        %v2387 = vpop.f32.mrb[0].mxu0
        %v2388 = vadd.f32 %v893, %v2387
        %v2389 = vpop.f32.mrb[0].mxu0
        %2390 = vdwg.mxu0
        %v2391 = vsel %vm898, %v2388, -inf
        %2392 = vmax.xlane.f32.xlu0 %v2391
        %v2393 = vpop.xlane.xlu0 %2392
        %v2394 = vsub.f32 %v2388, %v2393
        %v2395 = vmul.f32 %v2394, 1.442695
        %v2396 = vpow.pop %v2395
        %v2397 = vsel %vm898, %v2396, 0.0
        %2398 = vadd.xlane.f32.xlu0 %v2397
        %v2399 = vpop.xlane.xlu0 %2398
        %v2400 = vrcp.pop %v2399
        %v2401 = vmul.f32 %v2396, %v2400
        %2402 = vrot.lane.b32.xlu0 %v1979, 48
        %v2403 = vpop.permute.xlu0 %2402
        %v2406 = vsel %vm898, %v2401, 0
        %2408 = vmatprep.subr.mxu0 0.0
        %2409 = vmatpush1.msra.mxu0 %v2403
        %2410 = vmatprep.subr.mxu0 0.0
        %2411 = vmatpush1.msra.mxu0 0.0
        %2412 = vmatprep.subr.mxu0 0.0
        %2413 = vmatpush1.msra.mxu0 0.0
        %2414 = vmatprep.subr.mxu0 0.0
        %2415 = vmatpush1.msra.mxu0 0.0
        %2416 = vmatprep.subr.mxu0 0.0
        %2417 = vmatpush1.msra.mxu0 0.0
        %2418 = vmatprep.subr.mxu0 0.0
        %2419 = vmatpush1.msra.mxu0 0.0
        %2420 = vmatprep.subr.mxu0 0.0
        %2421 = vmatpush1.msra.mxu0 0.0
        %2422 = vmatprep.subr.mxu0 0.0
        %2423 = vmatpush1.msra.mxu0 0.0
        %2424 = vmatprep.subr.mxu0 0.0
        %2425 = vmatpush1.msra.mxu0 0.0
        %2426 = vmatprep.subr.mxu0 0.0
        %2427 = vmatpush1.msra.mxu0 0.0
        %2428 = vmatprep.subr.mxu0 0.0
        %2429 = vmatpush1.msra.mxu0 0.0
        %2430 = vmatprep.subr.mxu0 0.0
        %2431 = vmatpush1.msra.mxu0 0.0
        %2432 = vmatprep.subr.mxu0 0.0
        %2433 = vmatpush1.msra.mxu0 0.0
        %2434 = vmatprep.subr.mxu0 0.0
        %2435 = vmatpush1.msra.mxu0 0.0
        %2436 = vmatprep.subr.mxu0 0.0
        %2437 = vmatpush1.msra.mxu0 0.0
        %2438 = vmatprep.subr.mxu0 0.0
        %2439 = vmatpush1.msra.mxu0 0.0
        %2440 = vmatprep.subr.mxu0 0.0
        %2441 = vmatpush1.msra.mxu0 0.0
        %2442 = vmatprep.subr.mxu0 0.0
        %2443 = vmatpush1.msra.mxu0 0.0
        %2444 = vmatprep.subr.mxu0 0.0
        %2445 = vmatpush1.msra.mxu0 0.0
        %2446 = vmatprep.subr.mxu0 0.0
        %2447 = vmatpush1.msra.mxu0 0.0
        %2448 = vmatprep.subr.mxu0 0.0
        %2449 = vmatpush1.msra.mxu0 0.0
        %2450 = vmatprep.subr.mxu0 0.0
        %2451 = vmatpush1.msra.mxu0 0.0
        %2452 = vmatprep.subr.mxu0 0.0
        %2453 = vmatpush1.msra.mxu0 0.0
        %2454 = vmatprep.subr.mxu0 0.0
        %2455 = vmatpush1.msra.mxu0 0.0
        %2456 = vmatprep.subr.mxu0 0.0
        %2457 = vmatpush1.msra.mxu0 0.0
        %2458 = vmatprep.subr.mxu0 0.0
        %2459 = vmatpush1.msra.mxu0 0.0
        %2460 = vmatprep.subr.mxu0 0.0
        %2461 = vmatpush1.msra.mxu0 0.0
        %2462 = vmatprep.subr.mxu0 0.0
        %2463 = vmatpush1.msra.mxu0 0.0
        %2464 = vmatprep.subr.mxu0 0.0
        %2465 = vmatpush1.msra.mxu0 0.0
        %2466 = vmatprep.subr.mxu0 0.0
        %2467 = vmatpush1.msra.mxu0 0.0
        %2468 = vmatprep.subr.mxu0 0.0
        %2469 = vmatpush1.msra.mxu0 0.0
        %2470 = vmatprep.subr.mxu0 0.0
        %2471 = vmatpush1.msra.mxu0 0.0
        %2472 = vmatprep.mubr.f32.mxu0 0.0
        %2473 = vmatmul.mubr.f32.gmra.mrb[0].mxu0 %v2406
        %v2474 = vpop.f32.mrb[0].mxu0
        %v2475 = vadd.f32 0.0, %v2474
        %v2476 = vpop.f32.mrb[0].mxu0
        %2477 = vdwg.mxu0
        %2478 = vrot.lane.b32.xlu0 %v1982, 104
        %v2479 = vpop.permute.xlu0 %2478
        %2480 = vrot.lane.b32.xlu0 %v1979, 72
        %v2481 = vpop.permute.xlu0 %2480
        %v2482 = vsel %vm898, %v2479, 0
        %v2484 = vsel %vm898, %v2481, 0
        %2486 = vmatprep.subr.mxu0 0.0
        %2487 = vmatpush1.xpose.msra.mxu0 %v2484
        %2488 = vmatprep.subr.mxu0 0.0
        %2489 = vmatpush1.xpose.msra.mxu0 0.0
        %2490 = vmatprep.subr.mxu0 0.0
        %2491 = vmatpush1.xpose.msra.mxu0 0.0
        %2492 = vmatprep.subr.mxu0 0.0
        %2493 = vmatpush1.xpose.msra.mxu0 0.0
        %2494 = vmatprep.subr.mxu0 0.0
        %2495 = vmatpush1.xpose.msra.mxu0 0.0
        %2496 = vmatprep.subr.mxu0 0.0
        %2497 = vmatpush1.xpose.msra.mxu0 0.0
        %2498 = vmatprep.subr.mxu0 0.0
        %2499 = vmatpush1.xpose.msra.mxu0 0.0
        %2500 = vmatprep.subr.mxu0 0.0
        %2501 = vmatpush1.xpose.msra.mxu0 0.0
        %2502 = vmatprep.subr.mxu0 0.0
        %2503 = vmatpush1.xpose.msra.mxu0 0.0
        %2504 = vmatprep.subr.mxu0 0.0
        %2505 = vmatpush1.xpose.msra.mxu0 0.0
        %2506 = vmatprep.subr.mxu0 0.0
        %2507 = vmatpush1.xpose.msra.mxu0 0.0
        %2508 = vmatprep.subr.mxu0 0.0
        %2509 = vmatpush1.xpose.msra.mxu0 0.0
        %2510 = vmatprep.subr.mxu0 0.0
        %2511 = vmatpush1.xpose.msra.mxu0 0.0
        %2512 = vmatprep.subr.mxu0 0.0
        %2513 = vmatpush1.xpose.msra.mxu0 0.0
        %2514 = vmatprep.subr.mxu0 0.0
        %2515 = vmatpush1.xpose.msra.mxu0 0.0
        %2516 = vmatprep.subr.mxu0 0.0
        %2517 = vmatpush1.xpose.msra.mxu0 0.0
        %2518 = vmatprep.subr.mxu0 0.0
        %2519 = vmatpush1.xpose.msra.mxu0 0.0
        %2520 = vmatprep.subr.mxu0 0.0
        %2521 = vmatpush1.xpose.msra.mxu0 0.0
        %2522 = vmatprep.subr.mxu0 0.0
        %2523 = vmatpush1.xpose.msra.mxu0 0.0
        %2524 = vmatprep.subr.mxu0 0.0
        %2525 = vmatpush1.xpose.msra.mxu0 0.0
        %2526 = vmatprep.subr.mxu0 0.0
        %2527 = vmatpush1.xpose.msra.mxu0 0.0
        %2528 = vmatprep.subr.mxu0 0.0
        %2529 = vmatpush1.xpose.msra.mxu0 0.0
        %2530 = vmatprep.subr.mxu0 0.0
        %2531 = vmatpush1.xpose.msra.mxu0 0.0
        %2532 = vmatprep.subr.mxu0 0.0
        %2533 = vmatpush1.xpose.msra.mxu0 0.0
        %2534 = vmatprep.subr.mxu0 0.0
        %2535 = vmatpush1.xpose.msra.mxu0 0.0
        %2536 = vmatprep.subr.mxu0 0.0
        %2537 = vmatpush1.xpose.msra.mxu0 0.0
        %2538 = vmatprep.subr.mxu0 0.0
        %2539 = vmatpush1.xpose.msra.mxu0 0.0
        %2540 = vmatprep.subr.mxu0 0.0
        %2541 = vmatpush1.xpose.msra.mxu0 0.0
        %2542 = vmatprep.subr.mxu0 0.0
        %2543 = vmatpush1.xpose.msra.mxu0 0.0
        %2544 = vmatprep.subr.mxu0 0.0
        %2545 = vmatpush1.xpose.msra.mxu0 0.0
        %2546 = vmatprep.subr.mxu0 0.0
        %2547 = vmatpush1.xpose.msra.mxu0 0.0
        %2548 = vmatprep.subr.mxu0 0.0
        %2549 = vmatpush1.xpose.msra.mxu0 0.0
        %2550 = vmatprep.mubr.f32.mxu0 0.0
        %2551 = vmatmul.mubr.f32.gmra.mrb[0].mxu0 %v2482
        %v2552 = vpop.f32.mrb[0].mxu0
        %v2553 = vadd.f32 %v893, %v2552
        %v2554 = vpop.f32.mrb[0].mxu0
        %2555 = vdwg.mxu0
        %v2556 = vsel %vm898, %v2553, -inf
        %2557 = vmax.xlane.f32.xlu0 %v2556
        %v2558 = vpop.xlane.xlu0 %2557
        %v2559 = vsub.f32 %v2553, %v2558
        %v2560 = vmul.f32 %v2559, 1.442695
        %v2561 = vpow.pop %v2560
        %v2562 = vsel %vm898, %v2561, 0.0
        %2563 = vadd.xlane.f32.xlu0 %v2562
        %v2564 = vpop.xlane.xlu0 %2563
        %v2565 = vrcp.pop %v2564
        %v2566 = vmul.f32 %v2561, %v2565
        %2567 = vrot.lane.b32.xlu0 %v1979, 40
        %v2568 = vpop.permute.xlu0 %2567
        %v2571 = vsel %vm898, %v2566, 0
        %2573 = vmatprep.subr.mxu0 0.0
        %2574 = vmatpush1.msra.mxu0 %v2568
        %2575 = vmatprep.subr.mxu0 0.0
        %2576 = vmatpush1.msra.mxu0 0.0
        %2577 = vmatprep.subr.mxu0 0.0
        %2578 = vmatpush1.msra.mxu0 0.0
        %2579 = vmatprep.subr.mxu0 0.0
        %2580 = vmatpush1.msra.mxu0 0.0
        %2581 = vmatprep.subr.mxu0 0.0
        %2582 = vmatpush1.msra.mxu0 0.0
        %2583 = vmatprep.subr.mxu0 0.0
        %2584 = vmatpush1.msra.mxu0 0.0
        %2585 = vmatprep.subr.mxu0 0.0
        %2586 = vmatpush1.msra.mxu0 0.0
        %2587 = vmatprep.subr.mxu0 0.0
        %2588 = vmatpush1.msra.mxu0 0.0
        %2589 = vmatprep.subr.mxu0 0.0
        %2590 = vmatpush1.msra.mxu0 0.0
        %2591 = vmatprep.subr.mxu0 0.0
        %2592 = vmatpush1.msra.mxu0 0.0
        %2593 = vmatprep.subr.mxu0 0.0
        %2594 = vmatpush1.msra.mxu0 0.0
        %2595 = vmatprep.subr.mxu0 0.0
        %2596 = vmatpush1.msra.mxu0 0.0
        %2597 = vmatprep.subr.mxu0 0.0
        %2598 = vmatpush1.msra.mxu0 0.0
        %2599 = vmatprep.subr.mxu0 0.0
        %2600 = vmatpush1.msra.mxu0 0.0
        %2601 = vmatprep.subr.mxu0 0.0
        %2602 = vmatpush1.msra.mxu0 0.0
        %2603 = vmatprep.subr.mxu0 0.0
        %2604 = vmatpush1.msra.mxu0 0.0
        %2605 = vmatprep.subr.mxu0 0.0
        %2606 = vmatpush1.msra.mxu0 0.0
        %2607 = vmatprep.subr.mxu0 0.0
        %2608 = vmatpush1.msra.mxu0 0.0
        %2609 = vmatprep.subr.mxu0 0.0
        %2610 = vmatpush1.msra.mxu0 0.0
        %2611 = vmatprep.subr.mxu0 0.0
        %2612 = vmatpush1.msra.mxu0 0.0
        %2613 = vmatprep.subr.mxu0 0.0
        %2614 = vmatpush1.msra.mxu0 0.0
        %2615 = vmatprep.subr.mxu0 0.0
        %2616 = vmatpush1.msra.mxu0 0.0
        %2617 = vmatprep.subr.mxu0 0.0
        %2618 = vmatpush1.msra.mxu0 0.0
        %2619 = vmatprep.subr.mxu0 0.0
        %2620 = vmatpush1.msra.mxu0 0.0
        %2621 = vmatprep.subr.mxu0 0.0
        %2622 = vmatpush1.msra.mxu0 0.0
        %2623 = vmatprep.subr.mxu0 0.0
        %2624 = vmatpush1.msra.mxu0 0.0
        %2625 = vmatprep.subr.mxu0 0.0
        %2626 = vmatpush1.msra.mxu0 0.0
        %2627 = vmatprep.subr.mxu0 0.0
        %2628 = vmatpush1.msra.mxu0 0.0
        %2629 = vmatprep.subr.mxu0 0.0
        %2630 = vmatpush1.msra.mxu0 0.0
        %2631 = vmatprep.subr.mxu0 0.0
        %2632 = vmatpush1.msra.mxu0 0.0
        %2633 = vmatprep.subr.mxu0 0.0
        %2634 = vmatpush1.msra.mxu0 0.0
        %2635 = vmatprep.subr.mxu0 0.0
        %2636 = vmatpush1.msra.mxu0 0.0
        %2637 = vmatprep.mubr.f32.mxu0 0.0
        %2638 = vmatmul.mubr.f32.gmra.mrb[0].mxu0 %v2571
        %v2639 = vpop.f32.mrb[0].mxu0
        %v2640 = vadd.f32 0.0, %v2639
        %v2641 = vpop.f32.mrb[0].mxu0
        %2642 = vdwg.mxu0
        %2644 = vrot.lane.b32.xlu0 %v2310, 8
        %v2645 = vpop.permute.xlu0 %2644
        %2648 = vrot.lane.b32.xlu0 %v2475, 16
        %v2649 = vpop.permute.xlu0 %2648
        %2652 = vrot.lane.b32.xlu0 %v2640, 24
        %v2653 = vpop.permute.xlu0 %2652
        %v2655 = vsel %vm898, %v2145, %v2645
        %v2656 = vsel %vm1569, %v2655, %v2649
        %v2657 = vsel %vm1571, %v2656, %v2653
        %s2658 = scalar_lea.vmem %s4, 32
        %v2659 = vld [vmem:[%s2658] sm:$0xff]
        %v2660 = vld [vmem:[%s2658 + $0x8] sm:$0xff]
        %v2661 = vld [vmem:[%s2658 + $0x10] sm:$0xff]
        %v2662 = vld [vmem:[%s2658 + $0x18] sm:$0xff]
        %s2663 = scalar_lea.vmem %s5, 1
        %v2664 = vld [vmem:[%s2663] sm:$0x1]
        %v2666 = vlaneseq
        %v2667 = vshrl.u32 %v2666, 7
        %v2668 = vsub.s32 0, %v2667
        %v2669 = vrot.slane %v2664, %v2668
        %v2672 = vsel %vm814, %v2657, 0
        %2674 = vmatprep.subr.mxu0 0.0
        %2675 = vmatpush1.msra.mxu0 %v2659
        %2676 = vmatprep.subr.mxu0 0.0
        %2677 = vmatpush1.msra.mxu0 %v2660
        %2678 = vmatprep.subr.mxu0 0.0
        %2679 = vmatpush1.msra.mxu0 %v2661
        %2680 = vmatprep.subr.mxu0 0.0
        %2681 = vmatpush1.msra.mxu0 %v2662
        %2682 = vmatprep.subr.mxu0 0.0
        %2683 = vmatpush1.msra.mxu0 0.0
        %2684 = vmatprep.subr.mxu0 0.0
        %2685 = vmatpush1.msra.mxu0 0.0
        %2686 = vmatprep.subr.mxu0 0.0
        %2687 = vmatpush1.msra.mxu0 0.0
        %2688 = vmatprep.subr.mxu0 0.0
        %2689 = vmatpush1.msra.mxu0 0.0
        %2690 = vmatprep.subr.mxu0 0.0
        %2691 = vmatpush1.msra.mxu0 0.0
        %2692 = vmatprep.subr.mxu0 0.0
        %2693 = vmatpush1.msra.mxu0 0.0
        %2694 = vmatprep.subr.mxu0 0.0
        %2695 = vmatpush1.msra.mxu0 0.0
        %2696 = vmatprep.subr.mxu0 0.0
        %2697 = vmatpush1.msra.mxu0 0.0
        %2698 = vmatprep.subr.mxu0 0.0
        %2699 = vmatpush1.msra.mxu0 0.0
        %2700 = vmatprep.subr.mxu0 0.0
        %2701 = vmatpush1.msra.mxu0 0.0
        %2702 = vmatprep.subr.mxu0 0.0
        %2703 = vmatpush1.msra.mxu0 0.0
        %2704 = vmatprep.subr.mxu0 0.0
        %2705 = vmatpush1.msra.mxu0 0.0
        %2706 = vmatprep.subr.mxu0 0.0
        %2707 = vmatpush1.msra.mxu0 0.0
        %2708 = vmatprep.subr.mxu0 0.0
        %2709 = vmatpush1.msra.mxu0 0.0
        %2710 = vmatprep.subr.mxu0 0.0
        %2711 = vmatpush1.msra.mxu0 0.0
        %2712 = vmatprep.subr.mxu0 0.0
        %2713 = vmatpush1.msra.mxu0 0.0
        %2714 = vmatprep.subr.mxu0 0.0
        %2715 = vmatpush1.msra.mxu0 0.0
        %2716 = vmatprep.subr.mxu0 0.0
        %2717 = vmatpush1.msra.mxu0 0.0
        %2718 = vmatprep.subr.mxu0 0.0
        %2719 = vmatpush1.msra.mxu0 0.0
        %2720 = vmatprep.subr.mxu0 0.0
        %2721 = vmatpush1.msra.mxu0 0.0
        %2722 = vmatprep.subr.mxu0 0.0
        %2723 = vmatpush1.msra.mxu0 0.0
        %2724 = vmatprep.subr.mxu0 0.0
        %2725 = vmatpush1.msra.mxu0 0.0
        %2726 = vmatprep.subr.mxu0 0.0
        %2727 = vmatpush1.msra.mxu0 0.0
        %2728 = vmatprep.subr.mxu0 0.0
        %2729 = vmatpush1.msra.mxu0 0.0
        %2730 = vmatprep.subr.mxu0 0.0
        %2731 = vmatpush1.msra.mxu0 0.0
        %2732 = vmatprep.subr.mxu0 0.0
        %2733 = vmatpush1.msra.mxu0 0.0
        %2734 = vmatprep.subr.mxu0 0.0
        %2735 = vmatpush1.msra.mxu0 0.0
        %2736 = vmatprep.subr.mxu0 0.0
        %2737 = vmatpush1.msra.mxu0 0.0
        %2738 = vmatprep.mubr.f32.mxu0 0.0
        %2739 = vmatmul.mubr.f32.gmra.mrb[0].mxu0 %v2672
        %v2740 = vpop.f32.mrb[0].mxu0
        %v2741 = vadd.f32 %v2669, %v2740
        %v2742 = vpop.f32.mrb[0].mxu0
        %2743 = vdwg.mxu0
        %v2744 = vadd.f32 %v1895, %v2741
        %s2745 = scalar_lea.vmem %s6, 1
        %v2746 = vld [vmem:[%s2745] sm:$0x1]
        %s2747 = scalar_lea.vmem %s7, 1
        %v2748 = vld [vmem:[%s2747] sm:$0x1]
        %v2749 = vsel %vm814, %v2744, 0.0
        %2750 = vadd.xlane.f32.xlu0 %v2749
        %v2751 = vpop.xlane.xlu0 %2750
        %v2752 = vmul.f32 %v2751, %v1663
        %v2753 = vsub.f32 %v2744, %v2752
        %v2754 = vmul.f32 %v2753, %v2753
        %v2755 = vsel %vm814, %v2754, 0.0
        %2756 = vadd.xlane.f32.xlu0 %v2755
        %v2757 = vpop.xlane.xlu0 %2756
        %v2758 = vmul.f32 %v2757, %v1663
        %v2759 = vadd.f32 %v2758, 1e-05
        %v2760 = vrsqrt.pop %v2759
        %v2761 = vmul.f32 %v2753, %v2760
        %v2763 = vlaneseq
        %v2764 = vshrl.u32 %v2763, 7
        %v2765 = vsub.s32 0, %v2764
        %v2766 = vrot.slane %v2746, %v2765
        %v2768 = vmul.f32 %v2761, %v2766
        %v2770 = vlaneseq
        %v2771 = vshrl.u32 %v2770, 7
        %v2772 = vsub.s32 0, %v2771
        %v2773 = vrot.slane %v2748, %v2772
        %v2775 = vadd.f32 %v2768, %v2773
        %s2776 = scalar_lea.vmem %s8, 32
        %v2777 = vld [vmem:[%s2776] sm:$0xff]
        %v2778 = vld [vmem:[%s2776 + $0x8] sm:$0xff]
        %v2779 = vld [vmem:[%s2776 + $0x10] sm:$0xff]
        %v2780 = vld [vmem:[%s2776 + $0x18] sm:$0xff]
        %s2781 = scalar_lea.vmem %s9, 1
        %v2782 = vld [vmem:[%s2781] sm:$0x1]
        %v2784 = vlaneseq
        %v2785 = vshrl.u32 %v2784, 7
        %v2786 = vsub.s32 0, %v2785
        %v2787 = vrot.slane %v2782, %v2786
        %v2790 = vsel %vm814, %v2775, 0
        %2792 = vmatprep.subr.mxu0 0.0
        %2793 = vmatpush1.msra.mxu0 %v2777
        %2794 = vmatprep.subr.mxu0 0.0
        %2795 = vmatpush1.msra.mxu0 %v2778
        %2796 = vmatprep.subr.mxu0 0.0
        %2797 = vmatpush1.msra.mxu0 %v2779
        %2798 = vmatprep.subr.mxu0 0.0
        %2799 = vmatpush1.msra.mxu0 %v2780
        %2800 = vmatprep.subr.mxu0 0.0
        %2801 = vmatpush1.msra.mxu0 0.0
        %2802 = vmatprep.subr.mxu0 0.0
        %2803 = vmatpush1.msra.mxu0 0.0
        %2804 = vmatprep.subr.mxu0 0.0
        %2805 = vmatpush1.msra.mxu0 0.0
        %2806 = vmatprep.subr.mxu0 0.0
        %2807 = vmatpush1.msra.mxu0 0.0
        %2808 = vmatprep.subr.mxu0 0.0
        %2809 = vmatpush1.msra.mxu0 0.0
        %2810 = vmatprep.subr.mxu0 0.0
        %2811 = vmatpush1.msra.mxu0 0.0
        %2812 = vmatprep.subr.mxu0 0.0
        %2813 = vmatpush1.msra.mxu0 0.0
        %2814 = vmatprep.subr.mxu0 0.0
        %2815 = vmatpush1.msra.mxu0 0.0
        %2816 = vmatprep.subr.mxu0 0.0
        %2817 = vmatpush1.msra.mxu0 0.0
        %2818 = vmatprep.subr.mxu0 0.0
        %2819 = vmatpush1.msra.mxu0 0.0
        %2820 = vmatprep.subr.mxu0 0.0
        %2821 = vmatpush1.msra.mxu0 0.0
        %2822 = vmatprep.subr.mxu0 0.0
        %2823 = vmatpush1.msra.mxu0 0.0
        %2824 = vmatprep.subr.mxu0 0.0
        %2825 = vmatpush1.msra.mxu0 0.0
        %2826 = vmatprep.subr.mxu0 0.0
        %2827 = vmatpush1.msra.mxu0 0.0
        %2828 = vmatprep.subr.mxu0 0.0
        %2829 = vmatpush1.msra.mxu0 0.0
        %2830 = vmatprep.subr.mxu0 0.0
        %2831 = vmatpush1.msra.mxu0 0.0
        %2832 = vmatprep.subr.mxu0 0.0
        %2833 = vmatpush1.msra.mxu0 0.0
        %2834 = vmatprep.subr.mxu0 0.0
        %2835 = vmatpush1.msra.mxu0 0.0
        %2836 = vmatprep.subr.mxu0 0.0
        %2837 = vmatpush1.msra.mxu0 0.0
        %2838 = vmatprep.subr.mxu0 0.0
        %2839 = vmatpush1.msra.mxu0 0.0
        %2840 = vmatprep.subr.mxu0 0.0
        %2841 = vmatpush1.msra.mxu0 0.0
        %2842 = vmatprep.subr.mxu0 0.0
        %2843 = vmatpush1.msra.mxu0 0.0
        %2844 = vmatprep.subr.mxu0 0.0
        %2845 = vmatpush1.msra.mxu0 0.0
        %2846 = vmatprep.subr.mxu0 0.0
        %2847 = vmatpush1.msra.mxu0 0.0
        %2848 = vmatprep.subr.mxu0 0.0
        %2849 = vmatpush1.msra.mxu0 0.0
        %2850 = vmatprep.subr.mxu0 0.0
        %2851 = vmatpush1.msra.mxu0 0.0
        %2852 = vmatprep.subr.mxu0 0.0
        %2853 = vmatpush1.msra.mxu0 0.0
        %2854 = vmatprep.subr.mxu0 0.0
        %2855 = vmatpush1.msra.mxu0 0.0
        %2856 = vmatprep.mubr.f32.mxu0 0.0
        %2857 = vmatmul.mubr.f32.gmra.mrb[0].mxu0 %v2790
        %v2858 = vpop.f32.mrb[0].mxu0
        %v2859 = vadd.f32 %v2787, %v2858
        %v2860 = vpop.f32.mrb[0].mxu0
        %2861 = vdwg.mxu0
        %v2862 = vmax.f32 %v2859, 0.0
        %s2863 = scalar_lea.vmem %s10, 128
        %v2864 = vld [vmem:[%s2863] sm:$0xff]
        %v2865 = vld [vmem:[%s2863 + $0x8] sm:$0xff]
        %v2866 = vld [vmem:[%s2863 + $0x10] sm:$0xff]
        %v2867 = vld [vmem:[%s2863 + $0x18] sm:$0xff]
        %v2868 = vld [vmem:[%s2863 + $0x20] sm:$0xff]
        %v2869 = vld [vmem:[%s2863 + $0x28] sm:$0xff]
        %v2870 = vld [vmem:[%s2863 + $0x30] sm:$0xff]
        %v2871 = vld [vmem:[%s2863 + $0x38] sm:$0xff]
        %v2872 = vld [vmem:[%s2863 + $0x40] sm:$0xff]
        %v2873 = vld [vmem:[%s2863 + $0x48] sm:$0xff]
        %v2874 = vld [vmem:[%s2863 + $0x50] sm:$0xff]
        %v2875 = vld [vmem:[%s2863 + $0x58] sm:$0xff]
        %v2876 = vld [vmem:[%s2863 + $0x60] sm:$0xff]
        %v2877 = vld [vmem:[%s2863 + $0x68] sm:$0xff]
        %v2878 = vld [vmem:[%s2863 + $0x70] sm:$0xff]
        %v2879 = vld [vmem:[%s2863 + $0x78] sm:$0xff]
        %s2880 = scalar_lea.vmem %s11, 1
        %v2881 = vld [vmem:[%s2880] sm:$0x1]
        %v2883 = vlaneseq
        %v2884 = vshrl.u32 %v2883, 7
        %v2885 = vsub.s32 0, %v2884
        %v2886 = vrot.slane %v2881, %v2885
        %2888 = vmatprep.subr.mxu0 0.0
        %2889 = vmatpush1.msra.mxu0 %v2864
        %2890 = vmatprep.subr.mxu0 0.0
        %2891 = vmatpush1.msra.mxu0 %v2865
        %2892 = vmatprep.subr.mxu0 0.0
        %2893 = vmatpush1.msra.mxu0 %v2866
        %2894 = vmatprep.subr.mxu0 0.0
        %2895 = vmatpush1.msra.mxu0 %v2867
        %2896 = vmatprep.subr.mxu0 0.0
        %2897 = vmatpush1.msra.mxu0 %v2868
        %2898 = vmatprep.subr.mxu0 0.0
        %2899 = vmatpush1.msra.mxu0 %v2869
        %2900 = vmatprep.subr.mxu0 0.0
        %2901 = vmatpush1.msra.mxu0 %v2870
        %2902 = vmatprep.subr.mxu0 0.0
        %2903 = vmatpush1.msra.mxu0 %v2871
        %2904 = vmatprep.subr.mxu0 0.0
        %2905 = vmatpush1.msra.mxu0 %v2872
        %2906 = vmatprep.subr.mxu0 0.0
        %2907 = vmatpush1.msra.mxu0 %v2873
        %2908 = vmatprep.subr.mxu0 0.0
        %2909 = vmatpush1.msra.mxu0 %v2874
        %2910 = vmatprep.subr.mxu0 0.0
        %2911 = vmatpush1.msra.mxu0 %v2875
        %2912 = vmatprep.subr.mxu0 0.0
        %2913 = vmatpush1.msra.mxu0 %v2876
        %2914 = vmatprep.subr.mxu0 0.0
        %2915 = vmatpush1.msra.mxu0 %v2877
        %2916 = vmatprep.subr.mxu0 0.0
        %2917 = vmatpush1.msra.mxu0 %v2878
        %2918 = vmatprep.subr.mxu0 0.0
        %2919 = vmatpush1.msra.mxu0 %v2879
        %2920 = vmatprep.subr.mxu0 0.0
        %2921 = vmatpush1.msra.mxu0 0.0
        %2922 = vmatprep.subr.mxu0 0.0
        %2923 = vmatpush1.msra.mxu0 0.0
        %2924 = vmatprep.subr.mxu0 0.0
        %2925 = vmatpush1.msra.mxu0 0.0
        %2926 = vmatprep.subr.mxu0 0.0
        %2927 = vmatpush1.msra.mxu0 0.0
        %2928 = vmatprep.subr.mxu0 0.0
        %2929 = vmatpush1.msra.mxu0 0.0
        %2930 = vmatprep.subr.mxu0 0.0
        %2931 = vmatpush1.msra.mxu0 0.0
        %2932 = vmatprep.subr.mxu0 0.0
        %2933 = vmatpush1.msra.mxu0 0.0
        %2934 = vmatprep.subr.mxu0 0.0
        %2935 = vmatpush1.msra.mxu0 0.0
        %2936 = vmatprep.subr.mxu0 0.0
        %2937 = vmatpush1.msra.mxu0 0.0
        %2938 = vmatprep.subr.mxu0 0.0
        %2939 = vmatpush1.msra.mxu0 0.0
        %2940 = vmatprep.subr.mxu0 0.0
        %2941 = vmatpush1.msra.mxu0 0.0
        %2942 = vmatprep.subr.mxu0 0.0
        %2943 = vmatpush1.msra.mxu0 0.0
        %2944 = vmatprep.subr.mxu0 0.0
        %2945 = vmatpush1.msra.mxu0 0.0
        %2946 = vmatprep.subr.mxu0 0.0
        %2947 = vmatpush1.msra.mxu0 0.0
        %2948 = vmatprep.subr.mxu0 0.0
        %2949 = vmatpush1.msra.mxu0 0.0
        %2950 = vmatprep.subr.mxu0 0.0
        %2951 = vmatpush1.msra.mxu0 0.0
        %2952 = vmatprep.mubr.f32.mxu0 0.0
        %2953 = vmatmul.mubr.f32.gmra.mrb[0].mxu0 %v2862
        %v2954 = vpop.f32.mrb[0].mxu0
        %v2955 = vadd.f32 %v2886, %v2954
        %v2956 = vpop.f32.mrb[0].mxu0
        %2957 = vdwg.mxu0
        %v2958 = vadd.f32 %v2775, %v2955
        %s2959 = scalar_lea.vmem %s12, 1
        %v2960 = vld [vmem:[%s2959] sm:$0x1]
        %s2961 = scalar_lea.vmem %s13, 1
        %v2962 = vld [vmem:[%s2961] sm:$0x1]
        %v2963 = vsel %vm814, %v2958, 0.0
        %2964 = vadd.xlane.f32.xlu0 %v2963
        %v2965 = vpop.xlane.xlu0 %2964
        %v2966 = vmul.f32 %v2965, %v1663
        %v2967 = vsub.f32 %v2958, %v2966
        %v2968 = vmul.f32 %v2967, %v2967
        %v2969 = vsel %vm814, %v2968, 0.0
        %2970 = vadd.xlane.f32.xlu0 %v2969
        %v2971 = vpop.xlane.xlu0 %2970
        %v2972 = vmul.f32 %v2971, %v1663
        %v2973 = vadd.f32 %v2972, 1e-05
        %v2974 = vrsqrt.pop %v2973
        %v2975 = vmul.f32 %v2967, %v2974
        %v2977 = vlaneseq
        %v2978 = vshrl.u32 %v2977, 7
        %v2979 = vsub.s32 0, %v2978
        %v2980 = vrot.slane %v2960, %v2979
        %v2982 = vmul.f32 %v2975, %v2980
        %v2984 = vlaneseq
        %v2985 = vshrl.u32 %v2984, 7
        %v2986 = vsub.s32 0, %v2985
        %v2987 = vrot.slane %v2962, %v2986
        %v2989 = vadd.f32 %v2982, %v2987
        %v2990 = vld [vmem:[%s14] sm:$0xf]
        %v2991 = vld [vmem:[%s15] sm:$0xff]
        %v2992 = vld [vmem:[%s15 + $0x8] sm:$0xff]
        %v2993 = vld [vmem:[%s15 + $0x10] sm:$0xff]
        %v2994 = vld [vmem:[%s15 + $0x18] sm:$0xff]
        %v2995 = vld [vmem:[%s16] sm:$0x1]
        %v2997 = vlaneseq
        %v2998 = vshrl.u32 %v2997, 7
        %v2999 = vsub.s32 0, %v2998
        %v3000 = vrot.slane %v2995, %v2999
        %v3003 = vsel %vm814, %v2990, 0
        %3005 = vmatprep.subr.mxu0 0.0
        %3006 = vmatpush1.msra.mxu0 %v2991
        %3007 = vmatprep.subr.mxu0 0.0
        %3008 = vmatpush1.msra.mxu0 %v2992
        %3009 = vmatprep.subr.mxu0 0.0
        %3010 = vmatpush1.msra.mxu0 %v2993
        %3011 = vmatprep.subr.mxu0 0.0
        %3012 = vmatpush1.msra.mxu0 %v2994
        %3013 = vmatprep.subr.mxu0 0.0
        %3014 = vmatpush1.msra.mxu0 0.0
        %3015 = vmatprep.subr.mxu0 0.0
        %3016 = vmatpush1.msra.mxu0 0.0
        %3017 = vmatprep.subr.mxu0 0.0
        %3018 = vmatpush1.msra.mxu0 0.0
        %3019 = vmatprep.subr.mxu0 0.0
        %3020 = vmatpush1.msra.mxu0 0.0
        %3021 = vmatprep.subr.mxu0 0.0
        %3022 = vmatpush1.msra.mxu0 0.0
        %3023 = vmatprep.subr.mxu0 0.0
        %3024 = vmatpush1.msra.mxu0 0.0
        %3025 = vmatprep.subr.mxu0 0.0
        %3026 = vmatpush1.msra.mxu0 0.0
        %3027 = vmatprep.subr.mxu0 0.0
        %3028 = vmatpush1.msra.mxu0 0.0
        %3029 = vmatprep.subr.mxu0 0.0
        %3030 = vmatpush1.msra.mxu0 0.0
        %3031 = vmatprep.subr.mxu0 0.0
        %3032 = vmatpush1.msra.mxu0 0.0
        %3033 = vmatprep.subr.mxu0 0.0
        %3034 = vmatpush1.msra.mxu0 0.0
        %3035 = vmatprep.subr.mxu0 0.0
        %3036 = vmatpush1.msra.mxu0 0.0
        %3037 = vmatprep.subr.mxu0 0.0
        %3038 = vmatpush1.msra.mxu0 0.0
        %3039 = vmatprep.subr.mxu0 0.0
        %3040 = vmatpush1.msra.mxu0 0.0
        %3041 = vmatprep.subr.mxu0 0.0
        %3042 = vmatpush1.msra.mxu0 0.0
        %3043 = vmatprep.subr.mxu0 0.0
        %3044 = vmatpush1.msra.mxu0 0.0
        %3045 = vmatprep.subr.mxu0 0.0
        %3046 = vmatpush1.msra.mxu0 0.0
        %3047 = vmatprep.subr.mxu0 0.0
        %3048 = vmatpush1.msra.mxu0 0.0
        %3049 = vmatprep.subr.mxu0 0.0
        %3050 = vmatpush1.msra.mxu0 0.0
        %3051 = vmatprep.subr.mxu0 0.0
        %3052 = vmatpush1.msra.mxu0 0.0
        %3053 = vmatprep.subr.mxu0 0.0
        %3054 = vmatpush1.msra.mxu0 0.0
        %3055 = vmatprep.subr.mxu0 0.0
        %3056 = vmatpush1.msra.mxu0 0.0
        %3057 = vmatprep.subr.mxu0 0.0
        %3058 = vmatpush1.msra.mxu0 0.0
        %3059 = vmatprep.subr.mxu0 0.0
        %3060 = vmatpush1.msra.mxu0 0.0
        %3061 = vmatprep.subr.mxu0 0.0
        %3062 = vmatpush1.msra.mxu0 0.0
        %3063 = vmatprep.subr.mxu0 0.0
        %3064 = vmatpush1.msra.mxu0 0.0
        %3065 = vmatprep.subr.mxu0 0.0
        %3066 = vmatpush1.msra.mxu0 0.0
        %3067 = vmatprep.subr.mxu0 0.0
        %3068 = vmatpush1.msra.mxu0 0.0
        %3069 = vmatprep.mubr.f32.mxu0 0.0
        %3070 = vmatmul.mubr.f32.gmra.mrb[0].mxu0 %v3003
        %v3071 = vpop.f32.mrb[0].mxu0
        %v3072 = vadd.f32 %v3000, %v3071
        %v3073 = vpop.f32.mrb[0].mxu0
        %3074 = vdwg.mxu0
        %v3075 = vld [vmem:[%s17] sm:$0xff]
        %v3076 = vld [vmem:[%s17 + $0x8] sm:$0xff]
        %v3077 = vld [vmem:[%s17 + $0x10] sm:$0xff]
        %v3078 = vld [vmem:[%s17 + $0x18] sm:$0xff]
        %v3079 = vld [vmem:[#allocation2] sm:$0x1]
        %v3081 = vlaneseq
        %v3082 = vshrl.u32 %v3081, 7
        %v3083 = vsub.s32 0, %v3082
        %v3084 = vrot.slane %v3079, %v3083
        %v3087 = vsel %vm814, %v2989, 0
        %3089 = vmatprep.subr.mxu0 0.0
        %3090 = vmatpush1.msra.mxu0 %v3075
        %3091 = vmatprep.subr.mxu0 0.0
        %3092 = vmatpush1.msra.mxu0 %v3076
        %3093 = vmatprep.subr.mxu0 0.0
        %3094 = vmatpush1.msra.mxu0 %v3077
        %3095 = vmatprep.subr.mxu0 0.0
        %3096 = vmatpush1.msra.mxu0 %v3078
        %3097 = vmatprep.subr.mxu0 0.0
        %3098 = vmatpush1.msra.mxu0 0.0
        %3099 = vmatprep.subr.mxu0 0.0
        %3100 = vmatpush1.msra.mxu0 0.0
        %3101 = vmatprep.subr.mxu0 0.0
        %3102 = vmatpush1.msra.mxu0 0.0
        %3103 = vmatprep.subr.mxu0 0.0
        %3104 = vmatpush1.msra.mxu0 0.0
        %3105 = vmatprep.subr.mxu0 0.0
        %3106 = vmatpush1.msra.mxu0 0.0
        %3107 = vmatprep.subr.mxu0 0.0
        %3108 = vmatpush1.msra.mxu0 0.0
        %3109 = vmatprep.subr.mxu0 0.0
        %3110 = vmatpush1.msra.mxu0 0.0
        %3111 = vmatprep.subr.mxu0 0.0
        %3112 = vmatpush1.msra.mxu0 0.0
        %3113 = vmatprep.subr.mxu0 0.0
        %3114 = vmatpush1.msra.mxu0 0.0
        %3115 = vmatprep.subr.mxu0 0.0
        %3116 = vmatpush1.msra.mxu0 0.0
        %3117 = vmatprep.subr.mxu0 0.0
        %3118 = vmatpush1.msra.mxu0 0.0
        %3119 = vmatprep.subr.mxu0 0.0
        %3120 = vmatpush1.msra.mxu0 0.0
        %3121 = vmatprep.subr.mxu0 0.0
        %3122 = vmatpush1.msra.mxu0 0.0
        %3123 = vmatprep.subr.mxu0 0.0
        %3124 = vmatpush1.msra.mxu0 0.0
        %3125 = vmatprep.subr.mxu0 0.0
        %3126 = vmatpush1.msra.mxu0 0.0
        %3127 = vmatprep.subr.mxu0 0.0
        %3128 = vmatpush1.msra.mxu0 0.0
        %3129 = vmatprep.subr.mxu0 0.0
        %3130 = vmatpush1.msra.mxu0 0.0
        %3131 = vmatprep.subr.mxu0 0.0
        %3132 = vmatpush1.msra.mxu0 0.0
        %3133 = vmatprep.subr.mxu0 0.0
        %3134 = vmatpush1.msra.mxu0 0.0
        %3135 = vmatprep.subr.mxu0 0.0
        %3136 = vmatpush1.msra.mxu0 0.0
        %3137 = vmatprep.subr.mxu0 0.0
        %3138 = vmatpush1.msra.mxu0 0.0
        %3139 = vmatprep.subr.mxu0 0.0
        %3140 = vmatpush1.msra.mxu0 0.0
        %3141 = vmatprep.subr.mxu0 0.0
        %3142 = vmatpush1.msra.mxu0 0.0
        %3143 = vmatprep.subr.mxu0 0.0
        %3144 = vmatpush1.msra.mxu0 0.0
        %3145 = vmatprep.subr.mxu0 0.0
        %3146 = vmatpush1.msra.mxu0 0.0
        %3147 = vmatprep.subr.mxu0 0.0
        %3148 = vmatpush1.msra.mxu0 0.0
        %3149 = vmatprep.subr.mxu0 0.0
        %3150 = vmatpush1.msra.mxu0 0.0
        %3151 = vmatprep.subr.mxu0 0.0
        %3152 = vmatpush1.msra.mxu0 0.0
        %3153 = vmatprep.mubr.f32.mxu0 0.0
        %3154 = vmatmul.mubr.f32.gmra.mrb[0].mxu0 %v3087
        %v3155 = vpop.f32.mrb[0].mxu0
        %v3156 = vadd.f32 %v3084, %v3155
        %v3157 = vpop.f32.mrb[0].mxu0
        %3158 = vdwg.mxu0
        %v3159 = vmul.f32 %v3072, 0.35355338
        %v3161 = vsel %vm898, %v3159, 0
        %v3164 = vsel %vm898, %v3156, 0
        %3166 = vmatprep.subr.mxu0 0.0
        %3167 = vmatpush1.xpose.msra.mxu0 %v3164
        %3168 = vmatprep.subr.mxu0 0.0
        %3169 = vmatpush1.xpose.msra.mxu0 0.0
        %3170 = vmatprep.subr.mxu0 0.0
        %3171 = vmatpush1.xpose.msra.mxu0 0.0
        %3172 = vmatprep.subr.mxu0 0.0
        %3173 = vmatpush1.xpose.msra.mxu0 0.0
        %3174 = vmatprep.subr.mxu0 0.0
        %3175 = vmatpush1.xpose.msra.mxu0 0.0
        %3176 = vmatprep.subr.mxu0 0.0
        %3177 = vmatpush1.xpose.msra.mxu0 0.0
        %3178 = vmatprep.subr.mxu0 0.0
        %3179 = vmatpush1.xpose.msra.mxu0 0.0
        %3180 = vmatprep.subr.mxu0 0.0
        %3181 = vmatpush1.xpose.msra.mxu0 0.0
        %3182 = vmatprep.subr.mxu0 0.0
        %3183 = vmatpush1.xpose.msra.mxu0 0.0
        %3184 = vmatprep.subr.mxu0 0.0
        %3185 = vmatpush1.xpose.msra.mxu0 0.0
        %3186 = vmatprep.subr.mxu0 0.0
        %3187 = vmatpush1.xpose.msra.mxu0 0.0
        %3188 = vmatprep.subr.mxu0 0.0
        %3189 = vmatpush1.xpose.msra.mxu0 0.0
        %3190 = vmatprep.subr.mxu0 0.0
        %3191 = vmatpush1.xpose.msra.mxu0 0.0
        %3192 = vmatprep.subr.mxu0 0.0
        %3193 = vmatpush1.xpose.msra.mxu0 0.0
        %3194 = vmatprep.subr.mxu0 0.0
        %3195 = vmatpush1.xpose.msra.mxu0 0.0
        %3196 = vmatprep.subr.mxu0 0.0
        %3197 = vmatpush1.xpose.msra.mxu0 0.0
        %3198 = vmatprep.subr.mxu0 0.0
        %3199 = vmatpush1.xpose.msra.mxu0 0.0
        %3200 = vmatprep.subr.mxu0 0.0
        %3201 = vmatpush1.xpose.msra.mxu0 0.0
        %3202 = vmatprep.subr.mxu0 0.0
        %3203 = vmatpush1.xpose.msra.mxu0 0.0
        %3204 = vmatprep.subr.mxu0 0.0
        %3205 = vmatpush1.xpose.msra.mxu0 0.0
        %3206 = vmatprep.subr.mxu0 0.0
        %3207 = vmatpush1.xpose.msra.mxu0 0.0
        %3208 = vmatprep.subr.mxu0 0.0
        %3209 = vmatpush1.xpose.msra.mxu0 0.0
        %3210 = vmatprep.subr.mxu0 0.0
        %3211 = vmatpush1.xpose.msra.mxu0 0.0
        %3212 = vmatprep.subr.mxu0 0.0
        %3213 = vmatpush1.xpose.msra.mxu0 0.0
        %3214 = vmatprep.subr.mxu0 0.0
        %3215 = vmatpush1.xpose.msra.mxu0 0.0
        %3216 = vmatprep.subr.mxu0 0.0
        %3217 = vmatpush1.xpose.msra.mxu0 0.0
        %3218 = vmatprep.subr.mxu0 0.0
        %3219 = vmatpush1.xpose.msra.mxu0 0.0
        %3220 = vmatprep.subr.mxu0 0.0
        %3221 = vmatpush1.xpose.msra.mxu0 0.0
        %3222 = vmatprep.subr.mxu0 0.0
        %3223 = vmatpush1.xpose.msra.mxu0 0.0
        %3224 = vmatprep.subr.mxu0 0.0
        %3225 = vmatpush1.xpose.msra.mxu0 0.0
        %3226 = vmatprep.subr.mxu0 0.0
        %3227 = vmatpush1.xpose.msra.mxu0 0.0
        %3228 = vmatprep.subr.mxu0 0.0
        %3229 = vmatpush1.xpose.msra.mxu0 0.0
        %3230 = vmatprep.mubr.f32.mxu0 0.0
        %3231 = vmatmul.mubr.f32.gmra.mrb[0].mxu0 %v3161
        %v3232 = vpop.f32.mrb[0].mxu0
        %v3233 = vadd.f32 %v893, %v3232
        %v3234 = vpop.f32.mrb[0].mxu0
        %3235 = vdwg.mxu0
        %vm3236 = vcmask 60416
        %v3237 = vsel %vm3236, %v3233, -inf
        %3238 = vmax.xlane.f32.xlu0 %v3237
        %v3239 = vpop.xlane.xlu0 %3238
        %v3240 = vsub.f32 %v3233, %v3239
        %v3241 = vmul.f32 %v3240, 1.442695
        %v3242 = vpow.pop %v3241
        %v3243 = vsel %vm3236, %v3242, 0.0
        %3244 = vadd.xlane.f32.xlu0 %v3243
        %v3245 = vpop.xlane.xlu0 %3244
        %v3246 = vrcp.pop %v3245
        %v3247 = vmul.f32 %v3242, %v3246
        %3248 = vrot.lane.b32.xlu0 %v3156, 96
        %v3249 = vpop.permute.xlu0 %3248
        %v3252 = vsel %vm898, %v3247, 0
        %3254 = vmatprep.subr.mxu0 0.0
        %3255 = vmatpush1.msra.mxu0 %v3249
        %3256 = vmatprep.subr.mxu0 0.0
        %3257 = vmatpush1.msra.mxu0 0.0
        %3258 = vmatprep.subr.mxu0 0.0
        %3259 = vmatpush1.msra.mxu0 0.0
        %3260 = vmatprep.subr.mxu0 0.0
        %3261 = vmatpush1.msra.mxu0 0.0
        %3262 = vmatprep.subr.mxu0 0.0
        %3263 = vmatpush1.msra.mxu0 0.0
        %3264 = vmatprep.subr.mxu0 0.0
        %3265 = vmatpush1.msra.mxu0 0.0
        %3266 = vmatprep.subr.mxu0 0.0
        %3267 = vmatpush1.msra.mxu0 0.0
        %3268 = vmatprep.subr.mxu0 0.0
        %3269 = vmatpush1.msra.mxu0 0.0
        %3270 = vmatprep.subr.mxu0 0.0
        %3271 = vmatpush1.msra.mxu0 0.0
        %3272 = vmatprep.subr.mxu0 0.0
        %3273 = vmatpush1.msra.mxu0 0.0
        %3274 = vmatprep.subr.mxu0 0.0
        %3275 = vmatpush1.msra.mxu0 0.0
        %3276 = vmatprep.subr.mxu0 0.0
        %3277 = vmatpush1.msra.mxu0 0.0
        %3278 = vmatprep.subr.mxu0 0.0
        %3279 = vmatpush1.msra.mxu0 0.0
        %3280 = vmatprep.subr.mxu0 0.0
        %3281 = vmatpush1.msra.mxu0 0.0
        %3282 = vmatprep.subr.mxu0 0.0
        %3283 = vmatpush1.msra.mxu0 0.0
        %3284 = vmatprep.subr.mxu0 0.0
        %3285 = vmatpush1.msra.mxu0 0.0
        %3286 = vmatprep.subr.mxu0 0.0
        %3287 = vmatpush1.msra.mxu0 0.0
        %3288 = vmatprep.subr.mxu0 0.0
        %3289 = vmatpush1.msra.mxu0 0.0
        %3290 = vmatprep.subr.mxu0 0.0
        %3291 = vmatpush1.msra.mxu0 0.0
        %3292 = vmatprep.subr.mxu0 0.0
        %3293 = vmatpush1.msra.mxu0 0.0
        %3294 = vmatprep.subr.mxu0 0.0
        %3295 = vmatpush1.msra.mxu0 0.0
        %3296 = vmatprep.subr.mxu0 0.0
        %3297 = vmatpush1.msra.mxu0 0.0
        %3298 = vmatprep.subr.mxu0 0.0
        %3299 = vmatpush1.msra.mxu0 0.0
        %3300 = vmatprep.subr.mxu0 0.0
        %3301 = vmatpush1.msra.mxu0 0.0
        %3302 = vmatprep.subr.mxu0 0.0
        %3303 = vmatpush1.msra.mxu0 0.0
        %3304 = vmatprep.subr.mxu0 0.0
        %3305 = vmatpush1.msra.mxu0 0.0
        %3306 = vmatprep.subr.mxu0 0.0
        %3307 = vmatpush1.msra.mxu0 0.0
        %3308 = vmatprep.subr.mxu0 0.0
        %3309 = vmatpush1.msra.mxu0 0.0
        %3310 = vmatprep.subr.mxu0 0.0
        %3311 = vmatpush1.msra.mxu0 0.0
        %3312 = vmatprep.subr.mxu0 0.0
        %3313 = vmatpush1.msra.mxu0 0.0
        %3314 = vmatprep.subr.mxu0 0.0
        %3315 = vmatpush1.msra.mxu0 0.0
        %3316 = vmatprep.subr.mxu0 0.0
        %3317 = vmatpush1.msra.mxu0 0.0
        %3318 = vmatprep.mubr.f32.mxu0 0.0
        %3319 = vmatmul.mubr.f32.gmra.mrb[0].mxu0 %v3252
        %v3320 = vpop.f32.mrb[0].mxu0
        %v3321 = vadd.f32 0.0, %v3320
        %v3322 = vpop.f32.mrb[0].mxu0
        %3323 = vdwg.mxu0
        %3324 = vrot.lane.b32.xlu0 %v3159, 120
        %v3325 = vpop.permute.xlu0 %3324
        %3326 = vrot.lane.b32.xlu0 %v3156, 120
        %v3327 = vpop.permute.xlu0 %3326
        %v3328 = vsel %vm898, %v3325, 0
        %v3330 = vsel %vm898, %v3327, 0
        %3332 = vmatprep.subr.mxu0 0.0
        %3333 = vmatpush1.xpose.msra.mxu0 %v3330
        %3334 = vmatprep.subr.mxu0 0.0
        %3335 = vmatpush1.xpose.msra.mxu0 0.0
        %3336 = vmatprep.subr.mxu0 0.0
        %3337 = vmatpush1.xpose.msra.mxu0 0.0
        %3338 = vmatprep.subr.mxu0 0.0
        %3339 = vmatpush1.xpose.msra.mxu0 0.0
        %3340 = vmatprep.subr.mxu0 0.0
        %3341 = vmatpush1.xpose.msra.mxu0 0.0
        %3342 = vmatprep.subr.mxu0 0.0
        %3343 = vmatpush1.xpose.msra.mxu0 0.0
        %3344 = vmatprep.subr.mxu0 0.0
        %3345 = vmatpush1.xpose.msra.mxu0 0.0
        %3346 = vmatprep.subr.mxu0 0.0
        %3347 = vmatpush1.xpose.msra.mxu0 0.0
        %3348 = vmatprep.subr.mxu0 0.0
        %3349 = vmatpush1.xpose.msra.mxu0 0.0
        %3350 = vmatprep.subr.mxu0 0.0
        %3351 = vmatpush1.xpose.msra.mxu0 0.0
        %3352 = vmatprep.subr.mxu0 0.0
        %3353 = vmatpush1.xpose.msra.mxu0 0.0
        %3354 = vmatprep.subr.mxu0 0.0
        %3355 = vmatpush1.xpose.msra.mxu0 0.0
        %3356 = vmatprep.subr.mxu0 0.0
        %3357 = vmatpush1.xpose.msra.mxu0 0.0
        %3358 = vmatprep.subr.mxu0 0.0
        %3359 = vmatpush1.xpose.msra.mxu0 0.0
        %3360 = vmatprep.subr.mxu0 0.0
        %3361 = vmatpush1.xpose.msra.mxu0 0.0
        %3362 = vmatprep.subr.mxu0 0.0
        %3363 = vmatpush1.xpose.msra.mxu0 0.0
        %3364 = vmatprep.subr.mxu0 0.0
        %3365 = vmatpush1.xpose.msra.mxu0 0.0
        %3366 = vmatprep.subr.mxu0 0.0
        %3367 = vmatpush1.xpose.msra.mxu0 0.0
        %3368 = vmatprep.subr.mxu0 0.0
        %3369 = vmatpush1.xpose.msra.mxu0 0.0
        %3370 = vmatprep.subr.mxu0 0.0
        %3371 = vmatpush1.xpose.msra.mxu0 0.0
        %3372 = vmatprep.subr.mxu0 0.0
        %3373 = vmatpush1.xpose.msra.mxu0 0.0
        %3374 = vmatprep.subr.mxu0 0.0
        %3375 = vmatpush1.xpose.msra.mxu0 0.0
        %3376 = vmatprep.subr.mxu0 0.0
        %3377 = vmatpush1.xpose.msra.mxu0 0.0
        %3378 = vmatprep.subr.mxu0 0.0
        %3379 = vmatpush1.xpose.msra.mxu0 0.0
        %3380 = vmatprep.subr.mxu0 0.0
        %3381 = vmatpush1.xpose.msra.mxu0 0.0
        %3382 = vmatprep.subr.mxu0 0.0
        %3383 = vmatpush1.xpose.msra.mxu0 0.0
        %3384 = vmatprep.subr.mxu0 0.0
        %3385 = vmatpush1.xpose.msra.mxu0 0.0
        %3386 = vmatprep.subr.mxu0 0.0
        %3387 = vmatpush1.xpose.msra.mxu0 0.0
        %3388 = vmatprep.subr.mxu0 0.0
        %3389 = vmatpush1.xpose.msra.mxu0 0.0
        %3390 = vmatprep.subr.mxu0 0.0
        %3391 = vmatpush1.xpose.msra.mxu0 0.0
        %3392 = vmatprep.subr.mxu0 0.0
        %3393 = vmatpush1.xpose.msra.mxu0 0.0
        %3394 = vmatprep.subr.mxu0 0.0
        %3395 = vmatpush1.xpose.msra.mxu0 0.0
        %3396 = vmatprep.mubr.f32.mxu0 0.0
        %3397 = vmatmul.mubr.f32.gmra.mrb[0].mxu0 %v3328
        %v3398 = vpop.f32.mrb[0].mxu0
        %v3399 = vadd.f32 %v893, %v3398
        %v3400 = vpop.f32.mrb[0].mxu0
        %3401 = vdwg.mxu0
        %v3402 = vsel %vm3236, %v3399, -inf
        %3403 = vmax.xlane.f32.xlu0 %v3402
        %v3404 = vpop.xlane.xlu0 %3403
        %v3405 = vsub.f32 %v3399, %v3404
        %v3406 = vmul.f32 %v3405, 1.442695
        %v3407 = vpow.pop %v3406
        %v3408 = vsel %vm3236, %v3407, 0.0
        %3409 = vadd.xlane.f32.xlu0 %v3408
        %v3410 = vpop.xlane.xlu0 %3409
        %v3411 = vrcp.pop %v3410
        %v3412 = vmul.f32 %v3407, %v3411
        %3413 = vrot.lane.b32.xlu0 %v3156, 88
        %v3414 = vpop.permute.xlu0 %3413
        %v3417 = vsel %vm898, %v3412, 0
        %3419 = vmatprep.subr.mxu0 0.0
        %3420 = vmatpush1.msra.mxu0 %v3414
        %3421 = vmatprep.subr.mxu0 0.0
        %3422 = vmatpush1.msra.mxu0 0.0
        %3423 = vmatprep.subr.mxu0 0.0
        %3424 = vmatpush1.msra.mxu0 0.0
        %3425 = vmatprep.subr.mxu0 0.0
        %3426 = vmatpush1.msra.mxu0 0.0
        %3427 = vmatprep.subr.mxu0 0.0
        %3428 = vmatpush1.msra.mxu0 0.0
        %3429 = vmatprep.subr.mxu0 0.0
        %3430 = vmatpush1.msra.mxu0 0.0
        %3431 = vmatprep.subr.mxu0 0.0
        %3432 = vmatpush1.msra.mxu0 0.0
        %3433 = vmatprep.subr.mxu0 0.0
        %3434 = vmatpush1.msra.mxu0 0.0
        %3435 = vmatprep.subr.mxu0 0.0
        %3436 = vmatpush1.msra.mxu0 0.0
        %3437 = vmatprep.subr.mxu0 0.0
        %3438 = vmatpush1.msra.mxu0 0.0
        %3439 = vmatprep.subr.mxu0 0.0
        %3440 = vmatpush1.msra.mxu0 0.0
        %3441 = vmatprep.subr.mxu0 0.0
        %3442 = vmatpush1.msra.mxu0 0.0
        %3443 = vmatprep.subr.mxu0 0.0
        %3444 = vmatpush1.msra.mxu0 0.0
        %3445 = vmatprep.subr.mxu0 0.0
        %3446 = vmatpush1.msra.mxu0 0.0
        %3447 = vmatprep.subr.mxu0 0.0
        %3448 = vmatpush1.msra.mxu0 0.0
        %3449 = vmatprep.subr.mxu0 0.0
        %3450 = vmatpush1.msra.mxu0 0.0
        %3451 = vmatprep.subr.mxu0 0.0
        %3452 = vmatpush1.msra.mxu0 0.0
        %3453 = vmatprep.subr.mxu0 0.0
        %3454 = vmatpush1.msra.mxu0 0.0
        %3455 = vmatprep.subr.mxu0 0.0
        %3456 = vmatpush1.msra.mxu0 0.0
        %3457 = vmatprep.subr.mxu0 0.0
        %3458 = vmatpush1.msra.mxu0 0.0
        %3459 = vmatprep.subr.mxu0 0.0
        %3460 = vmatpush1.msra.mxu0 0.0
        %3461 = vmatprep.subr.mxu0 0.0
        %3462 = vmatpush1.msra.mxu0 0.0
        %3463 = vmatprep.subr.mxu0 0.0
        %3464 = vmatpush1.msra.mxu0 0.0
        %3465 = vmatprep.subr.mxu0 0.0
        %3466 = vmatpush1.msra.mxu0 0.0
        %3467 = vmatprep.subr.mxu0 0.0
        %3468 = vmatpush1.msra.mxu0 0.0
        %3469 = vmatprep.subr.mxu0 0.0
        %3470 = vmatpush1.msra.mxu0 0.0
        %3471 = vmatprep.subr.mxu0 0.0
        %3472 = vmatpush1.msra.mxu0 0.0
        %3473 = vmatprep.subr.mxu0 0.0
        %3474 = vmatpush1.msra.mxu0 0.0
        %3475 = vmatprep.subr.mxu0 0.0
        %3476 = vmatpush1.msra.mxu0 0.0
        %3477 = vmatprep.subr.mxu0 0.0
        %3478 = vmatpush1.msra.mxu0 0.0
        %3479 = vmatprep.subr.mxu0 0.0
        %3480 = vmatpush1.msra.mxu0 0.0
        %3481 = vmatprep.subr.mxu0 0.0
        %3482 = vmatpush1.msra.mxu0 0.0
        %3483 = vmatprep.mubr.f32.mxu0 0.0
        %3484 = vmatmul.mubr.f32.gmra.mrb[0].mxu0 %v3417
        %v3485 = vpop.f32.mrb[0].mxu0
        %v3486 = vadd.f32 0.0, %v3485
        %v3487 = vpop.f32.mrb[0].mxu0
        %3488 = vdwg.mxu0
        %3489 = vrot.lane.b32.xlu0 %v3159, 112
        %v3490 = vpop.permute.xlu0 %3489
        %3491 = vrot.lane.b32.xlu0 %v3156, 112
        %v3492 = vpop.permute.xlu0 %3491
        %v3493 = vsel %vm898, %v3490, 0
        %v3495 = vsel %vm898, %v3492, 0
        %3497 = vmatprep.subr.mxu0 0.0
        %3498 = vmatpush1.xpose.msra.mxu0 %v3495
        %3499 = vmatprep.subr.mxu0 0.0
        %3500 = vmatpush1.xpose.msra.mxu0 0.0
        %3501 = vmatprep.subr.mxu0 0.0
        %3502 = vmatpush1.xpose.msra.mxu0 0.0
        %3503 = vmatprep.subr.mxu0 0.0
        %3504 = vmatpush1.xpose.msra.mxu0 0.0
        %3505 = vmatprep.subr.mxu0 0.0
        %3506 = vmatpush1.xpose.msra.mxu0 0.0
        %3507 = vmatprep.subr.mxu0 0.0
        %3508 = vmatpush1.xpose.msra.mxu0 0.0
        %3509 = vmatprep.subr.mxu0 0.0
        %3510 = vmatpush1.xpose.msra.mxu0 0.0
        %3511 = vmatprep.subr.mxu0 0.0
        %3512 = vmatpush1.xpose.msra.mxu0 0.0
        %3513 = vmatprep.subr.mxu0 0.0
        %3514 = vmatpush1.xpose.msra.mxu0 0.0
        %3515 = vmatprep.subr.mxu0 0.0
        %3516 = vmatpush1.xpose.msra.mxu0 0.0
        %3517 = vmatprep.subr.mxu0 0.0
        %3518 = vmatpush1.xpose.msra.mxu0 0.0
        %3519 = vmatprep.subr.mxu0 0.0
        %3520 = vmatpush1.xpose.msra.mxu0 0.0
        %3521 = vmatprep.subr.mxu0 0.0
        %3522 = vmatpush1.xpose.msra.mxu0 0.0
        %3523 = vmatprep.subr.mxu0 0.0
        %3524 = vmatpush1.xpose.msra.mxu0 0.0
        %3525 = vmatprep.subr.mxu0 0.0
        %3526 = vmatpush1.xpose.msra.mxu0 0.0
        %3527 = vmatprep.subr.mxu0 0.0
        %3528 = vmatpush1.xpose.msra.mxu0 0.0
        %3529 = vmatprep.subr.mxu0 0.0
        %3530 = vmatpush1.xpose.msra.mxu0 0.0
        %3531 = vmatprep.subr.mxu0 0.0
        %3532 = vmatpush1.xpose.msra.mxu0 0.0
        %3533 = vmatprep.subr.mxu0 0.0
        %3534 = vmatpush1.xpose.msra.mxu0 0.0
        %3535 = vmatprep.subr.mxu0 0.0
        %3536 = vmatpush1.xpose.msra.mxu0 0.0
        %3537 = vmatprep.subr.mxu0 0.0
        %3538 = vmatpush1.xpose.msra.mxu0 0.0
        %3539 = vmatprep.subr.mxu0 0.0
        %3540 = vmatpush1.xpose.msra.mxu0 0.0
        %3541 = vmatprep.subr.mxu0 0.0
        %3542 = vmatpush1.xpose.msra.mxu0 0.0
        %3543 = vmatprep.subr.mxu0 0.0
        %3544 = vmatpush1.xpose.msra.mxu0 0.0
        %3545 = vmatprep.subr.mxu0 0.0
        %3546 = vmatpush1.xpose.msra.mxu0 0.0
        %3547 = vmatprep.subr.mxu0 0.0
        %3548 = vmatpush1.xpose.msra.mxu0 0.0
        %3549 = vmatprep.subr.mxu0 0.0
        %3550 = vmatpush1.xpose.msra.mxu0 0.0
        %3551 = vmatprep.subr.mxu0 0.0
        %3552 = vmatpush1.xpose.msra.mxu0 0.0
        %3553 = vmatprep.subr.mxu0 0.0
        %3554 = vmatpush1.xpose.msra.mxu0 0.0
        %3555 = vmatprep.subr.mxu0 0.0
        %3556 = vmatpush1.xpose.msra.mxu0 0.0
        %3557 = vmatprep.subr.mxu0 0.0
        %3558 = vmatpush1.xpose.msra.mxu0 0.0
        %3559 = vmatprep.subr.mxu0 0.0
        %3560 = vmatpush1.xpose.msra.mxu0 0.0
        %3561 = vmatprep.mubr.f32.mxu0 0.0
        %3562 = vmatmul.mubr.f32.gmra.mrb[0].mxu0 %v3493
        %v3563 = vpop.f32.mrb[0].mxu0
        %v3564 = vadd.f32 %v893, %v3563
        %v3565 = vpop.f32.mrb[0].mxu0
        %3566 = vdwg.mxu0
        %v3567 = vsel %vm3236, %v3564, -inf
        %3568 = vmax.xlane.f32.xlu0 %v3567
        %v3569 = vpop.xlane.xlu0 %3568
        %v3570 = vsub.f32 %v3564, %v3569
        %v3571 = vmul.f32 %v3570, 1.442695
        %v3572 = vpow.pop %v3571
        %v3573 = vsel %vm3236, %v3572, 0.0
        %3574 = vadd.xlane.f32.xlu0 %v3573
        %v3575 = vpop.xlane.xlu0 %3574
        %v3576 = vrcp.pop %v3575
        %v3577 = vmul.f32 %v3572, %v3576
        %3578 = vrot.lane.b32.xlu0 %v3156, 80
        %v3579 = vpop.permute.xlu0 %3578
        %v3582 = vsel %vm898, %v3577, 0
        %3584 = vmatprep.subr.mxu0 0.0
        %3585 = vmatpush1.msra.mxu0 %v3579
        %3586 = vmatprep.subr.mxu0 0.0
        %3587 = vmatpush1.msra.mxu0 0.0
        %3588 = vmatprep.subr.mxu0 0.0
        %3589 = vmatpush1.msra.mxu0 0.0
        %3590 = vmatprep.subr.mxu0 0.0
        %3591 = vmatpush1.msra.mxu0 0.0
        %3592 = vmatprep.subr.mxu0 0.0
        %3593 = vmatpush1.msra.mxu0 0.0
        %3594 = vmatprep.subr.mxu0 0.0
        %3595 = vmatpush1.msra.mxu0 0.0
        %3596 = vmatprep.subr.mxu0 0.0
        %3597 = vmatpush1.msra.mxu0 0.0
        %3598 = vmatprep.subr.mxu0 0.0
        %3599 = vmatpush1.msra.mxu0 0.0
        %3600 = vmatprep.subr.mxu0 0.0
        %3601 = vmatpush1.msra.mxu0 0.0
        %3602 = vmatprep.subr.mxu0 0.0
        %3603 = vmatpush1.msra.mxu0 0.0
        %3604 = vmatprep.subr.mxu0 0.0
        %3605 = vmatpush1.msra.mxu0 0.0
        %3606 = vmatprep.subr.mxu0 0.0
        %3607 = vmatpush1.msra.mxu0 0.0
        %3608 = vmatprep.subr.mxu0 0.0
        %3609 = vmatpush1.msra.mxu0 0.0
        %3610 = vmatprep.subr.mxu0 0.0
        %3611 = vmatpush1.msra.mxu0 0.0
        %3612 = vmatprep.subr.mxu0 0.0
        %3613 = vmatpush1.msra.mxu0 0.0
        %3614 = vmatprep.subr.mxu0 0.0
        %3615 = vmatpush1.msra.mxu0 0.0
        %3616 = vmatprep.subr.mxu0 0.0
        %3617 = vmatpush1.msra.mxu0 0.0
        %3618 = vmatprep.subr.mxu0 0.0
        %3619 = vmatpush1.msra.mxu0 0.0
        %3620 = vmatprep.subr.mxu0 0.0
        %3621 = vmatpush1.msra.mxu0 0.0
        %3622 = vmatprep.subr.mxu0 0.0
        %3623 = vmatpush1.msra.mxu0 0.0
        %3624 = vmatprep.subr.mxu0 0.0
        %3625 = vmatpush1.msra.mxu0 0.0
        %3626 = vmatprep.subr.mxu0 0.0
        %3627 = vmatpush1.msra.mxu0 0.0
        %3628 = vmatprep.subr.mxu0 0.0
        %3629 = vmatpush1.msra.mxu0 0.0
        %3630 = vmatprep.subr.mxu0 0.0
        %3631 = vmatpush1.msra.mxu0 0.0
        %3632 = vmatprep.subr.mxu0 0.0
        %3633 = vmatpush1.msra.mxu0 0.0
        %3634 = vmatprep.subr.mxu0 0.0
        %3635 = vmatpush1.msra.mxu0 0.0
        %3636 = vmatprep.subr.mxu0 0.0
        %3637 = vmatpush1.msra.mxu0 0.0
        %3638 = vmatprep.subr.mxu0 0.0
        %3639 = vmatpush1.msra.mxu0 0.0
        %3640 = vmatprep.subr.mxu0 0.0
        %3641 = vmatpush1.msra.mxu0 0.0
        %3642 = vmatprep.subr.mxu0 0.0
        %3643 = vmatpush1.msra.mxu0 0.0
        %3644 = vmatprep.subr.mxu0 0.0
        %3645 = vmatpush1.msra.mxu0 0.0
        %3646 = vmatprep.subr.mxu0 0.0
        %3647 = vmatpush1.msra.mxu0 0.0
        %3648 = vmatprep.mubr.f32.mxu0 0.0
        %3649 = vmatmul.mubr.f32.gmra.mrb[0].mxu0 %v3582
        %v3650 = vpop.f32.mrb[0].mxu0
        %v3651 = vadd.f32 0.0, %v3650
        %v3652 = vpop.f32.mrb[0].mxu0
        %3653 = vdwg.mxu0
        %3654 = vrot.lane.b32.xlu0 %v3159, 104
        %v3655 = vpop.permute.xlu0 %3654
        %3656 = vrot.lane.b32.xlu0 %v3156, 104
        %v3657 = vpop.permute.xlu0 %3656
        %v3658 = vsel %vm898, %v3655, 0
        %v3660 = vsel %vm898, %v3657, 0
        %3662 = vmatprep.subr.mxu0 0.0
        %3663 = vmatpush1.xpose.msra.mxu0 %v3660
        %3664 = vmatprep.subr.mxu0 0.0
        %3665 = vmatpush1.xpose.msra.mxu0 0.0
        %3666 = vmatprep.subr.mxu0 0.0
        %3667 = vmatpush1.xpose.msra.mxu0 0.0
        %3668 = vmatprep.subr.mxu0 0.0
        %3669 = vmatpush1.xpose.msra.mxu0 0.0
        %3670 = vmatprep.subr.mxu0 0.0
        %3671 = vmatpush1.xpose.msra.mxu0 0.0
        %3672 = vmatprep.subr.mxu0 0.0
        %3673 = vmatpush1.xpose.msra.mxu0 0.0
        %3674 = vmatprep.subr.mxu0 0.0
        %3675 = vmatpush1.xpose.msra.mxu0 0.0
        %3676 = vmatprep.subr.mxu0 0.0
        %3677 = vmatpush1.xpose.msra.mxu0 0.0
        %3678 = vmatprep.subr.mxu0 0.0
        %3679 = vmatpush1.xpose.msra.mxu0 0.0
        %3680 = vmatprep.subr.mxu0 0.0
        %3681 = vmatpush1.xpose.msra.mxu0 0.0
        %3682 = vmatprep.subr.mxu0 0.0
        %3683 = vmatpush1.xpose.msra.mxu0 0.0
        %3684 = vmatprep.subr.mxu0 0.0
        %3685 = vmatpush1.xpose.msra.mxu0 0.0
        %3686 = vmatprep.subr.mxu0 0.0
        %3687 = vmatpush1.xpose.msra.mxu0 0.0
        %3688 = vmatprep.subr.mxu0 0.0
        %3689 = vmatpush1.xpose.msra.mxu0 0.0
        %3690 = vmatprep.subr.mxu0 0.0
        %3691 = vmatpush1.xpose.msra.mxu0 0.0
        %3692 = vmatprep.subr.mxu0 0.0
        %3693 = vmatpush1.xpose.msra.mxu0 0.0
        %3694 = vmatprep.subr.mxu0 0.0
        %3695 = vmatpush1.xpose.msra.mxu0 0.0
        %3696 = vmatprep.subr.mxu0 0.0
        %3697 = vmatpush1.xpose.msra.mxu0 0.0
        %3698 = vmatprep.subr.mxu0 0.0
        %3699 = vmatpush1.xpose.msra.mxu0 0.0
        %3700 = vmatprep.subr.mxu0 0.0
        %3701 = vmatpush1.xpose.msra.mxu0 0.0
        %3702 = vmatprep.subr.mxu0 0.0
        %3703 = vmatpush1.xpose.msra.mxu0 0.0
        %3704 = vmatprep.subr.mxu0 0.0
        %3705 = vmatpush1.xpose.msra.mxu0 0.0
        %3706 = vmatprep.subr.mxu0 0.0
        %3707 = vmatpush1.xpose.msra.mxu0 0.0
        %3708 = vmatprep.subr.mxu0 0.0
        %3709 = vmatpush1.xpose.msra.mxu0 0.0
        %3710 = vmatprep.subr.mxu0 0.0
        %3711 = vmatpush1.xpose.msra.mxu0 0.0
        %3712 = vmatprep.subr.mxu0 0.0
        %3713 = vmatpush1.xpose.msra.mxu0 0.0
        %3714 = vmatprep.subr.mxu0 0.0
        %3715 = vmatpush1.xpose.msra.mxu0 0.0
        %3716 = vmatprep.subr.mxu0 0.0
        %3717 = vmatpush1.xpose.msra.mxu0 0.0
        %3718 = vmatprep.subr.mxu0 0.0
        %3719 = vmatpush1.xpose.msra.mxu0 0.0
        %3720 = vmatprep.subr.mxu0 0.0
        %3721 = vmatpush1.xpose.msra.mxu0 0.0
        %3722 = vmatprep.subr.mxu0 0.0
        %3723 = vmatpush1.xpose.msra.mxu0 0.0
        %3724 = vmatprep.subr.mxu0 0.0
        %3725 = vmatpush1.xpose.msra.mxu0 0.0
        %3726 = vmatprep.mubr.f32.mxu0 0.0
        %3727 = vmatmul.mubr.f32.gmra.mrb[0].mxu0 %v3658
        %v3728 = vpop.f32.mrb[0].mxu0
        %v3729 = vadd.f32 %v893, %v3728
        %v3730 = vpop.f32.mrb[0].mxu0
        %3731 = vdwg.mxu0
        %v3732 = vsel %vm3236, %v3729, -inf
        %3733 = vmax.xlane.f32.xlu0 %v3732
        %v3734 = vpop.xlane.xlu0 %3733
        %v3735 = vsub.f32 %v3729, %v3734
        %v3736 = vmul.f32 %v3735, 1.442695
        %v3737 = vpow.pop %v3736
        %v3738 = vsel %vm3236, %v3737, 0.0
        %3739 = vadd.xlane.f32.xlu0 %v3738
        %v3740 = vpop.xlane.xlu0 %3739
        %v3741 = vrcp.pop %v3740
        %v3742 = vmul.f32 %v3737, %v3741
        %3743 = vrot.lane.b32.xlu0 %v3156, 72
        %v3744 = vpop.permute.xlu0 %3743
        %v3747 = vsel %vm898, %v3742, 0
        %3749 = vmatprep.subr.mxu0 0.0
        %3750 = vmatpush1.msra.mxu0 %v3744
        %3751 = vmatprep.subr.mxu0 0.0
        %3752 = vmatpush1.msra.mxu0 0.0
        %3753 = vmatprep.subr.mxu0 0.0
        %3754 = vmatpush1.msra.mxu0 0.0
        %3755 = vmatprep.subr.mxu0 0.0
        %3756 = vmatpush1.msra.mxu0 0.0
        %3757 = vmatprep.subr.mxu0 0.0
        %3758 = vmatpush1.msra.mxu0 0.0
        %3759 = vmatprep.subr.mxu0 0.0
        %3760 = vmatpush1.msra.mxu0 0.0
        %3761 = vmatprep.subr.mxu0 0.0
        %3762 = vmatpush1.msra.mxu0 0.0
        %3763 = vmatprep.subr.mxu0 0.0
        %3764 = vmatpush1.msra.mxu0 0.0
        %3765 = vmatprep.subr.mxu0 0.0
        %3766 = vmatpush1.msra.mxu0 0.0
        %3767 = vmatprep.subr.mxu0 0.0
        %3768 = vmatpush1.msra.mxu0 0.0
        %3769 = vmatprep.subr.mxu0 0.0
        %3770 = vmatpush1.msra.mxu0 0.0
        %3771 = vmatprep.subr.mxu0 0.0
        %3772 = vmatpush1.msra.mxu0 0.0
        %3773 = vmatprep.subr.mxu0 0.0
        %3774 = vmatpush1.msra.mxu0 0.0
        %3775 = vmatprep.subr.mxu0 0.0
        %3776 = vmatpush1.msra.mxu0 0.0
        %3777 = vmatprep.subr.mxu0 0.0
        %3778 = vmatpush1.msra.mxu0 0.0
        %3779 = vmatprep.subr.mxu0 0.0
        %3780 = vmatpush1.msra.mxu0 0.0
        %3781 = vmatprep.subr.mxu0 0.0
        %3782 = vmatpush1.msra.mxu0 0.0
        %3783 = vmatprep.subr.mxu0 0.0
        %3784 = vmatpush1.msra.mxu0 0.0
        %3785 = vmatprep.subr.mxu0 0.0
        %3786 = vmatpush1.msra.mxu0 0.0
        %3787 = vmatprep.subr.mxu0 0.0
        %3788 = vmatpush1.msra.mxu0 0.0
        %3789 = vmatprep.subr.mxu0 0.0
        %3790 = vmatpush1.msra.mxu0 0.0
        %3791 = vmatprep.subr.mxu0 0.0
        %3792 = vmatpush1.msra.mxu0 0.0
        %3793 = vmatprep.subr.mxu0 0.0
        %3794 = vmatpush1.msra.mxu0 0.0
        %3795 = vmatprep.subr.mxu0 0.0
        %3796 = vmatpush1.msra.mxu0 0.0
        %3797 = vmatprep.subr.mxu0 0.0
        %3798 = vmatpush1.msra.mxu0 0.0
        %3799 = vmatprep.subr.mxu0 0.0
        %3800 = vmatpush1.msra.mxu0 0.0
        %3801 = vmatprep.subr.mxu0 0.0
        %3802 = vmatpush1.msra.mxu0 0.0
        %3803 = vmatprep.subr.mxu0 0.0
        %3804 = vmatpush1.msra.mxu0 0.0
        %3805 = vmatprep.subr.mxu0 0.0
        %3806 = vmatpush1.msra.mxu0 0.0
        %3807 = vmatprep.subr.mxu0 0.0
        %3808 = vmatpush1.msra.mxu0 0.0
        %3809 = vmatprep.subr.mxu0 0.0
        %3810 = vmatpush1.msra.mxu0 0.0
        %3811 = vmatprep.subr.mxu0 0.0
        %3812 = vmatpush1.msra.mxu0 0.0
        %3813 = vmatprep.mubr.f32.mxu0 0.0
        %3814 = vmatmul.mubr.f32.gmra.mrb[0].mxu0 %v3747
        %v3815 = vpop.f32.mrb[0].mxu0
        %v3816 = vadd.f32 0.0, %v3815
        %v3817 = vpop.f32.mrb[0].mxu0
        %3818 = vdwg.mxu0
        %3820 = vrot.lane.b32.xlu0 %v3486, 8
        %v3821 = vpop.permute.xlu0 %3820
        %3824 = vrot.lane.b32.xlu0 %v3651, 16
        %v3825 = vpop.permute.xlu0 %3824
        %3828 = vrot.lane.b32.xlu0 %v3816, 24
        %v3829 = vpop.permute.xlu0 %3828
        %v3831 = vsel %vm898, %v3321, %v3821
        %v3832 = vsel %vm1569, %v3831, %v3825
        %v3833 = vsel %vm1571, %v3832, %v3829
        %v3834 = vld [vmem:[%s19] sm:$0xff]
        %v3835 = vld [vmem:[%s19 + $0x8] sm:$0xff]
        %v3836 = vld [vmem:[%s19 + $0x10] sm:$0xff]
        %v3837 = vld [vmem:[%s19 + $0x18] sm:$0xff]
        %v3838 = vld [vmem:[#allocation5] sm:$0x1]
        %v3840 = vlaneseq
        %v3841 = vshrl.u32 %v3840, 7
        %v3842 = vsub.s32 0, %v3841
        %v3843 = vrot.slane %v3838, %v3842
        %v3846 = vsel %vm814, %v3833, 0
        %3848 = vmatprep.subr.mxu0 0.0
        %3849 = vmatpush1.msra.mxu0 %v3834
        %3850 = vmatprep.subr.mxu0 0.0
        %3851 = vmatpush1.msra.mxu0 %v3835
        %3852 = vmatprep.subr.mxu0 0.0
        %3853 = vmatpush1.msra.mxu0 %v3836
        %3854 = vmatprep.subr.mxu0 0.0
        %3855 = vmatpush1.msra.mxu0 %v3837
        %3856 = vmatprep.subr.mxu0 0.0
        %3857 = vmatpush1.msra.mxu0 0.0
        %3858 = vmatprep.subr.mxu0 0.0
        %3859 = vmatpush1.msra.mxu0 0.0
        %3860 = vmatprep.subr.mxu0 0.0
        %3861 = vmatpush1.msra.mxu0 0.0
        %3862 = vmatprep.subr.mxu0 0.0
        %3863 = vmatpush1.msra.mxu0 0.0
        %3864 = vmatprep.subr.mxu0 0.0
        %3865 = vmatpush1.msra.mxu0 0.0
        %3866 = vmatprep.subr.mxu0 0.0
        %3867 = vmatpush1.msra.mxu0 0.0
        %3868 = vmatprep.subr.mxu0 0.0
        %3869 = vmatpush1.msra.mxu0 0.0
        %3870 = vmatprep.subr.mxu0 0.0
        %3871 = vmatpush1.msra.mxu0 0.0
        %3872 = vmatprep.subr.mxu0 0.0
        %3873 = vmatpush1.msra.mxu0 0.0
        %3874 = vmatprep.subr.mxu0 0.0
        %3875 = vmatpush1.msra.mxu0 0.0
        %3876 = vmatprep.subr.mxu0 0.0
        %3877 = vmatpush1.msra.mxu0 0.0
        %3878 = vmatprep.subr.mxu0 0.0
        %3879 = vmatpush1.msra.mxu0 0.0
        %3880 = vmatprep.subr.mxu0 0.0
        %3881 = vmatpush1.msra.mxu0 0.0
        %3882 = vmatprep.subr.mxu0 0.0
        %3883 = vmatpush1.msra.mxu0 0.0
        %3884 = vmatprep.subr.mxu0 0.0
        %3885 = vmatpush1.msra.mxu0 0.0
        %3886 = vmatprep.subr.mxu0 0.0
        %3887 = vmatpush1.msra.mxu0 0.0
        %3888 = vmatprep.subr.mxu0 0.0
        %3889 = vmatpush1.msra.mxu0 0.0
        %3890 = vmatprep.subr.mxu0 0.0
        %3891 = vmatpush1.msra.mxu0 0.0
        %3892 = vmatprep.subr.mxu0 0.0
        %3893 = vmatpush1.msra.mxu0 0.0
        %3894 = vmatprep.subr.mxu0 0.0
        %3895 = vmatpush1.msra.mxu0 0.0
        %3896 = vmatprep.subr.mxu0 0.0
        %3897 = vmatpush1.msra.mxu0 0.0
        %3898 = vmatprep.subr.mxu0 0.0
        %3899 = vmatpush1.msra.mxu0 0.0
        %3900 = vmatprep.subr.mxu0 0.0
        %3901 = vmatpush1.msra.mxu0 0.0
        %3902 = vmatprep.subr.mxu0 0.0
        %3903 = vmatpush1.msra.mxu0 0.0
        %3904 = vmatprep.subr.mxu0 0.0
        %3905 = vmatpush1.msra.mxu0 0.0
        %3906 = vmatprep.subr.mxu0 0.0
        %3907 = vmatpush1.msra.mxu0 0.0
        %3908 = vmatprep.subr.mxu0 0.0
        %3909 = vmatpush1.msra.mxu0 0.0
        %3910 = vmatprep.subr.mxu0 0.0
        %3911 = vmatpush1.msra.mxu0 0.0
        %3912 = vmatprep.mubr.f32.mxu0 0.0
        %3913 = vmatmul.mubr.f32.gmra.mrb[0].mxu0 %v3846
        %v3914 = vpop.f32.mrb[0].mxu0
        %v3915 = vadd.f32 %v3843, %v3914
        %v3916 = vpop.f32.mrb[0].mxu0
        %3917 = vdwg.mxu0
        %v3918 = vadd.f32 %v2990, %v3915
        %v3919 = vld [vmem:[%s21] sm:$0x1]
        %v3920 = vld [vmem:[%s22] sm:$0x1]
        %vm3921 = vcmask 257024
        %v3922 = vsel %vm3921, %v3918, 0.0
        %3923 = vadd.xlane.f32.xlu0 %v3922
        %v3924 = vpop.xlane.xlu0 %3923
        %v3925 = vmul.f32 %v3924, %v1663
        %v3926 = vsub.f32 %v3918, %v3925
        %v3927 = vmul.f32 %v3926, %v3926
        %v3928 = vsel %vm3921, %v3927, 0.0
        %3929 = vadd.xlane.f32.xlu0 %v3928
        %v3930 = vpop.xlane.xlu0 %3929
        %v3931 = vmul.f32 %v3930, %v1663
        %v3932 = vadd.f32 %v3931, 1e-05
        %v3933 = vrsqrt.pop %v3932
        %v3934 = vmul.f32 %v3926, %v3933
        %v3936 = vlaneseq
        %v3937 = vshrl.u32 %v3936, 7
        %v3938 = vsub.s32 0, %v3937
        %v3939 = vrot.slane %v3919, %v3938
        %v3941 = vmul.f32 %v3934, %v3939
        %v3943 = vlaneseq
        %v3944 = vshrl.u32 %v3943, 7
        %v3945 = vsub.s32 0, %v3944
        %v3946 = vrot.slane %v3920, %v3945
        %v3948 = vadd.f32 %v3941, %v3946
        %v3949 = vld [vmem:[%s23] sm:$0xf]
        %v3951 = vsel %vm814, %v3948, 0
        %v3954 = vsel %vm814, %v3949, 0
        %3956 = vmatprep.subr.mxu0 0.0
        %3957 = vmatpush1.xpose.msra.mxu0 %v3954
        %3958 = vmatprep.subr.mxu0 0.0
        %3959 = vmatpush1.xpose.msra.mxu0 0.0
        %3960 = vmatprep.subr.mxu0 0.0
        %3961 = vmatpush1.xpose.msra.mxu0 0.0
        %3962 = vmatprep.subr.mxu0 0.0
        %3963 = vmatpush1.xpose.msra.mxu0 0.0
        %3964 = vmatprep.subr.mxu0 0.0
        %3965 = vmatpush1.xpose.msra.mxu0 0.0
        %3966 = vmatprep.subr.mxu0 0.0
        %3967 = vmatpush1.xpose.msra.mxu0 0.0
        %3968 = vmatprep.subr.mxu0 0.0
        %3969 = vmatpush1.xpose.msra.mxu0 0.0
        %3970 = vmatprep.subr.mxu0 0.0
        %3971 = vmatpush1.xpose.msra.mxu0 0.0
        %3972 = vmatprep.subr.mxu0 0.0
        %3973 = vmatpush1.xpose.msra.mxu0 0.0
        %3974 = vmatprep.subr.mxu0 0.0
        %3975 = vmatpush1.xpose.msra.mxu0 0.0
        %3976 = vmatprep.subr.mxu0 0.0
        %3977 = vmatpush1.xpose.msra.mxu0 0.0
        %3978 = vmatprep.subr.mxu0 0.0
        %3979 = vmatpush1.xpose.msra.mxu0 0.0
        %3980 = vmatprep.subr.mxu0 0.0
        %3981 = vmatpush1.xpose.msra.mxu0 0.0
        %3982 = vmatprep.subr.mxu0 0.0
        %3983 = vmatpush1.xpose.msra.mxu0 0.0
        %3984 = vmatprep.subr.mxu0 0.0
        %3985 = vmatpush1.xpose.msra.mxu0 0.0
        %3986 = vmatprep.subr.mxu0 0.0
        %3987 = vmatpush1.xpose.msra.mxu0 0.0
        %3988 = vmatprep.subr.mxu0 0.0
        %3989 = vmatpush1.xpose.msra.mxu0 0.0
        %3990 = vmatprep.subr.mxu0 0.0
        %3991 = vmatpush1.xpose.msra.mxu0 0.0
        %3992 = vmatprep.subr.mxu0 0.0
        %3993 = vmatpush1.xpose.msra.mxu0 0.0
        %3994 = vmatprep.subr.mxu0 0.0
        %3995 = vmatpush1.xpose.msra.mxu0 0.0
        %3996 = vmatprep.subr.mxu0 0.0
        %3997 = vmatpush1.xpose.msra.mxu0 0.0
        %3998 = vmatprep.subr.mxu0 0.0
        %3999 = vmatpush1.xpose.msra.mxu0 0.0
        %4000 = vmatprep.subr.mxu0 0.0
        %4001 = vmatpush1.xpose.msra.mxu0 0.0
        %4002 = vmatprep.subr.mxu0 0.0
        %4003 = vmatpush1.xpose.msra.mxu0 0.0
        %4004 = vmatprep.subr.mxu0 0.0
        %4005 = vmatpush1.xpose.msra.mxu0 0.0
        %4006 = vmatprep.subr.mxu0 0.0
        %4007 = vmatpush1.xpose.msra.mxu0 0.0
        %4008 = vmatprep.subr.mxu0 0.0
        %4009 = vmatpush1.xpose.msra.mxu0 0.0
        %4010 = vmatprep.subr.mxu0 0.0
        %4011 = vmatpush1.xpose.msra.mxu0 0.0
        %4012 = vmatprep.subr.mxu0 0.0
        %4013 = vmatpush1.xpose.msra.mxu0 0.0
        %4014 = vmatprep.subr.mxu0 0.0
        %4015 = vmatpush1.xpose.msra.mxu0 0.0
        %4016 = vmatprep.subr.mxu0 0.0
        %4017 = vmatpush1.xpose.msra.mxu0 0.0
        %4018 = vmatprep.subr.mxu0 0.0
        %4019 = vmatpush1.xpose.msra.mxu0 0.0
        %4020 = vmatprep.mubr.f32.mxu0 0.0
        %4021 = vmatmul.mubr.f32.gmra.mrb[0].mxu0 %v3951
        %v4022 = vpop.f32.mrb[0].mxu0
        %v4023 = vadd.f32 0.0, %v4022
        %v4024 = vpop.f32.mrb[0].mxu0
        %4025 = vdwg.mxu0
        %v4026 = vlaneseq
        %v4027 = vshrl.u32 %v4026, 7
        %v4028 = vlaneseq
        %v4029 = vand.u32 %v4028, 127
        %vm4030 = vcmp.eq.s32.totalorder %v4027, %v4029
        %v4031 = vsel %vm4030, %v4023, 0.0
        %vm4032 = vcmask 27648
        %v4033 = vsel %vm4032, %v4031, 0.0
        %v4034 = vrot.slane %v4033, 4
        %v4035 = vadd.f32 %v4033, %v4034
        %v4036 = vrot.slane %v4035, 2
        %v4037 = vadd.f32 %v4035, %v4036
        %v4038 = vrot.slane %v4037, 1
        %v4039 = vadd.f32 %v4037, %v4038
        %v4040 = vld [vmem:[%s24] sm:$0x1]
        %v4041 = vadd.f32 %v4039, %v4040
        %vm4042 = vcmask 24576
        %4043 = vst.msk [vmem:[%s791] sm:$0x1] %vm4042, %v4041
        %s4044 = sand.u32 %s584, 1
        %s4045 = scalar_lea.sflag [#allocation4], %s4044
        %s4046 = sand.u32 %s584, 1
        %s4047 = scalar_lea.vmem [#allocation7], %s4046
        // Predicated region
        $region129: #{attn_forward.1} parent=119 // pred_check
          %p4048 = pneg %p594
        $region130: #{attn_forward.1} parent=119 // pred_check_branch
          %4050 = sbr.rel (%p4048) target = $region132
        $region131: #{attn_forward.1} parent=119 // pred_region
          %s4052 = ssub.s32 16, 16
          %4053 = vsyncadd %s4045, %s4052
          %s4054 = smul.addr %s41, 16
          %s4055 = scalar_lea.hbm %s25, %s4054
          %s4057 = sshll.u32 %s4047, 4
          %s4058 = int_to_ptr.vmem [resolvable:$true] %s4057
          %4060 = dma.vmem_to_hbm [thread:$0]  %s4058, 16, %s4055, %s4045
        $region132: #{attn_forward.1} parent=119 // pred_fallthru
          _
      $region120: #{attn_forward.1} parent=5 // pred_fallthru
        _
      %p4061 = scmp.le.s32.totalorder 2, %s36
      // Predicated region
      $region133: #{attn_forward.1} parent=5 // pred_check
        %p4062 = pneg %p4061
      $region134: #{attn_forward.1} parent=5 // pred_check_branch
        %4064 = sbr.rel (%p4062) target = $region136
      $region135: #{attn_forward.1} parent=5 // pred_region
        %s4065 = ssub.s32 %s36, 2
        // Predicated region
        $region137: #{attn_forward.1} parent=135 // pred_check
          %p4066 = pneg %p600
        $region138: #{attn_forward.1} parent=135 // pred_check_branch
          %4068 = sbr.rel (%p4066) target = $region140
        $region139: #{attn_forward.1} parent=135 // pred_region
          %s4069 = sand.u32 %s585, 1
          %s4070 = scalar_lea.sflag [#allocation4], %s4069
          %s4071 = sand.u32 %s585, 1
          %s4072 = scalar_lea.vmem [#allocation7], %s4071
          %4073 = dma.done %s4070, 16
        $region140: #{attn_forward.1} parent=135 // pred_fallthru
          _
      $region136: #{attn_forward.1} parent=5 // pred_fallthru
        _
    $region6: #{attn_forward.1} parent=1 // loop_footer
      %s40 = sadd.s32 1, %s36
    $region7: #{attn_forward.1} parent=1 // loop_footer_branch
      %35 = sbr.rel target = $region3
    $region8: #{attn_forward.1} parent=1 // loop_exit
      _
    %4074 = vsyncpa [#allocation3], 1
    %s4075 = scalar_lea.sflag [#allocation3], 1
    %4076 = vsyncpa %s4075, 1
    %4077 = vsyncpa [#allocation6], 1
    %4078 = vsyncpa [#allocation4], 1
    %s4079 = scalar_lea.sflag [#allocation4], 1
    %4080 = vsyncpa %s4079, 1

</llo_original>
